<compile_context>
chip_gen: v6e
topology: v6e:2x2x1
jax: 0.10.0
libtpu: 0.0.40
codegen_flags: <defaults>
</compile_context>

<pallas_src>
import math
import numpy as np
import jax
import jax.numpy as jnp
from jax import lax
from jax.experimental import pallas as pl
from jax.experimental.pallas import tpu as pltpu

# ----- module constants (mirrors acr/result_parser.py) -----
CENTERMAP_SIZE = 64
CAM_DIM = 3
ROT_DIM = 6
MANO_THETA_NUM = 16
PART_IDX = [CAM_DIM, ROT_DIM, (MANO_THETA_NUM - 1) * ROT_DIM, 10]   # [3, 6, 90, 10]
PARAMS_NUM = int(np.sum(PART_IDX))                                  # 109
PRIOR_DIM = PARAMS_NUM - CAM_DIM                                    # 106
NMS_RADIUS = 2                                                      # kernel_sizes = [5]
# prior_mode == 'cross', inter_prior == True, dataset == 'internet', Rot_type == '6D'

H_PAD = 72          # padded working-tile height (multiple of 8 sublanes)
W_PAD = 128         # padded working-tile width (full 128 lanes)
LANES = 128         # channel lane padding for sampled parameter rows
CM_BN_TARGET = 8    # centermap batch rows per grid step (keeps live temporaries < ~4 MiB)
ROT_SUB = 8
ROT_LANES = 128
ROT_BLOCK = ROT_SUB * ROT_LANES   # 1024 rotations per grid step


# =========================================================================
# Kernel A: fused l/r center-map parsing (5x5 NMS max-pool + top-1), batch-gridded
# =========================================================================
def _centermap_top1_kernel(l_ref, r_ref, ls_ref, li_ref, rs_ref, ri_ref, pad_ref):
    bn = l_ref.shape[0]
    n = 2 * bn
    w = CENTERMAP_SIZE
    neg = jnp.float32(-jnp.inf)

    # Build the -inf padded (2*bn, 72, 128) working tile in VMEM (no HBM padding traffic).
    # Re-initialised every step (cheap VMEM stores) so the grid axis can stay 'parallel'.
    pad_ref[...] = jnp.full((n, H_PAD, W_PAD), neg, jnp.float32)
    pad_ref[0:bn, 0:w, 0:w] = l_ref[...]
    pad_ref[bn:n, 0:w, 0:w] = r_ref[...]
    cm = pad_ref[...]

    # Separable 5x5 max-pool, stride 1 (== nn.MaxPool2d(5,1,2) with implicit -inf padding).
    # Everything outside the 64x64 data region is -inf, so roll wrap-around is harmless.
    pool_w = cm
    for d in range(1, NMS_RADIUS + 1):
        pool_w = jnp.maximum(pool_w, pltpu.roll(cm, d, axis=2))
        pool_w = jnp.maximum(pool_w, pltpu.roll(cm, W_PAD - d, axis=2))
    pooled = pool_w
    for d in range(1, NMS_RADIUS + 1):
        pooled = jnp.maximum(pooled, pltpu.roll(pool_w, d, axis=1))
        pooled = jnp.maximum(pooled, pltpu.roll(pool_w, H_PAD - d, axis=1))

    # torch NMS: det = cm * (pooled == cm)  (suppressed -> 0); padding region stays -inf.
    det = jnp.where(pooled == cm, cm,
                    jnp.where(cm > neg, jnp.float32(0.0), neg))

    # Two-stage top-1: per-row lane max + lane argmin, then reduce across rows.
    row_max = jnp.max(det, axis=2)                                        # (n, 72)
    lane_i = lax.broadcasted_iota(jnp.int32, det.shape, 2)                # only full-size int temp
    col_cand = jnp.min(
        jnp.where(det == row_max[:, :, None], lane_i, jnp.int32(W_PAD)), axis=2)   # (n, 72)
    best = jnp.max(row_max, axis=1, keepdims=True)                        # (n, 1)
    row_i = lax.broadcasted_iota(jnp.int32, row_max.shape, 1)             # (n, 72)
    flat_cand = row_i * w + col_cand
    ind = jnp.min(
        jnp.where(row_max == best, flat_cand, jnp.int32(w * w)),
        axis=1, keepdims=True)                                            # (n, 1) int32; first-occurrence tie-break

    ls_ref[...] = best[0:bn, :].reshape(1, bn, 1)
    rs_ref[...] = best[bn:n, :].reshape(1, bn, 1)
    li_ref[...] = ind[0:bn, :].reshape(1, bn, 1)
    ri_ref[...] = ind[bn:n, :].reshape(1, bn, 1)


def parse_centermaps_top1(l_center_map, r_center_map):
    """l/r center_map: (B, 1, H, W). Returns (scores (2B,), flat_inds (2B,) int32), left then right."""
    b = l_center_map.shape[0]
    h = w = CENTERMAP_SIZE
    l_cm = l_center_map.reshape(b, h, w).astype(jnp.float32)
    r_cm = r_center_map.reshape(b, h, w).astype(jnp.float32)

    bn = math.gcd(b, CM_BN_TARGET)          # exact divisor of b -> no batch padding, no OOB blocks
    nblk = b // bn

    out_shapes = (jax.ShapeDtypeStruct((nblk, bn, 1), jnp.float32),
                  jax.ShapeDtypeStruct((nblk, bn, 1), jnp.int32),
                  jax.ShapeDtypeStruct((nblk, bn, 1), jnp.float32),
                  jax.ShapeDtypeStruct((nblk, bn, 1), jnp.int32))
    ls, li, rs, ri = pl.pallas_call(
        _centermap_top1_kernel,
        grid_spec=pltpu.PrefetchScalarGridSpec(
            num_scalar_prefetch=0,
            grid=(nblk,),
            in_specs=[pl.BlockSpec((bn, h, w), lambda i: (i, 0, 0)),
                      pl.BlockSpec((bn, h, w), lambda i: (i, 0, 0))],
            out_specs=[pl.BlockSpec((1, bn, 1), lambda i: (i, 0, 0))] * 4,
            scratch_shapes=[pltpu.VMEM((2 * bn, H_PAD, W_PAD), jnp.float32)]),
        out_shape=out_shapes,
        compiler_params=pltpu.CompilerParams(dimension_semantics=("parallel",)),
    )(l_cm, r_cm)

    scores = jnp.concatenate([ls.reshape(b), rs.reshape(b)], axis=0)
    inds = jnp.concatenate([li.reshape(b), ri.reshape(b)], axis=0)
    return scores, inds


# =========================================================================
# Kernel B: fused parameter + cross-prior sampling
#           (HBM row gather, scalar-prefetched indices, manual double-buffered DMA)
# =========================================================================
def _fused_sampling_kernel(inds_ref, lp_hbm, rp_hbm, lpr_hbm, rpr_hbm, out_ref,
                           lp_slab, rp_slab, lpr_slab, rpr_slab, sems):
    w = CENTERMAP_SIZE
    nb = inds_ref.shape[0] // 2
    c_p = lp_hbm.shape[1]      # 109
    c_pr = lpr_hbm.shape[1]    # 106
    i = pl.program_id(0)
    slot = lax.rem(i, 2)

    def copies(batch, slot_):
        # Only the detected spatial row (C x 64 f32) of each map goes HBM -> VMEM.
        # Cross prior: l_prior is sampled at the RIGHT index, r_prior at the LEFT index.
        l_ind = inds_ref[batch]
        r_ind = inds_ref[nb + batch]
        ly = l_ind // w
        ry = r_ind // w
        dst = pl.ds(slot_, 1)
        return (
            pltpu.make_async_copy(lp_hbm.at[pl.ds(batch, 1), :, pl.ds(ly * w, w)],
                                  lp_slab.at[dst, 0:c_p, 0:w], sems.at[slot_, 0]),
            pltpu.make_async_copy(rp_hbm.at[pl.ds(batch, 1), :, pl.ds(ry * w, w)],
                                  rp_slab.at[dst, 0:c_p, 0:w], sems.at[slot_, 1]),
            pltpu.make_async_copy(lpr_hbm.at[pl.ds(batch, 1), :, pl.ds(ry * w, w)],
                                  lpr_slab.at[dst, CAM_DIM:CAM_DIM + c_pr, 0:w], sems.at[slot_, 2]),
            pltpu.make_async_copy(rpr_hbm.at[pl.ds(batch, 1), :, pl.ds(ly * w, w)],
                                  rpr_slab.at[dst, CAM_DIM:CAM_DIM + c_pr, 0:w], sems.at[slot_, 3]),
        )

    # SMEM scalar reads for this step (done before any DMA wait).
    l_ind = inds_ref[i]
    r_ind = inds_ref[nb + i]
    lx = lax.rem(l_ind, w)
    rx = lax.rem(r_ind, w)
    # determine_coeff: cross prior gated on the FIRST detection's center distance (> 32 px),
    # exactly as the torch reference (it uses l_cyxs[0], r_cyxs[0] for every sample).
    l0 = inds_ref[0]
    r0 = inds_ref[nb]
    dy = l0 // w - r0 // w
    dx = lax.rem(l0, w) - lax.rem(r0, w)
    coeff = jnp.where(dy * dy + dx * dx > 32 * 32, jnp.float32(0.0), jnp.float32(1.0))

    # Prime slot 0 with batch 0's rows.
    @pl.when(i == 0)
    def _():
        for cp in copies(0, 0):
            cp.start()

    # Prefetch the next batch element's rows into the other slot (hidden behind this step).
    @pl.when(i + 1 < nb)
    def _():
        for cp in copies(i + 1, 1 - slot):
            cp.start()

    # Wait for this step's rows.
    for cp in copies(i, slot):
        cp.wait()

    # Cam lanes (sublanes 0:3) of the prior slabs must be exactly zero (prior only adds to [3:]).
    zero_cam = jnp.zeros((1, CAM_DIM, LANES), jnp.float32)
    lpr_slab[pl.ds(slot, 1), 0:CAM_DIM, :] = zero_cam
    rpr_slab[pl.ds(slot, 1), 0:CAM_DIM, :] = zero_cam

    sub_iota = lax.broadcasted_iota(jnp.int32, (LANES, LANES), 0)

    def sample_col(slab, x):
        # slab[slot]: channels on sublanes, spatial cols on lanes (cols 0:64 real).
        # Transpose (XLU) so channels land on lanes, then pick spatial row x via masked sublane sum.
        slab_t = slab[slot].T
        return jnp.sum(jnp.where(sub_iota == x, slab_t, jnp.float32(0.0)),
                       axis=0, keepdims=True)                     # (1, 128) lane-dense row

    l_row = sample_col(lp_slab, lx)
    r_row = sample_col(rp_slab, rx)
    l_pri = sample_col(lpr_slab, rx)     # channels already offset by CAM_DIM sublanes
    r_pri = sample_col(rpr_slab, lx)

    l_out = l_row + coeff * l_pri
    r_out = r_row + coeff * r_pri
    out_ref[...] = jnp.concatenate([l_out, r_out], axis=0).reshape(1, 2, LANES)


def fused_parameter_sampling(l_params_maps, r_params_maps, l_prior_maps, r_prior_maps, flat_inds):
    """maps: NCHW (B, C, H, W); flat_inds: (2B,) int32 (left then right). Returns (B, 2, 128)."""
    b, c_p, h, w = l_params_maps.shape
    c_pr = l_prior_maps.shape[1]
    assert c_p <= LANES and CAM_DIM + c_pr <= LANES
    hw = h * w
    lp = l_params_maps.reshape(b, c_p, hw).astype(jnp.float32)
    rp = r_params_maps.reshape(b, c_p, hw).astype(jnp.float32)
    lpr = l_prior_maps.reshape(b, c_pr, hw).astype(jnp.float32)
    rpr = r_prior_maps.reshape(b, c_pr, hw).astype(jnp.float32)

    grid_spec = pltpu.PrefetchScalarGridSpec(
        num_scalar_prefetch=1,
        grid=(b,),
        in_specs=[pl.BlockSpec(memory_space=pl.ANY)] * 4,           # maps stay in HBM
        out_specs=pl.BlockSpec((1, 2, LANES), lambda i, inds: (i, 0, 0)),
        scratch_shapes=[pltpu.VMEM((2, LANES, LANES), jnp.float32) for _ in range(4)]
                       + [pltpu.SemaphoreType.DMA((2, 4))],
    )
    out = pl.pallas_call(
        _fused_sampling_kernel,
        grid_spec=grid_spec,
        out_shape=jax.ShapeDtypeStruct((b, 2, LANES), jnp.float32),
        # manual cross-step double-buffering requires a sequential grid axis
        compiler_params=pltpu.CompilerParams(dimension_semantics=("arbitrary",)),
    )(flat_inds.astype(jnp.int32), lp, rp, lpr, rpr)
    return out


# =========================================================================
# Kernel C: rot6D -> axis-angle (Gram-Schmidt -> rotmat -> quaternion -> angle-axis)
#           full (8,128) tile per channel: 1024 rotations per grid step
# =========================================================================
def _rot6d_to_angular_kernel(x_ref, o_ref):
    # x_ref (6, 8, 128) f32 ; o_ref (3, 8, 128) f32 ; rotation index packed (sublane, lane)-dense
    eps2 = jnp.float32(1e-24)
    a1x, a2x = x_ref[0], x_ref[1]
    a1y, a2y = x_ref[2], x_ref[3]
    a1z, a2z = x_ref[4], x_ref[5]

    # Gram-Schmidt (F.normalize: divide by max(norm, 1e-12) -> rsqrt of clamped squared norm)
    n1sq = a1x * a1x + a1y * a1y + a1z * a1z
    inv_n1 = lax.rsqrt(jnp.maximum(n1sq, eps2))
    b1x, b1y, b1z = a1x * inv_n1, a1y * inv_n1, a1z * inv_n1
    dot = b1x * a2x + b1y * a2y + b1z * a2z
    c2x, c2y, c2z = a2x - dot * b1x, a2y - dot * b1y, a2z - dot * b1z
    n2sq = c2x * c2x + c2y * c2y + c2z * c2z
    inv_n2 = lax.rsqrt(jnp.maximum(n2sq, eps2))
    b2x, b2y, b2z = c2x * inv_n2, c2y * inv_n2, c2z * inv_n2
    b3x = b1y * b2z - b1z * b2y
    b3y = b1z * b2x - b1x * b2z
    b3z = b1x * b2y - b1y * b2x

    # R = [b1 | b2 | b3]
    r00, r01, r02 = b1x, b2x, b3x
    r10, r11, r12 = b1y, b2y, b3y
    r20, r21, r22 = b1z, b2z, b3z

    # rotation matrix -> quaternion (torchgeometry 4-branch formulation)
    eps_m = jnp.float32(1e-6)
    mask_d2 = r22 < eps_m
    mask_d0_d1 = r00 > r11
    mask_d0_nd1 = r00 < -r11
    t0 = 1.0 + r00 - r11 - r22
    t1 = 1.0 - r00 + r11 - r22
    t2 = 1.0 - r00 - r11 + r22
    t3 = 1.0 + r00 + r11 + r22
    q0 = (r21 - r12, t0, r10 + r01, r02 + r20)
    q1 = (r02 - r20, r10 + r01, t1, r21 + r12)
    q2 = (r10 - r01, r02 + r20, r21 + r12, t2)
    q3 = (t3, r21 - r12, r02 - r20, r10 - r01)
    cnd0 = jnp.logical_and(mask_d2, mask_d0_d1)
    cnd1 = jnp.logical_and(mask_d2, jnp.logical_not(mask_d0_d1))
    cnd2 = jnp.logical_and(jnp.logical_not(mask_d2), mask_d0_nd1)

    def sel(idx):
        return jnp.where(cnd0, q0[idx],
                         jnp.where(cnd1, q1[idx], jnp.where(cnd2, q2[idx], q3[idx])))

    t_sel = jnp.where(cnd0, t0, jnp.where(cnd1, t1, jnp.where(cnd2, t2, t3)))
    inv_denom = lax.rsqrt(t_sel)                       # replaces 4 divides by sqrt(t_sel)
    qw = 0.5 * sel(0) * inv_denom
    qx = 0.5 * sel(1) * inv_denom
    qy = 0.5 * sel(2) * inv_denom
    qz = 0.5 * sel(3) * inv_denom

    # quaternion -> angle-axis
    sin_sq = qx * qx + qy * qy + qz * qz
    sin_t = jnp.sqrt(sin_sq)
    cos_t = qw
    two_theta = 2.0 * jnp.where(cos_t < 0.0,
                                jnp.arctan2(-sin_t, -cos_t),
                                jnp.arctan2(sin_t, cos_t))
    inv_sin = lax.rsqrt(jnp.maximum(sin_sq, jnp.float32(1e-38)))
    k = jnp.where(sin_sq > 0.0, two_theta * inv_sin, jnp.full_like(sin_t, 2.0))
    aax, aay, aaz = qx * k, qy * k, qz * k
    aax = jnp.where(jnp.isnan(aax), 0.0, aax)
    aay = jnp.where(jnp.isnan(aay), 0.0, aay)
    aaz = jnp.where(jnp.isnan(aaz), 0.0, aaz)

    o_ref[0, :, :] = aax
    o_ref[1, :, :] = aay
    o_ref[2, :, :] = aaz


def rot6d_rows_to_angular(x_rows):
    """x_rows: (N, 6) -> (N, 3) axis-angle. 1024 rotations per grid step, full-tile channels."""
    n = x_rows.shape[0]
    n_pad = ((n + ROT_BLOCK - 1) // ROT_BLOCK) * ROT_BLOCK
    g = n_pad // ROT_LANES
    xp = jnp.zeros((n_pad, 6), jnp.float32).at[:n].set(x_rows.astype(jnp.float32))
    x6 = xp.T.reshape(6, g, ROT_LANES)                 # channel x (group, lane)
    out = pl.pallas_call(
        _rot6d_to_angular_kernel,
        grid=(g // ROT_SUB,),
        in_specs=[pl.BlockSpec((6, ROT_SUB, ROT_LANES), lambda i: (0, i, 0))],
        out_specs=pl.BlockSpec((3, ROT_SUB, ROT_LANES), lambda i: (0, i, 0)),
        out_shape=jax.ShapeDtypeStruct((3, g, ROT_LANES), jnp.float32),
        compiler_params=pltpu.CompilerParams(dimension_semantics=("parallel",)),
    )(x6)
    return out.reshape(3, n_pad).T[:n]


# =========================================================================
# ResultParser forward (glue in plain JAX / host python)
# =========================================================================
class ResultParserPallas:
    def __init__(self):
        self.map_size = CENTERMAP_SIZE
        self.part_name = ["cam", "global_orient", "hand_pose", "betas"]
        self.part_idx = PART_IDX
        self.params_num = PARAMS_NUM
        # prior_mode == 'cross' -> module has no learnable parameters (no fusion_fc_end)

    def parse_maps(self, outputs, meta_data, cfg):
        b = outputs["l_center_map"].shape[0]

        # 1 launch: both centermaps -> top-1 score + flat index per hand
        scores, flat_inds = parse_centermaps_top1(outputs["l_center_map"],
                                                  outputs["r_center_map"])
        l_top_score, r_top_score = scores[:b], scores[b:]
        l_flat_inds, r_flat_inds = flat_inds[:b], flat_inds[b:]

        # 1 launch: all param / cross-prior samplings (prior add + coeff gate fused in-kernel)
        samp = fused_parameter_sampling(
            outputs["l_params_maps"], outputs["r_params_maps"],
            outputs["l_prior_maps"], outputs["r_prior_maps"], flat_inds)
        outputs["l_params_pred"] = samp[:, 0, :PARAMS_NUM]
        outputs["r_params_pred"] = samp[:, 1, :PARAMS_NUM]
        outputs["params_pred"] = jnp.concatenate(
            [outputs["l_params_pred"], outputs["r_params_pred"]], axis=0)

        # top-1 per map with an all-true mask -> exactly b detections per hand, always
        outputs["detection_flag"] = jnp.ones((2 * b,), jnp.float32)
        outputs["detection_flag_cache"] = outputs["detection_flag"].astype(bool)

        outputs["l_centers_pred"] = jnp.stack(
            [l_flat_inds % CENTERMAP_SIZE, l_flat_inds // CENTERMAP_SIZE], axis=1)
        outputs["r_centers_pred"] = jnp.stack(
            [r_flat_inds % CENTERMAP_SIZE, r_flat_inds // CENTERMAP_SIZE], axis=1)
        # center confidence == the map value at the detected peak == top-1 score (peak is unsuppressed)
        outputs["l_centers_conf"] = l_top_score[:, None]
        outputs["r_centers_conf"] = r_top_score[:, None]
        outputs["left_hand_num"] = jnp.array([b], dtype=jnp.int32)
        outputs["right_hand_num"] = jnp.array([b], dtype=jnp.int32)

        batch_ids = jnp.concatenate([jnp.arange(b, dtype=jnp.int32)] * 2)
        batch_ids_np = np.concatenate([np.arange(b)] * 2)   # static; no device sync needed
        outputs["reorganize_idx"] = meta_data["batch_ids"][batch_ids]
        for key in ["image", "offsets", "imgpath"]:
            if key in meta_data:
                if isinstance(meta_data[key], jax.Array):
                    meta_data[key] = meta_data[key][batch_ids]
                elif isinstance(meta_data[key], list):
                    # TODO(synk): string paths are re-indexed host-side (no device equivalent).
                    meta_data[key] = np.array(meta_data[key])[batch_ids_np]
        return outputs, meta_data

    def __call__(self, outputs, meta_data, cfg=None):
        return self.forward(outputs, meta_data, cfg)

    def forward(self, outputs, meta_data, cfg=None):
        outputs, meta_data = self.parse_maps(outputs, meta_data, cfg)
        b = outputs["l_center_map"].shape[0]

        idx_list, params_dict = [0], {}
        for i, (idx, name) in enumerate(zip(self.part_idx, self.part_name)):
            idx_list.append(idx_list[i] + idx)
            params_dict[name] = outputs["params_pred"][:, idx_list[i]:idx_list[i + 1]]

        # Rot_type == '6D': one fused rot6D->axis-angle launch for global_orient + hand_pose
        go = params_dict["global_orient"]                   # (2b, 6)
        hp = params_dict["hand_pose"]                       # (2b, 90)
        m = go.shape[0]
        rows = jnp.concatenate([go.reshape(-1, 6), hp.reshape(-1, 6)], axis=0)
        aa = rot6d_rows_to_angular(rows)                    # (m + 15m, 3)
        params_dict["global_orient"] = aa[:m].reshape(m, 3)
        params_dict["hand_pose"] = aa[m:].reshape(m, -1)
        params_dict["poses"] = jnp.concatenate(
            [params_dict["global_orient"], params_dict["hand_pose"]], axis=1)

        # top-1 per map => exactly b left + b right hands (static; no blocking int() host sync)
        outputs["output_hand_type"] = jnp.concatenate(
            [jnp.zeros((b,), jnp.int32), jnp.ones((b,), jnp.int32)])
        outputs["params_dict"] = params_dict
        return outputs, meta_data


# =========================================================================
if __name__ == "__main__":
    key = jax.random.PRNGKey(0)
    b = 2
    H = W = CENTERMAP_SIZE
    ks = jax.random.split(key, 8)

    outputs = {
        "l_center_map": jax.nn.sigmoid(jax.random.normal(ks[0], (b, 1, H, W), jnp.float32)),
        "r_center_map": jax.nn.sigmoid(jax.random.normal(ks[1], (b, 1, H, W), jnp.float32)),
        "l_params_maps": 0.1 * jax.random.normal(ks[2], (b, PARAMS_NUM, H, W), jnp.float32),
        "r_params_maps": 0.1 * jax.random.normal(ks[3], (b, PARAMS_NUM, H, W), jnp.float32),
        "l_prior_maps": 0.1 * jax.random.normal(ks[4], (b, PRIOR_DIM, H, W), jnp.float32),
        "r_prior_maps": 0.1 * jax.random.normal(ks[5], (b, PRIOR_DIM, H, W), jnp.float32),
    }
    meta_data = {
        "batch_ids": jnp.arange(b, dtype=jnp.int32),
        "image": jax.random.normal(ks[6], (b, 3, 16, 16), jnp.float32),
        "offsets": jax.random.normal(ks[7], (b, 7), jnp.float32),
        "imgpath": [f"img_{i}.jpg" for i in range(b)],
    }

    parser = ResultParserPallas()
    outs, meta = parser(outputs, meta_data, cfg={})

    jax.block_until_ready((outs["params_pred"],
                           outs["params_dict"]["poses"],
                           outs["params_dict"]["cam"],
                           outs["l_centers_conf"],
                           outs["r_centers_pred"],
                           outs["output_hand_type"]))
    print("KERNEL_OK")
</pallas_src>

<mosaic_0001>
module attributes {stable_mosaic.version = 11 : i64} {
  func.func @_centermap_top1_kernel(%arg0: i32, %arg1: memref<2x64x64xf32, #tpu.memory_space<vmem>>, %arg2: memref<2x64x64xf32, #tpu.memory_space<vmem>>, %arg3: memref<1x2x1xf32, #tpu.memory_space<vmem>>, %arg4: memref<1x2x1xi32, #tpu.memory_space<vmem>>, %arg5: memref<1x2x1xf32, #tpu.memory_space<vmem>>, %arg6: memref<1x2x1xi32, #tpu.memory_space<vmem>>, %arg7: memref<4x72x128xf32, #tpu.memory_space<vmem>>) attributes {dimension_semantics = [#tpu.dimension_semantics<parallel>], iteration_bounds = array<i64: 1>, scalar_prefetch = 0 : i64, scratch_operands = 1 : i64, tpu.core_type = #tpu.core_type<tc>, window_params = [{transform_indices = @transform_0, window_bounds = array<i64: 2, 64, 64>}, {transform_indices = @transform_1, window_bounds = array<i64: 2, 64, 64>}, {transform_indices = @transform_2, window_bounds = array<i64: 1, 2, 1>}, {transform_indices = @transform_3, window_bounds = array<i64: 1, 2, 1>}, {transform_indices = @transform_4, window_bounds = array<i64: 1, 2, 1>}, {transform_indices = @transform_5, window_bounds = array<i64: 1, 2, 1>}]} {
    %cst = arith.constant 0xFF800000 : f32
    %0 = vector.broadcast %cst : f32 to vector<4x72x128xf32>
    %c0 = arith.constant 0 : index
    %c0_0 = arith.constant 0 : index
    %c0_1 = arith.constant 0 : index
    %1 = vector.load %arg7[%c0, %c0_0, %c0_1] : memref<4x72x128xf32, #tpu.memory_space<vmem>>, vector<4x72x128xf32>
    tpu.vector_store %arg7[%c0, %c0_0, %c0_1], %0 {strides = array<i32>} : memref<4x72x128xf32, #tpu.memory_space<vmem>>, vector<4x72x128xf32>,
    %c0_2 = arith.constant 0 : index
    %c0_3 = arith.constant 0 : index
    %c0_4 = arith.constant 0 : index
    %2 = vector.load %arg1[%c0_2, %c0_3, %c0_4] : memref<2x64x64xf32, #tpu.memory_space<vmem>>, vector<2x64x64xf32>
    %c0_5 = arith.constant 0 : index
    %c0_6 = arith.constant 0 : index
    %c0_7 = arith.constant 0 : index
    %3 = vector.load %arg7[%c0_5, %c0_6, %c0_7] : memref<4x72x128xf32, #tpu.memory_space<vmem>>, vector<2x64x64xf32>
    tpu.vector_store %arg7[%c0_5, %c0_6, %c0_7], %2 {strides = array<i32>} : memref<4x72x128xf32, #tpu.memory_space<vmem>>, vector<2x64x64xf32>,
    %c0_8 = arith.constant 0 : index
    %c0_9 = arith.constant 0 : index
    %c0_10 = arith.constant 0 : index
    %4 = vector.load %arg2[%c0_8, %c0_9, %c0_10] : memref<2x64x64xf32, #tpu.memory_space<vmem>>, vector<2x64x64xf32>
    %c2 = arith.constant 2 : index
    %c0_11 = arith.constant 0 : index
    %c0_12 = arith.constant 0 : index
    %5 = vector.load %arg7[%c2, %c0_11, %c0_12] : memref<4x72x128xf32, #tpu.memory_space<vmem>>, vector<2x64x64xf32>
    tpu.vector_store %arg7[%c2, %c0_11, %c0_12], %4 {strides = array<i32>} : memref<4x72x128xf32, #tpu.memory_space<vmem>>, vector<2x64x64xf32>,
    %c0_13 = arith.constant 0 : index
    %c0_14 = arith.constant 0 : index
    %c0_15 = arith.constant 0 : index
    %6 = vector.load %arg7[%c0_13, %c0_14, %c0_15] : memref<4x72x128xf32, #tpu.memory_space<vmem>>, vector<4x72x128xf32>
    %c1_i32 = arith.constant 1 : i32
    %7 = tpu.dynamic_rotate %6 by %c1_i32 dim 2 : vector<4x72x128xf32>, i32 -> vector<4x72x128xf32>
    %8 = arith.maximumf %6, %7 : vector<4x72x128xf32>
    %c127_i32 = arith.constant 127 : i32
    %9 = tpu.dynamic_rotate %6 by %c127_i32 dim 2 : vector<4x72x128xf32>, i32 -> vector<4x72x128xf32>
    %10 = arith.maximumf %8, %9 : vector<4x72x128xf32>
    %c2_i32 = arith.constant 2 : i32
    %11 = tpu.dynamic_rotate %6 by %c2_i32 dim 2 : vector<4x72x128xf32>, i32 -> vector<4x72x128xf32>
    %12 = arith.maximumf %10, %11 : vector<4x72x128xf32>
    %c126_i32 = arith.constant 126 : i32
    %13 = tpu.dynamic_rotate %6 by %c126_i32 dim 2 : vector<4x72x128xf32>, i32 -> vector<4x72x128xf32>
    %14 = arith.maximumf %12, %13 : vector<4x72x128xf32>
    %c1_i32_16 = arith.constant 1 : i32
    %15 = tpu.dynamic_rotate %14 by %c1_i32_16 dim 1 : vector<4x72x128xf32>, i32 -> vector<4x72x128xf32>
    %16 = arith.maximumf %14, %15 : vector<4x72x128xf32>
    %c71_i32 = arith.constant 71 : i32
    %17 = tpu.dynamic_rotate %14 by %c71_i32 dim 1 : vector<4x72x128xf32>, i32 -> vector<4x72x128xf32>
    %18 = arith.maximumf %16, %17 : vector<4x72x128xf32>
    %c2_i32_17 = arith.constant 2 : i32
    %19 = tpu.dynamic_rotate %14 by %c2_i32_17 dim 1 : vector<4x72x128xf32>, i32 -> vector<4x72x128xf32>
    %20 = arith.maximumf %18, %19 : vector<4x72x128xf32>
    %c70_i32 = arith.constant 70 : i32
    %21 = tpu.dynamic_rotate %14 by %c70_i32 dim 1 : vector<4x72x128xf32>, i32 -> vector<4x72x128xf32>
    %22 = arith.maximumf %20, %21 : vector<4x72x128xf32>
    %23 = arith.cmpf oeq, %22, %6 : vector<4x72x128xf32>
    %cst_18 = arith.constant 0xFF800000 : f32
    %24 = vector.broadcast %cst_18 : f32 to vector<4x72x128xf32>
    %25 = arith.cmpf ogt, %6, %24 : vector<4x72x128xf32>
    %cst_19 = arith.constant 0.000000e+00 : f32
    %cst_20 = arith.constant 0xFF800000 : f32
    %26 = vector.broadcast %cst_19 : f32 to vector<4x72x128xf32>
    %27 = vector.broadcast %cst_20 : f32 to vector<4x72x128xf32>
    %28 = arith.select %25, %26, %27 : vector<4x72x128xi1>, vector<4x72x128xf32>
    %29 = arith.select %23, %6, %28 : vector<4x72x128xi1>, vector<4x72x128xf32>
    %cst_21 = arith.constant dense<0xFF800000> : vector<4x72xf32>
    %30 = vector.multi_reduction <maximumf>, %29, %cst_21 [2] : vector<4x72x128xf32> to vector<4x72xf32>
    %31 = tpu.iota {dimensions = array<i32: 2>} : vector<4x72x128xi32>
    %32 = vector.shape_cast %30 : vector<4x72xf32> to vector<4x72x1xf32>
    %33 = vector.broadcast %32 : vector<4x72x1xf32> to vector<4x72x128xf32>
    %34 = arith.cmpf oeq, %29, %33 : vector<4x72x128xf32>
    %c128_i32 = arith.constant 128 : i32
    %35 = vector.broadcast %c128_i32 : i32 to vector<4x72x128xi32>
    %36 = arith.select %34, %31, %35 : vector<4x72x128xi1>, vector<4x72x128xi32>
    %cst_22 = arith.constant dense<2147483647> : vector<4x72xi32>
    %37 = vector.multi_reduction <minsi>, %36, %cst_22 [2] : vector<4x72x128xi32> to vector<4x72xi32>
    %cst_23 = arith.constant dense<0xFF800000> : vector<4xf32>
    %38 = vector.multi_reduction <maximumf>, %30, %cst_23 [1] : vector<4x72xf32> to vector<4xf32>
    %39 = vector.shape_cast %38 : vector<4xf32> to vector<4x1xf32>
    %40 = tpu.iota {dimensions = array<i32: 1>} : vector<4x72xi32>
    %c64_i32 = arith.constant 64 : i32
    %41 = vector.broadcast %c64_i32 : i32 to vector<4x72xi32>
    %42 = arith.muli %40, %41 : vector<4x72xi32>
    %43 = arith.addi %42, %37 : vector<4x72xi32>
    %44 = vector.broadcast %39 : vector<4x1xf32> to vector<4x72xf32>
    %45 = arith.cmpf oeq, %30, %44 : vector<4x72xf32>
    %c4096_i32 = arith.constant 4096 : i32
    %46 = vector.broadcast %c4096_i32 : i32 to vector<4x72xi32>
    %47 = arith.select %45, %43, %46 : vector<4x72xi1>, vector<4x72xi32>
    %cst_24 = arith.constant dense<2147483647> : vector<4xi32>
    %48 = vector.multi_reduction <minsi>, %47, %cst_24 [1] : vector<4x72xi32> to vector<4xi32>
    %49 = vector.shape_cast %48 : vector<4xi32> to vector<4x1xi32>
    %50 = vector.extract_strided_slice %39 {offsets = [0, 0], sizes = [2, 1], strides = [1, 1]} : vector<4x1xf32> to vector<2x1xf32>
    %51 = vector.shape_cast %50 : vector<2x1xf32> to vector<1x2x1xf32>
    %c0_25 = arith.constant 0 : index
    %c0_26 = arith.constant 0 : index
    %c0_27 = arith.constant 0 : index
    %52 = vector.load %arg3[%c0_25, %c0_26, %c0_27] : memref<1x2x1xf32, #tpu.memory_space<vmem>>, vector<1x2x1xf32>
    tpu.vector_store %arg3[%c0_25, %c0_26, %c0_27], %51 {strides = array<i32>} : memref<1x2x1xf32, #tpu.memory_space<vmem>>, vector<1x2x1xf32>,
    %53 = vector.extract_strided_slice %39 {offsets = [2, 0], sizes = [2, 1], strides = [1, 1]} : vector<4x1xf32> to vector<2x1xf32>
    %54 = vector.shape_cast %53 : vector<2x1xf32> to vector<1x2x1xf32>
    %c0_28 = arith.constant 0 : index
    %c0_29 = arith.constant 0 : index
    %c0_30 = arith.constant 0 : index
    %55 = vector.load %arg5[%c0_28, %c0_29, %c0_30] : memref<1x2x1xf32, #tpu.memory_space<vmem>>, vector<1x2x1xf32>
    tpu.vector_store %arg5[%c0_28, %c0_29, %c0_30], %54 {strides = array<i32>} : memref<1x2x1xf32, #tpu.memory_space<vmem>>, vector<1x2x1xf32>,
    %56 = vector.extract_strided_slice %49 {offsets = [0, 0], sizes = [2, 1], strides = [1, 1]} : vector<4x1xi32> to vector<2x1xi32>
    %57 = vector.shape_cast %56 : vector<2x1xi32> to vector<1x2x1xi32>
    %c0_31 = arith.constant 0 : index
    %c0_32 = arith.constant 0 : index
    %c0_33 = arith.constant 0 : index
    %58 = vector.load %arg4[%c0_31, %c0_32, %c0_33] : memref<1x2x1xi32, #tpu.memory_space<vmem>>, vector<1x2x1xi32>
    tpu.vector_store %arg4[%c0_31, %c0_32, %c0_33], %57 {strides = array<i32>} : memref<1x2x1xi32, #tpu.memory_space<vmem>>, vector<1x2x1xi32>,
    %59 = vector.extract_strided_slice %49 {offsets = [2, 0], sizes = [2, 1], strides = [1, 1]} : vector<4x1xi32> to vector<2x1xi32>
    %60 = vector.shape_cast %59 : vector<2x1xi32> to vector<1x2x1xi32>
    %c0_34 = arith.constant 0 : index
    %c0_35 = arith.constant 0 : index
    %c0_36 = arith.constant 0 : index
    %61 = vector.load %arg6[%c0_34, %c0_35, %c0_36] : memref<1x2x1xi32, #tpu.memory_space<vmem>>, vector<1x2x1xi32>
    tpu.vector_store %arg6[%c0_34, %c0_35, %c0_36], %60 {strides = array<i32>} : memref<1x2x1xi32, #tpu.memory_space<vmem>>, vector<1x2x1xi32>,
    return
  }
  func.func @transform_0(%arg0: i32) -> (i32, i32, i32) {
    %c0_i32 = arith.constant 0 : i32
    %c0_i32_0 = arith.constant 0 : i32
    %c0_i32_1 = arith.constant 0 : i32
    return %arg0, %c0_i32, %c0_i32_0 : i32, i32, i32
  }
  func.func @transform_1(%arg0: i32) -> (i32, i32, i32) {
    %c0_i32 = arith.constant 0 : i32
    %c0_i32_0 = arith.constant 0 : i32
    %c0_i32_1 = arith.constant 0 : i32
    return %arg0, %c0_i32, %c0_i32_0 : i32, i32, i32
  }
  func.func @transform_2(%arg0: i32) -> (i32, i32, i32) {
    %c0_i32 = arith.constant 0 : i32
    %c0_i32_0 = arith.constant 0 : i32
    %c0_i32_1 = arith.constant 0 : i32
    return %arg0, %c0_i32, %c0_i32_0 : i32, i32, i32
  }
  func.func @transform_3(%arg0: i32) -> (i32, i32, i32) {
    %c0_i32 = arith.constant 0 : i32
    %c0_i32_0 = arith.constant 0 : i32
    %c0_i32_1 = arith.constant 0 : i32
    return %arg0, %c0_i32, %c0_i32_0 : i32, i32, i32
  }
  func.func @transform_4(%arg0: i32) -> (i32, i32, i32) {
    %c0_i32 = arith.constant 0 : i32
    %c0_i32_0 = arith.constant 0 : i32
    %c0_i32_1 = arith.constant 0 : i32
    return %arg0, %c0_i32, %c0_i32_0 : i32, i32, i32
  }
  func.func @transform_5(%arg0: i32) -> (i32, i32, i32) {
    %c0_i32 = arith.constant 0 : i32
    %c0_i32_0 = arith.constant 0 : i32
    %c0_i32_1 = arith.constant 0 : i32
    return %arg0, %c0_i32, %c0_i32_0 : i32, i32, i32
  }
}

</mosaic_0001>

<llo_original>
// kernel: tpu_custom_call.1
$region0: #{tpu_custom_call.1}
  #allocation0 [shape = 'u32[]', space=smem, size = 0x4, offset = 0x4, fixed_abs, tag = 'smem constant byte address 0x4 - core index']
  #allocation1 [shape = 'u32[144,128]{1,0:T(1,128)}', space=vmem, size = 0x12000, scoped, tag = 'internal scratch']
  #allocation2 [shape = 'f32[4,72,128]{2,1,0:T(8,128)}', space=vmem, size = 0x24000, scoped, tag = 'scratch operand']
  %s0 = inlined_call_operand.hbm [shape: f32[2,64,64], index: 0, kind: input, shape index: {}]
  %s1 = inlined_call_operand.hbm [shape: f32[2,64,64], index: 1, kind: input, shape index: {}]
  %s2 = inlined_call_operand.vmem [shape: f32[1,2,1], index: 2, kind: output, shape index: {0}]
  %s3 = inlined_call_operand.vmem [shape: s32[1,2,1], index: 3, kind: output, shape index: {1}]
  %s4 = inlined_call_operand.vmem [shape: f32[1,2,1], index: 4, kind: output, shape index: {2}]
  %s5 = inlined_call_operand.vmem [shape: s32[1,2,1], index: 5, kind: output, shape index: {3}]
  %6 = xla_tuple %s2, %s3, %s4, %s5
  %s7 = sld [smem:[#allocation0]]
  $region50: #{tpu_custom_call.1} parent=0
    _
  %s9 = ssub.s32 1, %s7
  %s10 = scalar_select 0, %s9, %s7
  $region1: #{tpu_custom_call.1} parent=0
    #allocation3 [shape = 'u8[65536]{0}', space=vmem, size = 0x10000, scoped, tag = 'input window, operand 0, single buffered']
    #allocation4 [shape = 's32[1]{0}', space=sflag, size = 0x4, scoped, tag = 'scoped memory for tpu_custom_call.1']
    #allocation5 [shape = 'u8[65536]{0}', space=vmem, size = 0x10000, scoped, tag = 'input window, operand 1, single buffered']
    #allocation6 [shape = 's32[1]{0}', space=sflag, size = 0x4, scoped, tag = 'scoped memory for tpu_custom_call.1']
    %11 = vsyncpa [#allocation4], 0
    %12 = vsyncpa [#allocation6], 0
    // Predicated region
    $region2: #{tpu_custom_call.1} parent=1 // pred_check
      _
    $region3: #{tpu_custom_call.1} parent=1 // pred_check_branch
      %14 = sbr.rel (0) target = $region5
    $region4: #{tpu_custom_call.1} parent=1 // pred_region
      %s16 = ssub.s32 2048, 2048
      %17 = vsyncadd [#allocation4], %s16
      %s18 = sshll.u32 [#allocation3], 4
      %s19 = int_to_ptr.vmem [resolvable:$true] %s18
      %24 = dma.hbm_to_vmem [thread:$0]  %s0, 2048, %s19, [#allocation4], 128, 128, 8
    $region5: #{tpu_custom_call.1} parent=1 // pred_fallthru
      _
    // Predicated region
    $region6: #{tpu_custom_call.1} parent=1 // pred_check
      _
    $region7: #{tpu_custom_call.1} parent=1 // pred_check_branch
      %26 = sbr.rel (0) target = $region9
    $region8: #{tpu_custom_call.1} parent=1 // pred_region
      %s28 = ssub.s32 2048, 2048
      %29 = vsyncadd [#allocation6], %s28
      %s30 = sshll.u32 [#allocation5], 4
      %s31 = int_to_ptr.vmem [resolvable:$true] %s30
      %36 = dma.hbm_to_vmem [thread:$0]  %s1, 2048, %s31, [#allocation6], 128, 128, 8
    $region9: #{tpu_custom_call.1} parent=1 // pred_fallthru
      _
    // Predicated region
    $region10: #{tpu_custom_call.1} parent=1 // pred_check
      _
    $region11: #{tpu_custom_call.1} parent=1 // pred_check_branch
      %38 = sbr.rel (0) target = $region13
    $region12: #{tpu_custom_call.1} parent=1 // pred_region
      %39 = dma.done [#allocation4], 2048
    $region13: #{tpu_custom_call.1} parent=1 // pred_fallthru
      _
    // Predicated region
    $region14: #{tpu_custom_call.1} parent=1 // pred_check
      _
    $region15: #{tpu_custom_call.1} parent=1 // pred_check_branch
      %41 = sbr.rel (0) target = $region17
    $region16: #{tpu_custom_call.1} parent=1 // pred_region
      %42 = dma.done [#allocation6], 2048
    $region17: #{tpu_custom_call.1} parent=1 // pred_fallthru
      _
    %43 = vst [vmem:[#allocation2] sm:$0xff] -inf
    %44 = vst [vmem:[#allocation2 + $0x8] sm:$0xff] -inf
    %45 = vst [vmem:[#allocation2 + $0x10] sm:$0xff] -inf
    %46 = vst [vmem:[#allocation2 + $0x18] sm:$0xff] -inf
    %47 = vst [vmem:[#allocation2 + $0x20] sm:$0xff] -inf
    %48 = vst [vmem:[#allocation2 + $0x28] sm:$0xff] -inf
    %49 = vst [vmem:[#allocation2 + $0x30] sm:$0xff] -inf
    %50 = vst [vmem:[#allocation2 + $0x38] sm:$0xff] -inf
    %51 = vst [vmem:[#allocation2 + $0x40] sm:$0xff] -inf
    %52 = vst [vmem:[#allocation2 + $0x48] sm:$0xff] -inf
    %53 = vst [vmem:[#allocation2 + $0x50] sm:$0xff] -inf
    %54 = vst [vmem:[#allocation2 + $0x58] sm:$0xff] -inf
    %55 = vst [vmem:[#allocation2 + $0x60] sm:$0xff] -inf
    %56 = vst [vmem:[#allocation2 + $0x68] sm:$0xff] -inf
    %57 = vst [vmem:[#allocation2 + $0x70] sm:$0xff] -inf
    %58 = vst [vmem:[#allocation2 + $0x78] sm:$0xff] -inf
    %59 = vst [vmem:[#allocation2 + $0x80] sm:$0xff] -inf
    %60 = vst [vmem:[#allocation2 + $0x88] sm:$0xff] -inf
    %61 = vst [vmem:[#allocation2 + $0x90] sm:$0xff] -inf
    %62 = vst [vmem:[#allocation2 + $0x98] sm:$0xff] -inf
    %63 = vst [vmem:[#allocation2 + $0xa0] sm:$0xff] -inf
    %64 = vst [vmem:[#allocation2 + $0xa8] sm:$0xff] -inf
    %65 = vst [vmem:[#allocation2 + $0xb0] sm:$0xff] -inf
    %66 = vst [vmem:[#allocation2 + $0xb8] sm:$0xff] -inf
    %67 = vst [vmem:[#allocation2 + $0xc0] sm:$0xff] -inf
    %68 = vst [vmem:[#allocation2 + $0xc8] sm:$0xff] -inf
    %69 = vst [vmem:[#allocation2 + $0xd0] sm:$0xff] -inf
    %70 = vst [vmem:[#allocation2 + $0xd8] sm:$0xff] -inf
    %71 = vst [vmem:[#allocation2 + $0xe0] sm:$0xff] -inf
    %72 = vst [vmem:[#allocation2 + $0xe8] sm:$0xff] -inf
    %73 = vst [vmem:[#allocation2 + $0xf0] sm:$0xff] -inf
    %74 = vst [vmem:[#allocation2 + $0xf8] sm:$0xff] -inf
    %75 = vst [vmem:[#allocation2 + $0x100] sm:$0xff] -inf
    %76 = vst [vmem:[#allocation2 + $0x108] sm:$0xff] -inf
    %77 = vst [vmem:[#allocation2 + $0x110] sm:$0xff] -inf
    %78 = vst [vmem:[#allocation2 + $0x118] sm:$0xff] -inf
    %v79 = vld [vmem:[#allocation3] sm:$0xff]
    %v80 = vld [vmem:[#allocation3 + $0x8] sm:$0xff]
    %v81 = vld [vmem:[#allocation3 + $0x10] sm:$0xff]
    %v82 = vld [vmem:[#allocation3 + $0x18] sm:$0xff]
    %v83 = vld [vmem:[#allocation3 + $0x20] sm:$0xff]
    %v84 = vld [vmem:[#allocation3 + $0x28] sm:$0xff]
    %v85 = vld [vmem:[#allocation3 + $0x30] sm:$0xff]
    %v86 = vld [vmem:[#allocation3 + $0x38] sm:$0xff]
    %v87 = vld [vmem:[#allocation3 + $0x40] sm:$0xff]
    %v88 = vld [vmem:[#allocation3 + $0x48] sm:$0xff]
    %v89 = vld [vmem:[#allocation3 + $0x50] sm:$0xff]
    %v90 = vld [vmem:[#allocation3 + $0x58] sm:$0xff]
    %v91 = vld [vmem:[#allocation3 + $0x60] sm:$0xff]
    %v92 = vld [vmem:[#allocation3 + $0x68] sm:$0xff]
    %v93 = vld [vmem:[#allocation3 + $0x70] sm:$0xff]
    %v94 = vld [vmem:[#allocation3 + $0x78] sm:$0xff]
    %vm95 = vcmask 523264
    %96 = vst.msk [vmem:[#allocation2] sm:$0xff] %vm95, %v79
    %97 = vst.msk [vmem:[#allocation2 + $0x8] sm:$0xff] %vm95, %v80
    %98 = vst.msk [vmem:[#allocation2 + $0x10] sm:$0xff] %vm95, %v81
    %99 = vst.msk [vmem:[#allocation2 + $0x18] sm:$0xff] %vm95, %v82
    %100 = vst.msk [vmem:[#allocation2 + $0x20] sm:$0xff] %vm95, %v83
    %101 = vst.msk [vmem:[#allocation2 + $0x28] sm:$0xff] %vm95, %v84
    %102 = vst.msk [vmem:[#allocation2 + $0x30] sm:$0xff] %vm95, %v85
    %103 = vst.msk [vmem:[#allocation2 + $0x38] sm:$0xff] %vm95, %v86
    %104 = vst.msk [vmem:[#allocation2 + $0x48] sm:$0xff] %vm95, %v87
    %105 = vst.msk [vmem:[#allocation2 + $0x50] sm:$0xff] %vm95, %v88
    %106 = vst.msk [vmem:[#allocation2 + $0x58] sm:$0xff] %vm95, %v89
    %107 = vst.msk [vmem:[#allocation2 + $0x60] sm:$0xff] %vm95, %v90
    %108 = vst.msk [vmem:[#allocation2 + $0x68] sm:$0xff] %vm95, %v91
    %109 = vst.msk [vmem:[#allocation2 + $0x70] sm:$0xff] %vm95, %v92
    %110 = vst.msk [vmem:[#allocation2 + $0x78] sm:$0xff] %vm95, %v93
    %111 = vst.msk [vmem:[#allocation2 + $0x80] sm:$0xff] %vm95, %v94
    %v112 = vld [vmem:[#allocation5] sm:$0xff]
    %v113 = vld [vmem:[#allocation5 + $0x8] sm:$0xff]
    %v114 = vld [vmem:[#allocation5 + $0x10] sm:$0xff]
    %v115 = vld [vmem:[#allocation5 + $0x18] sm:$0xff]
    %v116 = vld [vmem:[#allocation5 + $0x20] sm:$0xff]
    %v117 = vld [vmem:[#allocation5 + $0x28] sm:$0xff]
    %v118 = vld [vmem:[#allocation5 + $0x30] sm:$0xff]
    %v119 = vld [vmem:[#allocation5 + $0x38] sm:$0xff]
    %v120 = vld [vmem:[#allocation5 + $0x40] sm:$0xff]
    %v121 = vld [vmem:[#allocation5 + $0x48] sm:$0xff]
    %v122 = vld [vmem:[#allocation5 + $0x50] sm:$0xff]
    %v123 = vld [vmem:[#allocation5 + $0x58] sm:$0xff]
    %v124 = vld [vmem:[#allocation5 + $0x60] sm:$0xff]
    %v125 = vld [vmem:[#allocation5 + $0x68] sm:$0xff]
    %v126 = vld [vmem:[#allocation5 + $0x70] sm:$0xff]
    %v127 = vld [vmem:[#allocation5 + $0x78] sm:$0xff]
    %s128 = scalar_lea.vmem [#allocation2], 144
    %129 = vst.msk [vmem:[%s128] sm:$0xff] %vm95, %v112
    %130 = vst.msk [vmem:[%s128 + $0x8] sm:$0xff] %vm95, %v113
    %131 = vst.msk [vmem:[%s128 + $0x10] sm:$0xff] %vm95, %v114
    %132 = vst.msk [vmem:[%s128 + $0x18] sm:$0xff] %vm95, %v115
    %133 = vst.msk [vmem:[%s128 + $0x20] sm:$0xff] %vm95, %v116
    %134 = vst.msk [vmem:[%s128 + $0x28] sm:$0xff] %vm95, %v117
    %135 = vst.msk [vmem:[%s128 + $0x30] sm:$0xff] %vm95, %v118
    %136 = vst.msk [vmem:[%s128 + $0x38] sm:$0xff] %vm95, %v119
    %137 = vst.msk [vmem:[%s128 + $0x48] sm:$0xff] %vm95, %v120
    %138 = vst.msk [vmem:[%s128 + $0x50] sm:$0xff] %vm95, %v121
    %139 = vst.msk [vmem:[%s128 + $0x58] sm:$0xff] %vm95, %v122
    %140 = vst.msk [vmem:[%s128 + $0x60] sm:$0xff] %vm95, %v123
    %141 = vst.msk [vmem:[%s128 + $0x68] sm:$0xff] %vm95, %v124
    %142 = vst.msk [vmem:[%s128 + $0x70] sm:$0xff] %vm95, %v125
    %143 = vst.msk [vmem:[%s128 + $0x78] sm:$0xff] %vm95, %v126
    %144 = vst.msk [vmem:[%s128 + $0x80] sm:$0xff] %vm95, %v127
    %v145 = vld [vmem:[#allocation2] sm:$0xff]
    %v146 = vld [vmem:[#allocation2 + $0x8] sm:$0xff]
    %v147 = vld [vmem:[#allocation2 + $0x10] sm:$0xff]
    %v148 = vld [vmem:[#allocation2 + $0x18] sm:$0xff]
    %v149 = vld [vmem:[#allocation2 + $0x20] sm:$0xff]
    %v150 = vld [vmem:[#allocation2 + $0x28] sm:$0xff]
    %v151 = vld [vmem:[#allocation2 + $0x30] sm:$0xff]
    %v152 = vld [vmem:[#allocation2 + $0x38] sm:$0xff]
    %v153 = vld [vmem:[#allocation2 + $0x40] sm:$0xff]
    %v154 = vld [vmem:[#allocation2 + $0x48] sm:$0xff]
    %v155 = vld [vmem:[#allocation2 + $0x50] sm:$0xff]
    %v156 = vld [vmem:[#allocation2 + $0x58] sm:$0xff]
    %v157 = vld [vmem:[#allocation2 + $0x60] sm:$0xff]
    %v158 = vld [vmem:[#allocation2 + $0x68] sm:$0xff]
    %v159 = vld [vmem:[#allocation2 + $0x70] sm:$0xff]
    %v160 = vld [vmem:[#allocation2 + $0x78] sm:$0xff]
    %v161 = vld [vmem:[#allocation2 + $0x80] sm:$0xff]
    %v162 = vld [vmem:[#allocation2 + $0x88] sm:$0xff]
    %v163 = vld [vmem:[#allocation2 + $0x90] sm:$0xff]
    %v164 = vld [vmem:[#allocation2 + $0x98] sm:$0xff]
    %v165 = vld [vmem:[#allocation2 + $0xa0] sm:$0xff]
    %v166 = vld [vmem:[#allocation2 + $0xa8] sm:$0xff]
    %v167 = vld [vmem:[#allocation2 + $0xb0] sm:$0xff]
    %v168 = vld [vmem:[#allocation2 + $0xb8] sm:$0xff]
    %v169 = vld [vmem:[#allocation2 + $0xc0] sm:$0xff]
    %v170 = vld [vmem:[#allocation2 + $0xc8] sm:$0xff]
    %v171 = vld [vmem:[#allocation2 + $0xd0] sm:$0xff]
    %v172 = vld [vmem:[#allocation2 + $0xd8] sm:$0xff]
    %v173 = vld [vmem:[#allocation2 + $0xe0] sm:$0xff]
    %v174 = vld [vmem:[#allocation2 + $0xe8] sm:$0xff]
    %v175 = vld [vmem:[#allocation2 + $0xf0] sm:$0xff]
    %v176 = vld [vmem:[#allocation2 + $0xf8] sm:$0xff]
    %v177 = vld [vmem:[#allocation2 + $0x100] sm:$0xff]
    %v178 = vld [vmem:[#allocation2 + $0x108] sm:$0xff]
    %v179 = vld [vmem:[#allocation2 + $0x110] sm:$0xff]
    %v180 = vld [vmem:[#allocation2 + $0x118] sm:$0xff]
    %181 = vrot.lane.b32.xlu0 %v145, 1
    %v182 = vpop.permute.xlu0 %181
    %183 = vrot.lane.b32.xlu0 %v146, 1
    %v184 = vpop.permute.xlu0 %183
    %185 = vrot.lane.b32.xlu0 %v147, 1
    %v186 = vpop.permute.xlu0 %185
    %187 = vrot.lane.b32.xlu0 %v148, 1
    %v188 = vpop.permute.xlu0 %187
    %189 = vrot.lane.b32.xlu0 %v149, 1
    %v190 = vpop.permute.xlu0 %189
    %191 = vrot.lane.b32.xlu0 %v150, 1
    %v192 = vpop.permute.xlu0 %191
    %193 = vrot.lane.b32.xlu0 %v151, 1
    %v194 = vpop.permute.xlu0 %193
    %195 = vrot.lane.b32.xlu0 %v152, 1
    %v196 = vpop.permute.xlu0 %195
    %197 = vrot.lane.b32.xlu0 %v153, 1
    %v198 = vpop.permute.xlu0 %197
    %199 = vrot.lane.b32.xlu0 %v154, 1
    %v200 = vpop.permute.xlu0 %199
    %201 = vrot.lane.b32.xlu0 %v155, 1
    %v202 = vpop.permute.xlu0 %201
    %203 = vrot.lane.b32.xlu0 %v156, 1
    %v204 = vpop.permute.xlu0 %203
    %205 = vrot.lane.b32.xlu0 %v157, 1
    %v206 = vpop.permute.xlu0 %205
    %207 = vrot.lane.b32.xlu0 %v158, 1
    %v208 = vpop.permute.xlu0 %207
    %209 = vrot.lane.b32.xlu0 %v159, 1
    %v210 = vpop.permute.xlu0 %209
    %211 = vrot.lane.b32.xlu0 %v160, 1
    %v212 = vpop.permute.xlu0 %211
    %213 = vrot.lane.b32.xlu0 %v161, 1
    %v214 = vpop.permute.xlu0 %213
    %215 = vrot.lane.b32.xlu0 %v162, 1
    %v216 = vpop.permute.xlu0 %215
    %217 = vrot.lane.b32.xlu0 %v163, 1
    %v218 = vpop.permute.xlu0 %217
    %219 = vrot.lane.b32.xlu0 %v164, 1
    %v220 = vpop.permute.xlu0 %219
    %221 = vrot.lane.b32.xlu0 %v165, 1
    %v222 = vpop.permute.xlu0 %221
    %223 = vrot.lane.b32.xlu0 %v166, 1
    %v224 = vpop.permute.xlu0 %223
    %225 = vrot.lane.b32.xlu0 %v167, 1
    %v226 = vpop.permute.xlu0 %225
    %227 = vrot.lane.b32.xlu0 %v168, 1
    %v228 = vpop.permute.xlu0 %227
    %229 = vrot.lane.b32.xlu0 %v169, 1
    %v230 = vpop.permute.xlu0 %229
    %231 = vrot.lane.b32.xlu0 %v170, 1
    %v232 = vpop.permute.xlu0 %231
    %233 = vrot.lane.b32.xlu0 %v171, 1
    %v234 = vpop.permute.xlu0 %233
    %235 = vrot.lane.b32.xlu0 %v172, 1
    %v236 = vpop.permute.xlu0 %235
    %237 = vrot.lane.b32.xlu0 %v173, 1
    %v238 = vpop.permute.xlu0 %237
    %239 = vrot.lane.b32.xlu0 %v174, 1
    %v240 = vpop.permute.xlu0 %239
    %241 = vrot.lane.b32.xlu0 %v175, 1
    %v242 = vpop.permute.xlu0 %241
    %243 = vrot.lane.b32.xlu0 %v176, 1
    %v244 = vpop.permute.xlu0 %243
    %245 = vrot.lane.b32.xlu0 %v177, 1
    %v246 = vpop.permute.xlu0 %245
    %247 = vrot.lane.b32.xlu0 %v178, 1
    %v248 = vpop.permute.xlu0 %247
    %249 = vrot.lane.b32.xlu0 %v179, 1
    %v250 = vpop.permute.xlu0 %249
    %251 = vrot.lane.b32.xlu0 %v180, 1
    %v252 = vpop.permute.xlu0 %251
    %v253 = vmax.f32 %v145, %v182
    %v254 = vmax.f32 %v146, %v184
    %v255 = vmax.f32 %v147, %v186
    %v256 = vmax.f32 %v148, %v188
    %v257 = vmax.f32 %v149, %v190
    %v258 = vmax.f32 %v150, %v192
    %v259 = vmax.f32 %v151, %v194
    %v260 = vmax.f32 %v152, %v196
    %v261 = vmax.f32 %v153, %v198
    %v262 = vmax.f32 %v154, %v200
    %v263 = vmax.f32 %v155, %v202
    %v264 = vmax.f32 %v156, %v204
    %v265 = vmax.f32 %v157, %v206
    %v266 = vmax.f32 %v158, %v208
    %v267 = vmax.f32 %v159, %v210
    %v268 = vmax.f32 %v160, %v212
    %v269 = vmax.f32 %v161, %v214
    %v270 = vmax.f32 %v162, %v216
    %v271 = vmax.f32 %v163, %v218
    %v272 = vmax.f32 %v164, %v220
    %v273 = vmax.f32 %v165, %v222
    %v274 = vmax.f32 %v166, %v224
    %v275 = vmax.f32 %v167, %v226
    %v276 = vmax.f32 %v168, %v228
    %v277 = vmax.f32 %v169, %v230
    %v278 = vmax.f32 %v170, %v232
    %v279 = vmax.f32 %v171, %v234
    %v280 = vmax.f32 %v172, %v236
    %v281 = vmax.f32 %v173, %v238
    %v282 = vmax.f32 %v174, %v240
    %v283 = vmax.f32 %v175, %v242
    %v284 = vmax.f32 %v176, %v244
    %v285 = vmax.f32 %v177, %v246
    %v286 = vmax.f32 %v178, %v248
    %v287 = vmax.f32 %v179, %v250
    %v288 = vmax.f32 %v180, %v252
    %289 = vrot.lane.b32.xlu0 %v145, 127
    %v290 = vpop.permute.xlu0 %289
    %291 = vrot.lane.b32.xlu0 %v146, 127
    %v292 = vpop.permute.xlu0 %291
    %293 = vrot.lane.b32.xlu0 %v147, 127
    %v294 = vpop.permute.xlu0 %293
    %295 = vrot.lane.b32.xlu0 %v148, 127
    %v296 = vpop.permute.xlu0 %295
    %297 = vrot.lane.b32.xlu0 %v149, 127
    %v298 = vpop.permute.xlu0 %297
    %299 = vrot.lane.b32.xlu0 %v150, 127
    %v300 = vpop.permute.xlu0 %299
    %301 = vrot.lane.b32.xlu0 %v151, 127
    %v302 = vpop.permute.xlu0 %301
    %303 = vrot.lane.b32.xlu0 %v152, 127
    %v304 = vpop.permute.xlu0 %303
    %305 = vrot.lane.b32.xlu0 %v153, 127
    %v306 = vpop.permute.xlu0 %305
    %307 = vrot.lane.b32.xlu0 %v154, 127
    %v308 = vpop.permute.xlu0 %307
    %309 = vrot.lane.b32.xlu0 %v155, 127
    %v310 = vpop.permute.xlu0 %309
    %311 = vrot.lane.b32.xlu0 %v156, 127
    %v312 = vpop.permute.xlu0 %311
    %313 = vrot.lane.b32.xlu0 %v157, 127
    %v314 = vpop.permute.xlu0 %313
    %315 = vrot.lane.b32.xlu0 %v158, 127
    %v316 = vpop.permute.xlu0 %315
    %317 = vrot.lane.b32.xlu0 %v159, 127
    %v318 = vpop.permute.xlu0 %317
    %319 = vrot.lane.b32.xlu0 %v160, 127
    %v320 = vpop.permute.xlu0 %319
    %321 = vrot.lane.b32.xlu0 %v161, 127
    %v322 = vpop.permute.xlu0 %321
    %323 = vrot.lane.b32.xlu0 %v162, 127
    %v324 = vpop.permute.xlu0 %323
    %325 = vrot.lane.b32.xlu0 %v163, 127
    %v326 = vpop.permute.xlu0 %325
    %327 = vrot.lane.b32.xlu0 %v164, 127
    %v328 = vpop.permute.xlu0 %327
    %329 = vrot.lane.b32.xlu0 %v165, 127
    %v330 = vpop.permute.xlu0 %329
    %331 = vrot.lane.b32.xlu0 %v166, 127
    %v332 = vpop.permute.xlu0 %331
    %333 = vrot.lane.b32.xlu0 %v167, 127
    %v334 = vpop.permute.xlu0 %333
    %335 = vrot.lane.b32.xlu0 %v168, 127
    %v336 = vpop.permute.xlu0 %335
    %337 = vrot.lane.b32.xlu0 %v169, 127
    %v338 = vpop.permute.xlu0 %337
    %339 = vrot.lane.b32.xlu0 %v170, 127
    %v340 = vpop.permute.xlu0 %339
    %341 = vrot.lane.b32.xlu0 %v171, 127
    %v342 = vpop.permute.xlu0 %341
    %343 = vrot.lane.b32.xlu0 %v172, 127
    %v344 = vpop.permute.xlu0 %343
    %345 = vrot.lane.b32.xlu0 %v173, 127
    %v346 = vpop.permute.xlu0 %345
    %347 = vrot.lane.b32.xlu0 %v174, 127
    %v348 = vpop.permute.xlu0 %347
    %349 = vrot.lane.b32.xlu0 %v175, 127
    %v350 = vpop.permute.xlu0 %349
    %351 = vrot.lane.b32.xlu0 %v176, 127
    %v352 = vpop.permute.xlu0 %351
    %353 = vrot.lane.b32.xlu0 %v177, 127
    %v354 = vpop.permute.xlu0 %353
    %355 = vrot.lane.b32.xlu0 %v178, 127
    %v356 = vpop.permute.xlu0 %355
    %357 = vrot.lane.b32.xlu0 %v179, 127
    %v358 = vpop.permute.xlu0 %357
    %359 = vrot.lane.b32.xlu0 %v180, 127
    %v360 = vpop.permute.xlu0 %359
    %v361 = vmax.f32 %v253, %v290
    %v362 = vmax.f32 %v254, %v292
    %v363 = vmax.f32 %v255, %v294
    %v364 = vmax.f32 %v256, %v296
    %v365 = vmax.f32 %v257, %v298
    %v366 = vmax.f32 %v258, %v300
    %v367 = vmax.f32 %v259, %v302
    %v368 = vmax.f32 %v260, %v304
    %v369 = vmax.f32 %v261, %v306
    %v370 = vmax.f32 %v262, %v308
    %v371 = vmax.f32 %v263, %v310
    %v372 = vmax.f32 %v264, %v312
    %v373 = vmax.f32 %v265, %v314
    %v374 = vmax.f32 %v266, %v316
    %v375 = vmax.f32 %v267, %v318
    %v376 = vmax.f32 %v268, %v320
    %v377 = vmax.f32 %v269, %v322
    %v378 = vmax.f32 %v270, %v324
    %v379 = vmax.f32 %v271, %v326
    %v380 = vmax.f32 %v272, %v328
    %v381 = vmax.f32 %v273, %v330
    %v382 = vmax.f32 %v274, %v332
    %v383 = vmax.f32 %v275, %v334
    %v384 = vmax.f32 %v276, %v336
    %v385 = vmax.f32 %v277, %v338
    %v386 = vmax.f32 %v278, %v340
    %v387 = vmax.f32 %v279, %v342
    %v388 = vmax.f32 %v280, %v344
    %v389 = vmax.f32 %v281, %v346
    %v390 = vmax.f32 %v282, %v348
    %v391 = vmax.f32 %v283, %v350
    %v392 = vmax.f32 %v284, %v352
    %v393 = vmax.f32 %v285, %v354
    %v394 = vmax.f32 %v286, %v356
    %v395 = vmax.f32 %v287, %v358
    %v396 = vmax.f32 %v288, %v360
    %397 = vrot.lane.b32.xlu0 %v145, 2
    %v398 = vpop.permute.xlu0 %397
    %399 = vrot.lane.b32.xlu0 %v146, 2
    %v400 = vpop.permute.xlu0 %399
    %401 = vrot.lane.b32.xlu0 %v147, 2
    %v402 = vpop.permute.xlu0 %401
    %403 = vrot.lane.b32.xlu0 %v148, 2
    %v404 = vpop.permute.xlu0 %403
    %405 = vrot.lane.b32.xlu0 %v149, 2
    %v406 = vpop.permute.xlu0 %405
    %407 = vrot.lane.b32.xlu0 %v150, 2
    %v408 = vpop.permute.xlu0 %407
    %409 = vrot.lane.b32.xlu0 %v151, 2
    %v410 = vpop.permute.xlu0 %409
    %411 = vrot.lane.b32.xlu0 %v152, 2
    %v412 = vpop.permute.xlu0 %411
    %413 = vrot.lane.b32.xlu0 %v153, 2
    %v414 = vpop.permute.xlu0 %413
    %415 = vrot.lane.b32.xlu0 %v154, 2
    %v416 = vpop.permute.xlu0 %415
    %417 = vrot.lane.b32.xlu0 %v155, 2
    %v418 = vpop.permute.xlu0 %417
    %419 = vrot.lane.b32.xlu0 %v156, 2
    %v420 = vpop.permute.xlu0 %419
    %421 = vrot.lane.b32.xlu0 %v157, 2
    %v422 = vpop.permute.xlu0 %421
    %423 = vrot.lane.b32.xlu0 %v158, 2
    %v424 = vpop.permute.xlu0 %423
    %425 = vrot.lane.b32.xlu0 %v159, 2
    %v426 = vpop.permute.xlu0 %425
    %427 = vrot.lane.b32.xlu0 %v160, 2
    %v428 = vpop.permute.xlu0 %427
    %429 = vrot.lane.b32.xlu0 %v161, 2
    %v430 = vpop.permute.xlu0 %429
    %431 = vrot.lane.b32.xlu0 %v162, 2
    %v432 = vpop.permute.xlu0 %431
    %433 = vrot.lane.b32.xlu0 %v163, 2
    %v434 = vpop.permute.xlu0 %433
    %435 = vrot.lane.b32.xlu0 %v164, 2
    %v436 = vpop.permute.xlu0 %435
    %437 = vrot.lane.b32.xlu0 %v165, 2
    %v438 = vpop.permute.xlu0 %437
    %439 = vrot.lane.b32.xlu0 %v166, 2
    %v440 = vpop.permute.xlu0 %439
    %441 = vrot.lane.b32.xlu0 %v167, 2
    %v442 = vpop.permute.xlu0 %441
    %443 = vrot.lane.b32.xlu0 %v168, 2
    %v444 = vpop.permute.xlu0 %443
    %445 = vrot.lane.b32.xlu0 %v169, 2
    %v446 = vpop.permute.xlu0 %445
    %447 = vrot.lane.b32.xlu0 %v170, 2
    %v448 = vpop.permute.xlu0 %447
    %449 = vrot.lane.b32.xlu0 %v171, 2
    %v450 = vpop.permute.xlu0 %449
    %451 = vrot.lane.b32.xlu0 %v172, 2
    %v452 = vpop.permute.xlu0 %451
    %453 = vrot.lane.b32.xlu0 %v173, 2
    %v454 = vpop.permute.xlu0 %453
    %455 = vrot.lane.b32.xlu0 %v174, 2
    %v456 = vpop.permute.xlu0 %455
    %457 = vrot.lane.b32.xlu0 %v175, 2
    %v458 = vpop.permute.xlu0 %457
    %459 = vrot.lane.b32.xlu0 %v176, 2
    %v460 = vpop.permute.xlu0 %459
    %461 = vrot.lane.b32.xlu0 %v177, 2
    %v462 = vpop.permute.xlu0 %461
    %463 = vrot.lane.b32.xlu0 %v178, 2
    %v464 = vpop.permute.xlu0 %463
    %465 = vrot.lane.b32.xlu0 %v179, 2
    %v466 = vpop.permute.xlu0 %465
    %467 = vrot.lane.b32.xlu0 %v180, 2
    %v468 = vpop.permute.xlu0 %467
    %v469 = vmax.f32 %v361, %v398
    %v470 = vmax.f32 %v362, %v400
    %v471 = vmax.f32 %v363, %v402
    %v472 = vmax.f32 %v364, %v404
    %v473 = vmax.f32 %v365, %v406
    %v474 = vmax.f32 %v366, %v408
    %v475 = vmax.f32 %v367, %v410
    %v476 = vmax.f32 %v368, %v412
    %v477 = vmax.f32 %v369, %v414
    %v478 = vmax.f32 %v370, %v416
    %v479 = vmax.f32 %v371, %v418
    %v480 = vmax.f32 %v372, %v420
    %v481 = vmax.f32 %v373, %v422
    %v482 = vmax.f32 %v374, %v424
    %v483 = vmax.f32 %v375, %v426
    %v484 = vmax.f32 %v376, %v428
    %v485 = vmax.f32 %v377, %v430
    %v486 = vmax.f32 %v378, %v432
    %v487 = vmax.f32 %v379, %v434
    %v488 = vmax.f32 %v380, %v436
    %v489 = vmax.f32 %v381, %v438
    %v490 = vmax.f32 %v382, %v440
    %v491 = vmax.f32 %v383, %v442
    %v492 = vmax.f32 %v384, %v444
    %v493 = vmax.f32 %v385, %v446
    %v494 = vmax.f32 %v386, %v448
    %v495 = vmax.f32 %v387, %v450
    %v496 = vmax.f32 %v388, %v452
    %v497 = vmax.f32 %v389, %v454
    %v498 = vmax.f32 %v390, %v456
    %v499 = vmax.f32 %v391, %v458
    %v500 = vmax.f32 %v392, %v460
    %v501 = vmax.f32 %v393, %v462
    %v502 = vmax.f32 %v394, %v464
    %v503 = vmax.f32 %v395, %v466
    %v504 = vmax.f32 %v396, %v468
    %505 = vrot.lane.b32.xlu0 %v145, 126
    %v506 = vpop.permute.xlu0 %505
    %507 = vrot.lane.b32.xlu0 %v146, 126
    %v508 = vpop.permute.xlu0 %507
    %509 = vrot.lane.b32.xlu0 %v147, 126
    %v510 = vpop.permute.xlu0 %509
    %511 = vrot.lane.b32.xlu0 %v148, 126
    %v512 = vpop.permute.xlu0 %511
    %513 = vrot.lane.b32.xlu0 %v149, 126
    %v514 = vpop.permute.xlu0 %513
    %515 = vrot.lane.b32.xlu0 %v150, 126
    %v516 = vpop.permute.xlu0 %515
    %517 = vrot.lane.b32.xlu0 %v151, 126
    %v518 = vpop.permute.xlu0 %517
    %519 = vrot.lane.b32.xlu0 %v152, 126
    %v520 = vpop.permute.xlu0 %519
    %521 = vrot.lane.b32.xlu0 %v153, 126
    %v522 = vpop.permute.xlu0 %521
    %523 = vrot.lane.b32.xlu0 %v154, 126
    %v524 = vpop.permute.xlu0 %523
    %525 = vrot.lane.b32.xlu0 %v155, 126
    %v526 = vpop.permute.xlu0 %525
    %527 = vrot.lane.b32.xlu0 %v156, 126
    %v528 = vpop.permute.xlu0 %527
    %529 = vrot.lane.b32.xlu0 %v157, 126
    %v530 = vpop.permute.xlu0 %529
    %531 = vrot.lane.b32.xlu0 %v158, 126
    %v532 = vpop.permute.xlu0 %531
    %533 = vrot.lane.b32.xlu0 %v159, 126
    %v534 = vpop.permute.xlu0 %533
    %535 = vrot.lane.b32.xlu0 %v160, 126
    %v536 = vpop.permute.xlu0 %535
    %537 = vrot.lane.b32.xlu0 %v161, 126
    %v538 = vpop.permute.xlu0 %537
    %539 = vrot.lane.b32.xlu0 %v162, 126
    %v540 = vpop.permute.xlu0 %539
    %541 = vrot.lane.b32.xlu0 %v163, 126
    %v542 = vpop.permute.xlu0 %541
    %543 = vrot.lane.b32.xlu0 %v164, 126
    %v544 = vpop.permute.xlu0 %543
    %545 = vrot.lane.b32.xlu0 %v165, 126
    %v546 = vpop.permute.xlu0 %545
    %547 = vrot.lane.b32.xlu0 %v166, 126
    %v548 = vpop.permute.xlu0 %547
    %549 = vrot.lane.b32.xlu0 %v167, 126
    %v550 = vpop.permute.xlu0 %549
    %551 = vrot.lane.b32.xlu0 %v168, 126
    %v552 = vpop.permute.xlu0 %551
    %553 = vrot.lane.b32.xlu0 %v169, 126
    %v554 = vpop.permute.xlu0 %553
    %555 = vrot.lane.b32.xlu0 %v170, 126
    %v556 = vpop.permute.xlu0 %555
    %557 = vrot.lane.b32.xlu0 %v171, 126
    %v558 = vpop.permute.xlu0 %557
    %559 = vrot.lane.b32.xlu0 %v172, 126
    %v560 = vpop.permute.xlu0 %559
    %561 = vrot.lane.b32.xlu0 %v173, 126
    %v562 = vpop.permute.xlu0 %561
    %563 = vrot.lane.b32.xlu0 %v174, 126
    %v564 = vpop.permute.xlu0 %563
    %565 = vrot.lane.b32.xlu0 %v175, 126
    %v566 = vpop.permute.xlu0 %565
    %567 = vrot.lane.b32.xlu0 %v176, 126
    %v568 = vpop.permute.xlu0 %567
    %569 = vrot.lane.b32.xlu0 %v177, 126
    %v570 = vpop.permute.xlu0 %569
    %571 = vrot.lane.b32.xlu0 %v178, 126
    %v572 = vpop.permute.xlu0 %571
    %573 = vrot.lane.b32.xlu0 %v179, 126
    %v574 = vpop.permute.xlu0 %573
    %575 = vrot.lane.b32.xlu0 %v180, 126
    %v576 = vpop.permute.xlu0 %575
    %v577 = vmax.f32 %v469, %v506
    %v578 = vmax.f32 %v470, %v508
    %v579 = vmax.f32 %v471, %v510
    %v580 = vmax.f32 %v472, %v512
    %v581 = vmax.f32 %v473, %v514
    %v582 = vmax.f32 %v474, %v516
    %v583 = vmax.f32 %v475, %v518
    %v584 = vmax.f32 %v476, %v520
    %v585 = vmax.f32 %v477, %v522
    %v586 = vmax.f32 %v478, %v524
    %v587 = vmax.f32 %v479, %v526
    %v588 = vmax.f32 %v480, %v528
    %v589 = vmax.f32 %v481, %v530
    %v590 = vmax.f32 %v482, %v532
    %v591 = vmax.f32 %v483, %v534
    %v592 = vmax.f32 %v484, %v536
    %v593 = vmax.f32 %v485, %v538
    %v594 = vmax.f32 %v486, %v540
    %v595 = vmax.f32 %v487, %v542
    %v596 = vmax.f32 %v488, %v544
    %v597 = vmax.f32 %v489, %v546
    %v598 = vmax.f32 %v490, %v548
    %v599 = vmax.f32 %v491, %v550
    %v600 = vmax.f32 %v492, %v552
    %v601 = vmax.f32 %v493, %v554
    %v602 = vmax.f32 %v494, %v556
    %v603 = vmax.f32 %v495, %v558
    %v604 = vmax.f32 %v496, %v560
    %v605 = vmax.f32 %v497, %v562
    %v606 = vmax.f32 %v498, %v564
    %v607 = vmax.f32 %v499, %v566
    %v608 = vmax.f32 %v500, %v568
    %v609 = vmax.f32 %v501, %v570
    %v610 = vmax.f32 %v502, %v572
    %v611 = vmax.f32 %v503, %v574
    %v612 = vmax.f32 %v504, %v576
    %v613 = vrot.slane %v577, 7
    %v614 = vrot.slane %v586, 7
    %v615 = vrot.slane %v595, 7
    %v616 = vrot.slane %v604, 7
    %v617 = vrot.slane %v578, 7
    %v618 = vrot.slane %v587, 7
    %v619 = vrot.slane %v596, 7
    %v620 = vrot.slane %v605, 7
    %v621 = vrot.slane %v579, 7
    %v622 = vrot.slane %v588, 7
    %v623 = vrot.slane %v597, 7
    %v624 = vrot.slane %v606, 7
    %v625 = vrot.slane %v580, 7
    %v626 = vrot.slane %v589, 7
    %v627 = vrot.slane %v598, 7
    %v628 = vrot.slane %v607, 7
    %v629 = vrot.slane %v581, 7
    %v630 = vrot.slane %v590, 7
    %v631 = vrot.slane %v599, 7
    %v632 = vrot.slane %v608, 7
    %v633 = vrot.slane %v582, 7
    %v634 = vrot.slane %v591, 7
    %v635 = vrot.slane %v600, 7
    %v636 = vrot.slane %v609, 7
    %v637 = vrot.slane %v583, 7
    %v638 = vrot.slane %v592, 7
    %v639 = vrot.slane %v601, 7
    %v640 = vrot.slane %v610, 7
    %v641 = vrot.slane %v584, 7
    %v642 = vrot.slane %v593, 7
    %v643 = vrot.slane %v602, 7
    %v644 = vrot.slane %v611, 7
    %v645 = vrot.slane %v585, 7
    %v646 = vrot.slane %v594, 7
    %v647 = vrot.slane %v603, 7
    %v648 = vrot.slane %v612, 7
    %v649 = vlaneseq
    %v650 = vshrl.u32 %v649, 7
    %vm651 = vcmp.lt.s32.totalorder %v650, 1
    %v652 = vsel %vm651, %v641, %v645
    %v653 = vsel %vm651, %v642, %v646
    %v654 = vsel %vm651, %v643, %v647
    %v655 = vsel %vm651, %v644, %v648
    %v656 = vsel %vm651, %v637, %v641
    %v657 = vsel %vm651, %v638, %v642
    %v658 = vsel %vm651, %v639, %v643
    %v659 = vsel %vm651, %v640, %v644
    %v660 = vsel %vm651, %v633, %v637
    %v661 = vsel %vm651, %v634, %v638
    %v662 = vsel %vm651, %v635, %v639
    %v663 = vsel %vm651, %v636, %v640
    %v664 = vsel %vm651, %v629, %v633
    %v665 = vsel %vm651, %v630, %v634
    %v666 = vsel %vm651, %v631, %v635
    %v667 = vsel %vm651, %v632, %v636
    %v668 = vsel %vm651, %v625, %v629
    %v669 = vsel %vm651, %v626, %v630
    %v670 = vsel %vm651, %v627, %v631
    %v671 = vsel %vm651, %v628, %v632
    %v672 = vsel %vm651, %v621, %v625
    %v673 = vsel %vm651, %v622, %v626
    %v674 = vsel %vm651, %v623, %v627
    %v675 = vsel %vm651, %v624, %v628
    %v676 = vsel %vm651, %v617, %v621
    %v677 = vsel %vm651, %v618, %v622
    %v678 = vsel %vm651, %v619, %v623
    %v679 = vsel %vm651, %v620, %v624
    %v680 = vsel %vm651, %v613, %v617
    %v681 = vsel %vm651, %v614, %v618
    %v682 = vsel %vm651, %v615, %v619
    %v683 = vsel %vm651, %v616, %v620
    %v684 = vsel %vm651, %v645, %v613
    %v685 = vsel %vm651, %v646, %v614
    %v686 = vsel %vm651, %v647, %v615
    %v687 = vsel %vm651, %v648, %v616
    %v688 = vmax.f32 %v577, %v684
    %v689 = vmax.f32 %v578, %v680
    %v690 = vmax.f32 %v579, %v676
    %v691 = vmax.f32 %v580, %v672
    %v692 = vmax.f32 %v581, %v668
    %v693 = vmax.f32 %v582, %v664
    %v694 = vmax.f32 %v583, %v660
    %v695 = vmax.f32 %v584, %v656
    %v696 = vmax.f32 %v585, %v652
    %v697 = vmax.f32 %v586, %v685
    %v698 = vmax.f32 %v587, %v681
    %v699 = vmax.f32 %v588, %v677
    %v700 = vmax.f32 %v589, %v673
    %v701 = vmax.f32 %v590, %v669
    %v702 = vmax.f32 %v591, %v665
    %v703 = vmax.f32 %v592, %v661
    %v704 = vmax.f32 %v593, %v657
    %v705 = vmax.f32 %v594, %v653
    %v706 = vmax.f32 %v595, %v686
    %v707 = vmax.f32 %v596, %v682
    %v708 = vmax.f32 %v597, %v678
    %v709 = vmax.f32 %v598, %v674
    %v710 = vmax.f32 %v599, %v670
    %v711 = vmax.f32 %v600, %v666
    %v712 = vmax.f32 %v601, %v662
    %v713 = vmax.f32 %v602, %v658
    %v714 = vmax.f32 %v603, %v654
    %v715 = vmax.f32 %v604, %v687
    %v716 = vmax.f32 %v605, %v683
    %v717 = vmax.f32 %v606, %v679
    %v718 = vmax.f32 %v607, %v675
    %v719 = vmax.f32 %v608, %v671
    %v720 = vmax.f32 %v609, %v667
    %v721 = vmax.f32 %v610, %v663
    %v722 = vmax.f32 %v611, %v659
    %v723 = vmax.f32 %v612, %v655
    %v724 = vrot.slane %v577, 1
    %v725 = vrot.slane %v586, 1
    %v726 = vrot.slane %v595, 1
    %v727 = vrot.slane %v604, 1
    %v728 = vrot.slane %v578, 1
    %v729 = vrot.slane %v587, 1
    %v730 = vrot.slane %v596, 1
    %v731 = vrot.slane %v605, 1
    %v732 = vrot.slane %v579, 1
    %v733 = vrot.slane %v588, 1
    %v734 = vrot.slane %v597, 1
    %v735 = vrot.slane %v606, 1
    %v736 = vrot.slane %v580, 1
    %v737 = vrot.slane %v589, 1
    %v738 = vrot.slane %v598, 1
    %v739 = vrot.slane %v607, 1
    %v740 = vrot.slane %v581, 1
    %v741 = vrot.slane %v590, 1
    %v742 = vrot.slane %v599, 1
    %v743 = vrot.slane %v608, 1
    %v744 = vrot.slane %v582, 1
    %v745 = vrot.slane %v591, 1
    %v746 = vrot.slane %v600, 1
    %v747 = vrot.slane %v609, 1
    %v748 = vrot.slane %v583, 1
    %v749 = vrot.slane %v592, 1
    %v750 = vrot.slane %v601, 1
    %v751 = vrot.slane %v610, 1
    %v752 = vrot.slane %v584, 1
    %v753 = vrot.slane %v593, 1
    %v754 = vrot.slane %v602, 1
    %v755 = vrot.slane %v611, 1
    %v756 = vrot.slane %v585, 1
    %v757 = vrot.slane %v594, 1
    %v758 = vrot.slane %v603, 1
    %v759 = vrot.slane %v612, 1
    %vm760 = vcmp.lt.s32.totalorder %v650, 7
    %v761 = vsel %vm760, %v752, %v756
    %v762 = vsel %vm760, %v753, %v757
    %v763 = vsel %vm760, %v754, %v758
    %v764 = vsel %vm760, %v755, %v759
    %v765 = vsel %vm760, %v748, %v752
    %v766 = vsel %vm760, %v749, %v753
    %v767 = vsel %vm760, %v750, %v754
    %v768 = vsel %vm760, %v751, %v755
    %v769 = vsel %vm760, %v744, %v748
    %v770 = vsel %vm760, %v745, %v749
    %v771 = vsel %vm760, %v746, %v750
    %v772 = vsel %vm760, %v747, %v751
    %v773 = vsel %vm760, %v740, %v744
    %v774 = vsel %vm760, %v741, %v745
    %v775 = vsel %vm760, %v742, %v746
    %v776 = vsel %vm760, %v743, %v747
    %v777 = vsel %vm760, %v736, %v740
    %v778 = vsel %vm760, %v737, %v741
    %v779 = vsel %vm760, %v738, %v742
    %v780 = vsel %vm760, %v739, %v743
    %v781 = vsel %vm760, %v732, %v736
    %v782 = vsel %vm760, %v733, %v737
    %v783 = vsel %vm760, %v734, %v738
    %v784 = vsel %vm760, %v735, %v739
    %v785 = vsel %vm760, %v728, %v732
    %v786 = vsel %vm760, %v729, %v733
    %v787 = vsel %vm760, %v730, %v734
    %v788 = vsel %vm760, %v731, %v735
    %v789 = vsel %vm760, %v724, %v728
    %v790 = vsel %vm760, %v725, %v729
    %v791 = vsel %vm760, %v726, %v730
    %v792 = vsel %vm760, %v727, %v731
    %v793 = vsel %vm760, %v756, %v724
    %v794 = vsel %vm760, %v757, %v725
    %v795 = vsel %vm760, %v758, %v726
    %v796 = vsel %vm760, %v759, %v727
    %v797 = vmax.f32 %v688, %v789
    %v798 = vmax.f32 %v689, %v785
    %v799 = vmax.f32 %v690, %v781
    %v800 = vmax.f32 %v691, %v777
    %v801 = vmax.f32 %v692, %v773
    %v802 = vmax.f32 %v693, %v769
    %v803 = vmax.f32 %v694, %v765
    %v804 = vmax.f32 %v695, %v761
    %v805 = vmax.f32 %v696, %v793
    %v806 = vmax.f32 %v697, %v790
    %v807 = vmax.f32 %v698, %v786
    %v808 = vmax.f32 %v699, %v782
    %v809 = vmax.f32 %v700, %v778
    %v810 = vmax.f32 %v701, %v774
    %v811 = vmax.f32 %v702, %v770
    %v812 = vmax.f32 %v703, %v766
    %v813 = vmax.f32 %v704, %v762
    %v814 = vmax.f32 %v705, %v794
    %v815 = vmax.f32 %v706, %v791
    %v816 = vmax.f32 %v707, %v787
    %v817 = vmax.f32 %v708, %v783
    %v818 = vmax.f32 %v709, %v779
    %v819 = vmax.f32 %v710, %v775
    %v820 = vmax.f32 %v711, %v771
    %v821 = vmax.f32 %v712, %v767
    %v822 = vmax.f32 %v713, %v763
    %v823 = vmax.f32 %v714, %v795
    %v824 = vmax.f32 %v715, %v792
    %v825 = vmax.f32 %v716, %v788
    %v826 = vmax.f32 %v717, %v784
    %v827 = vmax.f32 %v718, %v780
    %v828 = vmax.f32 %v719, %v776
    %v829 = vmax.f32 %v720, %v772
    %v830 = vmax.f32 %v721, %v768
    %v831 = vmax.f32 %v722, %v764
    %v832 = vmax.f32 %v723, %v796
    %v833 = vrot.slane %v577, 6
    %v834 = vrot.slane %v586, 6
    %v835 = vrot.slane %v595, 6
    %v836 = vrot.slane %v604, 6
    %v837 = vrot.slane %v578, 6
    %v838 = vrot.slane %v587, 6
    %v839 = vrot.slane %v596, 6
    %v840 = vrot.slane %v605, 6
    %v841 = vrot.slane %v579, 6
    %v842 = vrot.slane %v588, 6
    %v843 = vrot.slane %v597, 6
    %v844 = vrot.slane %v606, 6
    %v845 = vrot.slane %v580, 6
    %v846 = vrot.slane %v589, 6
    %v847 = vrot.slane %v598, 6
    %v848 = vrot.slane %v607, 6
    %v849 = vrot.slane %v581, 6
    %v850 = vrot.slane %v590, 6
    %v851 = vrot.slane %v599, 6
    %v852 = vrot.slane %v608, 6
    %v853 = vrot.slane %v582, 6
    %v854 = vrot.slane %v591, 6
    %v855 = vrot.slane %v600, 6
    %v856 = vrot.slane %v609, 6
    %v857 = vrot.slane %v583, 6
    %v858 = vrot.slane %v592, 6
    %v859 = vrot.slane %v601, 6
    %v860 = vrot.slane %v610, 6
    %v861 = vrot.slane %v584, 6
    %v862 = vrot.slane %v593, 6
    %v863 = vrot.slane %v602, 6
    %v864 = vrot.slane %v611, 6
    %v865 = vrot.slane %v585, 6
    %v866 = vrot.slane %v594, 6
    %v867 = vrot.slane %v603, 6
    %v868 = vrot.slane %v612, 6
    %vm869 = vcmp.lt.s32.totalorder %v650, 2
    %v870 = vsel %vm869, %v861, %v865
    %v871 = vsel %vm869, %v862, %v866
    %v872 = vsel %vm869, %v863, %v867
    %v873 = vsel %vm869, %v864, %v868
    %v874 = vsel %vm869, %v857, %v861
    %v875 = vsel %vm869, %v858, %v862
    %v876 = vsel %vm869, %v859, %v863
    %v877 = vsel %vm869, %v860, %v864
    %v878 = vsel %vm869, %v853, %v857
    %v879 = vsel %vm869, %v854, %v858
    %v880 = vsel %vm869, %v855, %v859
    %v881 = vsel %vm869, %v856, %v860
    %v882 = vsel %vm869, %v849, %v853
    %v883 = vsel %vm869, %v850, %v854
    %v884 = vsel %vm869, %v851, %v855
    %v885 = vsel %vm869, %v852, %v856
    %v886 = vsel %vm869, %v845, %v849
    %v887 = vsel %vm869, %v846, %v850
    %v888 = vsel %vm869, %v847, %v851
    %v889 = vsel %vm869, %v848, %v852
    %v890 = vsel %vm869, %v841, %v845
    %v891 = vsel %vm869, %v842, %v846
    %v892 = vsel %vm869, %v843, %v847
    %v893 = vsel %vm869, %v844, %v848
    %v894 = vsel %vm869, %v837, %v841
    %v895 = vsel %vm869, %v838, %v842
    %v896 = vsel %vm869, %v839, %v843
    %v897 = vsel %vm869, %v840, %v844
    %v898 = vsel %vm869, %v833, %v837
    %v899 = vsel %vm869, %v834, %v838
    %v900 = vsel %vm869, %v835, %v839
    %v901 = vsel %vm869, %v836, %v840
    %v902 = vsel %vm869, %v865, %v833
    %v903 = vsel %vm869, %v866, %v834
    %v904 = vsel %vm869, %v867, %v835
    %v905 = vsel %vm869, %v868, %v836
    %v906 = vmax.f32 %v797, %v902
    %v907 = vmax.f32 %v798, %v898
    %v908 = vmax.f32 %v799, %v894
    %v909 = vmax.f32 %v800, %v890
    %v910 = vmax.f32 %v801, %v886
    %v911 = vmax.f32 %v802, %v882
    %v912 = vmax.f32 %v803, %v878
    %v913 = vmax.f32 %v804, %v874
    %v914 = vmax.f32 %v805, %v870
    %v915 = vmax.f32 %v806, %v903
    %v916 = vmax.f32 %v807, %v899
    %v917 = vmax.f32 %v808, %v895
    %v918 = vmax.f32 %v809, %v891
    %v919 = vmax.f32 %v810, %v887
    %v920 = vmax.f32 %v811, %v883
    %v921 = vmax.f32 %v812, %v879
    %v922 = vmax.f32 %v813, %v875
    %v923 = vmax.f32 %v814, %v871
    %v924 = vmax.f32 %v815, %v904
    %v925 = vmax.f32 %v816, %v900
    %v926 = vmax.f32 %v817, %v896
    %v927 = vmax.f32 %v818, %v892
    %v928 = vmax.f32 %v819, %v888
    %v929 = vmax.f32 %v820, %v884
    %v930 = vmax.f32 %v821, %v880
    %v931 = vmax.f32 %v822, %v876
    %v932 = vmax.f32 %v823, %v872
    %v933 = vmax.f32 %v824, %v905
    %v934 = vmax.f32 %v825, %v901
    %v935 = vmax.f32 %v826, %v897
    %v936 = vmax.f32 %v827, %v893
    %v937 = vmax.f32 %v828, %v889
    %v938 = vmax.f32 %v829, %v885
    %v939 = vmax.f32 %v830, %v881
    %v940 = vmax.f32 %v831, %v877
    %v941 = vmax.f32 %v832, %v873
    %v942 = vrot.slane %v577, 2
    %v943 = vrot.slane %v586, 2
    %v944 = vrot.slane %v595, 2
    %v945 = vrot.slane %v604, 2
    %v946 = vrot.slane %v578, 2
    %v947 = vrot.slane %v587, 2
    %v948 = vrot.slane %v596, 2
    %v949 = vrot.slane %v605, 2
    %v950 = vrot.slane %v579, 2
    %v951 = vrot.slane %v588, 2
    %v952 = vrot.slane %v597, 2
    %v953 = vrot.slane %v606, 2
    %v954 = vrot.slane %v580, 2
    %v955 = vrot.slane %v589, 2
    %v956 = vrot.slane %v598, 2
    %v957 = vrot.slane %v607, 2
    %v958 = vrot.slane %v581, 2
    %v959 = vrot.slane %v590, 2
    %v960 = vrot.slane %v599, 2
    %v961 = vrot.slane %v608, 2
    %v962 = vrot.slane %v582, 2
    %v963 = vrot.slane %v591, 2
    %v964 = vrot.slane %v600, 2
    %v965 = vrot.slane %v609, 2
    %v966 = vrot.slane %v583, 2
    %v967 = vrot.slane %v592, 2
    %v968 = vrot.slane %v601, 2
    %v969 = vrot.slane %v610, 2
    %v970 = vrot.slane %v584, 2
    %v971 = vrot.slane %v593, 2
    %v972 = vrot.slane %v602, 2
    %v973 = vrot.slane %v611, 2
    %v974 = vrot.slane %v585, 2
    %v975 = vrot.slane %v594, 2
    %v976 = vrot.slane %v603, 2
    %v977 = vrot.slane %v612, 2
    %vm978 = vcmp.lt.s32.totalorder %v650, 6
    %v979 = vsel %vm978, %v970, %v974
    %v980 = vsel %vm978, %v971, %v975
    %v981 = vsel %vm978, %v972, %v976
    %v982 = vsel %vm978, %v973, %v977
    %v983 = vsel %vm978, %v966, %v970
    %v984 = vsel %vm978, %v967, %v971
    %v985 = vsel %vm978, %v968, %v972
    %v986 = vsel %vm978, %v969, %v973
    %v987 = vsel %vm978, %v962, %v966
    %v988 = vsel %vm978, %v963, %v967
    %v989 = vsel %vm978, %v964, %v968
    %v990 = vsel %vm978, %v965, %v969
    %v991 = vsel %vm978, %v958, %v962
    %v992 = vsel %vm978, %v959, %v963
    %v993 = vsel %vm978, %v960, %v964
    %v994 = vsel %vm978, %v961, %v965
    %v995 = vsel %vm978, %v954, %v958
    %v996 = vsel %vm978, %v955, %v959
    %v997 = vsel %vm978, %v956, %v960
    %v998 = vsel %vm978, %v957, %v961
    %v999 = vsel %vm978, %v950, %v954
    %v1000 = vsel %vm978, %v951, %v955
    %v1001 = vsel %vm978, %v952, %v956
    %v1002 = vsel %vm978, %v953, %v957
    %v1003 = vsel %vm978, %v946, %v950
    %v1004 = vsel %vm978, %v947, %v951
    %v1005 = vsel %vm978, %v948, %v952
    %v1006 = vsel %vm978, %v949, %v953
    %v1007 = vsel %vm978, %v942, %v946
    %v1008 = vsel %vm978, %v943, %v947
    %v1009 = vsel %vm978, %v944, %v948
    %v1010 = vsel %vm978, %v945, %v949
    %v1011 = vsel %vm978, %v974, %v942
    %v1012 = vsel %vm978, %v975, %v943
    %v1013 = vsel %vm978, %v976, %v944
    %v1014 = vsel %vm978, %v977, %v945
    %v1015 = vmax.f32 %v906, %v1007
    %v1016 = vmax.f32 %v907, %v1003
    %v1017 = vmax.f32 %v908, %v999
    %v1018 = vmax.f32 %v909, %v995
    %v1019 = vmax.f32 %v910, %v991
    %v1020 = vmax.f32 %v911, %v987
    %v1021 = vmax.f32 %v912, %v983
    %v1022 = vmax.f32 %v913, %v979
    %v1023 = vmax.f32 %v914, %v1011
    %v1024 = vmax.f32 %v915, %v1008
    %v1025 = vmax.f32 %v916, %v1004
    %v1026 = vmax.f32 %v917, %v1000
    %v1027 = vmax.f32 %v918, %v996
    %v1028 = vmax.f32 %v919, %v992
    %v1029 = vmax.f32 %v920, %v988
    %v1030 = vmax.f32 %v921, %v984
    %v1031 = vmax.f32 %v922, %v980
    %v1032 = vmax.f32 %v923, %v1012
    %v1033 = vmax.f32 %v924, %v1009
    %v1034 = vmax.f32 %v925, %v1005
    %v1035 = vmax.f32 %v926, %v1001
    %v1036 = vmax.f32 %v927, %v997
    %v1037 = vmax.f32 %v928, %v993
    %v1038 = vmax.f32 %v929, %v989
    %v1039 = vmax.f32 %v930, %v985
    %v1040 = vmax.f32 %v931, %v981
    %v1041 = vmax.f32 %v932, %v1013
    %v1042 = vmax.f32 %v933, %v1010
    %v1043 = vmax.f32 %v934, %v1006
    %v1044 = vmax.f32 %v935, %v1002
    %v1045 = vmax.f32 %v936, %v998
    %v1046 = vmax.f32 %v937, %v994
    %v1047 = vmax.f32 %v938, %v990
    %v1048 = vmax.f32 %v939, %v986
    %v1049 = vmax.f32 %v940, %v982
    %v1050 = vmax.f32 %v941, %v1014
    %vm1051 = vcmp.eq.f32.partialorder %v1015, %v145
    %vm1052 = vcmp.eq.f32.partialorder %v1016, %v146
    %vm1053 = vcmp.eq.f32.partialorder %v1017, %v147
    %vm1054 = vcmp.eq.f32.partialorder %v1018, %v148
    %vm1055 = vcmp.eq.f32.partialorder %v1019, %v149
    %vm1056 = vcmp.eq.f32.partialorder %v1020, %v150
    %vm1057 = vcmp.eq.f32.partialorder %v1021, %v151
    %vm1058 = vcmp.eq.f32.partialorder %v1022, %v152
    %vm1059 = vcmp.eq.f32.partialorder %v1023, %v153
    %vm1060 = vcmp.eq.f32.partialorder %v1024, %v154
    %vm1061 = vcmp.eq.f32.partialorder %v1025, %v155
    %vm1062 = vcmp.eq.f32.partialorder %v1026, %v156
    %vm1063 = vcmp.eq.f32.partialorder %v1027, %v157
    %vm1064 = vcmp.eq.f32.partialorder %v1028, %v158
    %vm1065 = vcmp.eq.f32.partialorder %v1029, %v159
    %vm1066 = vcmp.eq.f32.partialorder %v1030, %v160
    %vm1067 = vcmp.eq.f32.partialorder %v1031, %v161
    %vm1068 = vcmp.eq.f32.partialorder %v1032, %v162
    %vm1069 = vcmp.eq.f32.partialorder %v1033, %v163
    %vm1070 = vcmp.eq.f32.partialorder %v1034, %v164
    %vm1071 = vcmp.eq.f32.partialorder %v1035, %v165
    %vm1072 = vcmp.eq.f32.partialorder %v1036, %v166
    %vm1073 = vcmp.eq.f32.partialorder %v1037, %v167
    %vm1074 = vcmp.eq.f32.partialorder %v1038, %v168
    %vm1075 = vcmp.eq.f32.partialorder %v1039, %v169
    %vm1076 = vcmp.eq.f32.partialorder %v1040, %v170
    %vm1077 = vcmp.eq.f32.partialorder %v1041, %v171
    %vm1078 = vcmp.eq.f32.partialorder %v1042, %v172
    %vm1079 = vcmp.eq.f32.partialorder %v1043, %v173
    %vm1080 = vcmp.eq.f32.partialorder %v1044, %v174
    %vm1081 = vcmp.eq.f32.partialorder %v1045, %v175
    %vm1082 = vcmp.eq.f32.partialorder %v1046, %v176
    %vm1083 = vcmp.eq.f32.partialorder %v1047, %v177
    %vm1084 = vcmp.eq.f32.partialorder %v1048, %v178
    %vm1085 = vcmp.eq.f32.partialorder %v1049, %v179
    %vm1086 = vcmp.eq.f32.partialorder %v1050, %v180
    %vm1087 = vcmp.gt.f32.partialorder %v145, -inf
    %vm1088 = vcmp.gt.f32.partialorder %v146, -inf
    %vm1089 = vcmp.gt.f32.partialorder %v147, -inf
    %vm1090 = vcmp.gt.f32.partialorder %v148, -inf
    %vm1091 = vcmp.gt.f32.partialorder %v149, -inf
    %vm1092 = vcmp.gt.f32.partialorder %v150, -inf
    %vm1093 = vcmp.gt.f32.partialorder %v151, -inf
    %vm1094 = vcmp.gt.f32.partialorder %v152, -inf
    %vm1095 = vcmp.gt.f32.partialorder %v153, -inf
    %vm1096 = vcmp.gt.f32.partialorder %v154, -inf
    %vm1097 = vcmp.gt.f32.partialorder %v155, -inf
    %vm1098 = vcmp.gt.f32.partialorder %v156, -inf
    %vm1099 = vcmp.gt.f32.partialorder %v157, -inf
    %vm1100 = vcmp.gt.f32.partialorder %v158, -inf
    %vm1101 = vcmp.gt.f32.partialorder %v159, -inf
    %vm1102 = vcmp.gt.f32.partialorder %v160, -inf
    %vm1103 = vcmp.gt.f32.partialorder %v161, -inf
    %vm1104 = vcmp.gt.f32.partialorder %v162, -inf
    %vm1105 = vcmp.gt.f32.partialorder %v163, -inf
    %vm1106 = vcmp.gt.f32.partialorder %v164, -inf
    %vm1107 = vcmp.gt.f32.partialorder %v165, -inf
    %vm1108 = vcmp.gt.f32.partialorder %v166, -inf
    %vm1109 = vcmp.gt.f32.partialorder %v167, -inf
    %vm1110 = vcmp.gt.f32.partialorder %v168, -inf
    %vm1111 = vcmp.gt.f32.partialorder %v169, -inf
    %vm1112 = vcmp.gt.f32.partialorder %v170, -inf
    %vm1113 = vcmp.gt.f32.partialorder %v171, -inf
    %vm1114 = vcmp.gt.f32.partialorder %v172, -inf
    %vm1115 = vcmp.gt.f32.partialorder %v173, -inf
    %vm1116 = vcmp.gt.f32.partialorder %v174, -inf
    %vm1117 = vcmp.gt.f32.partialorder %v175, -inf
    %vm1118 = vcmp.gt.f32.partialorder %v176, -inf
    %vm1119 = vcmp.gt.f32.partialorder %v177, -inf
    %vm1120 = vcmp.gt.f32.partialorder %v178, -inf
    %vm1121 = vcmp.gt.f32.partialorder %v179, -inf
    %vm1122 = vcmp.gt.f32.partialorder %v180, -inf
    %v1123 = vsel %vm1087, 0.0, -inf
    %v1124 = vsel %vm1088, 0.0, -inf
    %v1125 = vsel %vm1089, 0.0, -inf
    %v1126 = vsel %vm1090, 0.0, -inf
    %v1127 = vsel %vm1091, 0.0, -inf
    %v1128 = vsel %vm1092, 0.0, -inf
    %v1129 = vsel %vm1093, 0.0, -inf
    %v1130 = vsel %vm1094, 0.0, -inf
    %v1131 = vsel %vm1095, 0.0, -inf
    %v1132 = vsel %vm1096, 0.0, -inf
    %v1133 = vsel %vm1097, 0.0, -inf
    %v1134 = vsel %vm1098, 0.0, -inf
    %v1135 = vsel %vm1099, 0.0, -inf
    %v1136 = vsel %vm1100, 0.0, -inf
    %v1137 = vsel %vm1101, 0.0, -inf
    %v1138 = vsel %vm1102, 0.0, -inf
    %v1139 = vsel %vm1103, 0.0, -inf
    %v1140 = vsel %vm1104, 0.0, -inf
    %v1141 = vsel %vm1105, 0.0, -inf
    %v1142 = vsel %vm1106, 0.0, -inf
    %v1143 = vsel %vm1107, 0.0, -inf
    %v1144 = vsel %vm1108, 0.0, -inf
    %v1145 = vsel %vm1109, 0.0, -inf
    %v1146 = vsel %vm1110, 0.0, -inf
    %v1147 = vsel %vm1111, 0.0, -inf
    %v1148 = vsel %vm1112, 0.0, -inf
    %v1149 = vsel %vm1113, 0.0, -inf
    %v1150 = vsel %vm1114, 0.0, -inf
    %v1151 = vsel %vm1115, 0.0, -inf
    %v1152 = vsel %vm1116, 0.0, -inf
    %v1153 = vsel %vm1117, 0.0, -inf
    %v1154 = vsel %vm1118, 0.0, -inf
    %v1155 = vsel %vm1119, 0.0, -inf
    %v1156 = vsel %vm1120, 0.0, -inf
    %v1157 = vsel %vm1121, 0.0, -inf
    %v1158 = vsel %vm1122, 0.0, -inf
    %v1159 = vsel %vm1051, %v145, %v1123
    %v1160 = vsel %vm1052, %v146, %v1124
    %v1161 = vsel %vm1053, %v147, %v1125
    %v1162 = vsel %vm1054, %v148, %v1126
    %v1163 = vsel %vm1055, %v149, %v1127
    %v1164 = vsel %vm1056, %v150, %v1128
    %v1165 = vsel %vm1057, %v151, %v1129
    %v1166 = vsel %vm1058, %v152, %v1130
    %v1167 = vsel %vm1059, %v153, %v1131
    %v1168 = vsel %vm1060, %v154, %v1132
    %v1169 = vsel %vm1061, %v155, %v1133
    %v1170 = vsel %vm1062, %v156, %v1134
    %v1171 = vsel %vm1063, %v157, %v1135
    %v1172 = vsel %vm1064, %v158, %v1136
    %v1173 = vsel %vm1065, %v159, %v1137
    %v1174 = vsel %vm1066, %v160, %v1138
    %v1175 = vsel %vm1067, %v161, %v1139
    %v1176 = vsel %vm1068, %v162, %v1140
    %v1177 = vsel %vm1069, %v163, %v1141
    %v1178 = vsel %vm1070, %v164, %v1142
    %v1179 = vsel %vm1071, %v165, %v1143
    %v1180 = vsel %vm1072, %v166, %v1144
    %v1181 = vsel %vm1073, %v167, %v1145
    %v1182 = vsel %vm1074, %v168, %v1146
    %v1183 = vsel %vm1075, %v169, %v1147
    %v1184 = vsel %vm1076, %v170, %v1148
    %v1185 = vsel %vm1077, %v171, %v1149
    %v1186 = vsel %vm1078, %v172, %v1150
    %v1187 = vsel %vm1079, %v173, %v1151
    %v1188 = vsel %vm1080, %v174, %v1152
    %v1189 = vsel %vm1081, %v175, %v1153
    %v1190 = vsel %vm1082, %v176, %v1154
    %v1191 = vsel %vm1083, %v177, %v1155
    %v1192 = vsel %vm1084, %v178, %v1156
    %v1193 = vsel %vm1085, %v179, %v1157
    %v1194 = vsel %vm1086, %v180, %v1158
    %1195 = vmax.xlane.f32.xlu0 %v1159
    %v1196 = vpop.xlane.xlu0 %1195
    %1197 = vmax.xlane.f32.xlu0 %v1160
    %v1198 = vpop.xlane.xlu0 %1197
    %1199 = vmax.xlane.f32.xlu0 %v1161
    %v1200 = vpop.xlane.xlu0 %1199
    %1201 = vmax.xlane.f32.xlu0 %v1162
    %v1202 = vpop.xlane.xlu0 %1201
    %1203 = vmax.xlane.f32.xlu0 %v1163
    %v1204 = vpop.xlane.xlu0 %1203
    %1205 = vmax.xlane.f32.xlu0 %v1164
    %v1206 = vpop.xlane.xlu0 %1205
    %1207 = vmax.xlane.f32.xlu0 %v1165
    %v1208 = vpop.xlane.xlu0 %1207
    %1209 = vmax.xlane.f32.xlu0 %v1166
    %v1210 = vpop.xlane.xlu0 %1209
    %1211 = vmax.xlane.f32.xlu0 %v1167
    %v1212 = vpop.xlane.xlu0 %1211
    %1213 = vmax.xlane.f32.xlu0 %v1168
    %v1214 = vpop.xlane.xlu0 %1213
    %1215 = vmax.xlane.f32.xlu0 %v1169
    %v1216 = vpop.xlane.xlu0 %1215
    %1217 = vmax.xlane.f32.xlu0 %v1170
    %v1218 = vpop.xlane.xlu0 %1217
    %1219 = vmax.xlane.f32.xlu0 %v1171
    %v1220 = vpop.xlane.xlu0 %1219
    %1221 = vmax.xlane.f32.xlu0 %v1172
    %v1222 = vpop.xlane.xlu0 %1221
    %1223 = vmax.xlane.f32.xlu0 %v1173
    %v1224 = vpop.xlane.xlu0 %1223
    %1225 = vmax.xlane.f32.xlu0 %v1174
    %v1226 = vpop.xlane.xlu0 %1225
    %1227 = vmax.xlane.f32.xlu0 %v1175
    %v1228 = vpop.xlane.xlu0 %1227
    %1229 = vmax.xlane.f32.xlu0 %v1176
    %v1230 = vpop.xlane.xlu0 %1229
    %1231 = vmax.xlane.f32.xlu0 %v1177
    %v1232 = vpop.xlane.xlu0 %1231
    %1233 = vmax.xlane.f32.xlu0 %v1178
    %v1234 = vpop.xlane.xlu0 %1233
    %1235 = vmax.xlane.f32.xlu0 %v1179
    %v1236 = vpop.xlane.xlu0 %1235
    %1237 = vmax.xlane.f32.xlu0 %v1180
    %v1238 = vpop.xlane.xlu0 %1237
    %1239 = vmax.xlane.f32.xlu0 %v1181
    %v1240 = vpop.xlane.xlu0 %1239
    %1241 = vmax.xlane.f32.xlu0 %v1182
    %v1242 = vpop.xlane.xlu0 %1241
    %1243 = vmax.xlane.f32.xlu0 %v1183
    %v1244 = vpop.xlane.xlu0 %1243
    %1245 = vmax.xlane.f32.xlu0 %v1184
    %v1246 = vpop.xlane.xlu0 %1245
    %1247 = vmax.xlane.f32.xlu0 %v1185
    %v1248 = vpop.xlane.xlu0 %1247
    %1249 = vmax.xlane.f32.xlu0 %v1186
    %v1250 = vpop.xlane.xlu0 %1249
    %1251 = vmax.xlane.f32.xlu0 %v1187
    %v1252 = vpop.xlane.xlu0 %1251
    %1253 = vmax.xlane.f32.xlu0 %v1188
    %v1254 = vpop.xlane.xlu0 %1253
    %1255 = vmax.xlane.f32.xlu0 %v1189
    %v1256 = vpop.xlane.xlu0 %1255
    %1257 = vmax.xlane.f32.xlu0 %v1190
    %v1258 = vpop.xlane.xlu0 %1257
    %1259 = vmax.xlane.f32.xlu0 %v1191
    %v1260 = vpop.xlane.xlu0 %1259
    %1261 = vmax.xlane.f32.xlu0 %v1192
    %v1262 = vpop.xlane.xlu0 %1261
    %1263 = vmax.xlane.f32.xlu0 %v1193
    %v1264 = vpop.xlane.xlu0 %1263
    %1265 = vmax.xlane.f32.xlu0 %v1194
    %v1266 = vpop.xlane.xlu0 %1265
    %v1267 = vlaneseq
    %v1268 = vand.u32 %v1267, 127
    %vm1269 = vcmp.eq.f32.partialorder %v1159, %v1196
    %vm1270 = vcmp.eq.f32.partialorder %v1160, %v1198
    %vm1271 = vcmp.eq.f32.partialorder %v1161, %v1200
    %vm1272 = vcmp.eq.f32.partialorder %v1162, %v1202
    %vm1273 = vcmp.eq.f32.partialorder %v1163, %v1204
    %vm1274 = vcmp.eq.f32.partialorder %v1164, %v1206
    %vm1275 = vcmp.eq.f32.partialorder %v1165, %v1208
    %vm1276 = vcmp.eq.f32.partialorder %v1166, %v1210
    %vm1277 = vcmp.eq.f32.partialorder %v1167, %v1212
    %vm1278 = vcmp.eq.f32.partialorder %v1168, %v1214
    %vm1279 = vcmp.eq.f32.partialorder %v1169, %v1216
    %vm1280 = vcmp.eq.f32.partialorder %v1170, %v1218
    %vm1281 = vcmp.eq.f32.partialorder %v1171, %v1220
    %vm1282 = vcmp.eq.f32.partialorder %v1172, %v1222
    %vm1283 = vcmp.eq.f32.partialorder %v1173, %v1224
    %vm1284 = vcmp.eq.f32.partialorder %v1174, %v1226
    %vm1285 = vcmp.eq.f32.partialorder %v1175, %v1228
    %vm1286 = vcmp.eq.f32.partialorder %v1176, %v1230
    %vm1287 = vcmp.eq.f32.partialorder %v1177, %v1232
    %vm1288 = vcmp.eq.f32.partialorder %v1178, %v1234
    %vm1289 = vcmp.eq.f32.partialorder %v1179, %v1236
    %vm1290 = vcmp.eq.f32.partialorder %v1180, %v1238
    %vm1291 = vcmp.eq.f32.partialorder %v1181, %v1240
    %vm1292 = vcmp.eq.f32.partialorder %v1182, %v1242
    %vm1293 = vcmp.eq.f32.partialorder %v1183, %v1244
    %vm1294 = vcmp.eq.f32.partialorder %v1184, %v1246
    %vm1295 = vcmp.eq.f32.partialorder %v1185, %v1248
    %vm1296 = vcmp.eq.f32.partialorder %v1186, %v1250
    %vm1297 = vcmp.eq.f32.partialorder %v1187, %v1252
    %vm1298 = vcmp.eq.f32.partialorder %v1188, %v1254
    %vm1299 = vcmp.eq.f32.partialorder %v1189, %v1256
    %vm1300 = vcmp.eq.f32.partialorder %v1190, %v1258
    %vm1301 = vcmp.eq.f32.partialorder %v1191, %v1260
    %vm1302 = vcmp.eq.f32.partialorder %v1192, %v1262
    %vm1303 = vcmp.eq.f32.partialorder %v1193, %v1264
    %vm1304 = vcmp.eq.f32.partialorder %v1194, %v1266
    %v1305 = vsel %vm1269, %v1268, 128
    %v1306 = vsel %vm1270, %v1268, 128
    %v1307 = vsel %vm1271, %v1268, 128
    %v1308 = vsel %vm1272, %v1268, 128
    %v1309 = vsel %vm1273, %v1268, 128
    %v1310 = vsel %vm1274, %v1268, 128
    %v1311 = vsel %vm1275, %v1268, 128
    %v1312 = vsel %vm1276, %v1268, 128
    %v1313 = vsel %vm1277, %v1268, 128
    %v1314 = vsel %vm1278, %v1268, 128
    %v1315 = vsel %vm1279, %v1268, 128
    %v1316 = vsel %vm1280, %v1268, 128
    %v1317 = vsel %vm1281, %v1268, 128
    %v1318 = vsel %vm1282, %v1268, 128
    %v1319 = vsel %vm1283, %v1268, 128
    %v1320 = vsel %vm1284, %v1268, 128
    %v1321 = vsel %vm1285, %v1268, 128
    %v1322 = vsel %vm1286, %v1268, 128
    %v1323 = vsel %vm1287, %v1268, 128
    %v1324 = vsel %vm1288, %v1268, 128
    %v1325 = vsel %vm1289, %v1268, 128
    %v1326 = vsel %vm1290, %v1268, 128
    %v1327 = vsel %vm1291, %v1268, 128
    %v1328 = vsel %vm1292, %v1268, 128
    %v1329 = vsel %vm1293, %v1268, 128
    %v1330 = vsel %vm1294, %v1268, 128
    %v1331 = vsel %vm1295, %v1268, 128
    %v1332 = vsel %vm1296, %v1268, 128
    %v1333 = vsel %vm1297, %v1268, 128
    %v1334 = vsel %vm1298, %v1268, 128
    %v1335 = vsel %vm1299, %v1268, 128
    %v1336 = vsel %vm1300, %v1268, 128
    %v1337 = vsel %vm1301, %v1268, 128
    %v1338 = vsel %vm1302, %v1268, 128
    %v1339 = vsel %vm1303, %v1268, 128
    %v1340 = vsel %vm1304, %v1268, 128
    %v1341 = vand.u32 %v1305, 65535
    %v1342 = vshra.s32 %v1305, 16
    %v1343 = vcvt.s32.f32 %v1341
    %v1344 = vcvt.s32.f32 %v1342
    %1345 = vmin.xlane.f32.xlu0 %v1344
    %v1346 = vpop.xlane.xlu0 %1345
    %vm1347 = vcmp.eq.f32.partialorder %v1344, %v1346
    %v1348 = vsel %vm1347, %v1343, inf
    %1349 = vmin.xlane.f32.xlu0 %v1348
    %v1350 = vpop.xlane.xlu0 %1349
    %v1351 = vcvt.f32.s32 %v1350
    %v1352 = vcvt.f32.s32 %v1346
    %v1353 = vshll.u32 %v1352, 16
    %v1354 = vadd.s32 %v1353, %v1351
    %v1355 = vand.u32 %v1306, 65535
    %v1356 = vshra.s32 %v1306, 16
    %v1357 = vcvt.s32.f32 %v1355
    %v1358 = vcvt.s32.f32 %v1356
    %1359 = vmin.xlane.f32.xlu0 %v1358
    %v1360 = vpop.xlane.xlu0 %1359
    %vm1361 = vcmp.eq.f32.partialorder %v1358, %v1360
    %v1362 = vsel %vm1361, %v1357, inf
    %1363 = vmin.xlane.f32.xlu0 %v1362
    %v1364 = vpop.xlane.xlu0 %1363
    %v1365 = vcvt.f32.s32 %v1364
    %v1366 = vcvt.f32.s32 %v1360
    %v1367 = vshll.u32 %v1366, 16
    %v1368 = vadd.s32 %v1367, %v1365
    %v1369 = vand.u32 %v1307, 65535
    %v1370 = vshra.s32 %v1307, 16
    %v1371 = vcvt.s32.f32 %v1369
    %v1372 = vcvt.s32.f32 %v1370
    %1373 = vmin.xlane.f32.xlu0 %v1372
    %v1374 = vpop.xlane.xlu0 %1373
    %vm1375 = vcmp.eq.f32.partialorder %v1372, %v1374
    %v1376 = vsel %vm1375, %v1371, inf
    %1377 = vmin.xlane.f32.xlu0 %v1376
    %v1378 = vpop.xlane.xlu0 %1377
    %v1379 = vcvt.f32.s32 %v1378
    %v1380 = vcvt.f32.s32 %v1374
    %v1381 = vshll.u32 %v1380, 16
    %v1382 = vadd.s32 %v1381, %v1379
    %v1383 = vand.u32 %v1308, 65535
    %v1384 = vshra.s32 %v1308, 16
    %v1385 = vcvt.s32.f32 %v1383
    %v1386 = vcvt.s32.f32 %v1384
    %1387 = vmin.xlane.f32.xlu0 %v1386
    %v1388 = vpop.xlane.xlu0 %1387
    %vm1389 = vcmp.eq.f32.partialorder %v1386, %v1388
    %v1390 = vsel %vm1389, %v1385, inf
    %1391 = vmin.xlane.f32.xlu0 %v1390
    %v1392 = vpop.xlane.xlu0 %1391
    %v1393 = vcvt.f32.s32 %v1392
    %v1394 = vcvt.f32.s32 %v1388
    %v1395 = vshll.u32 %v1394, 16
    %v1396 = vadd.s32 %v1395, %v1393
    %v1397 = vand.u32 %v1309, 65535
    %v1398 = vshra.s32 %v1309, 16
    %v1399 = vcvt.s32.f32 %v1397
    %v1400 = vcvt.s32.f32 %v1398
    %1401 = vmin.xlane.f32.xlu0 %v1400
    %v1402 = vpop.xlane.xlu0 %1401
    %vm1403 = vcmp.eq.f32.partialorder %v1400, %v1402
    %v1404 = vsel %vm1403, %v1399, inf
    %1405 = vmin.xlane.f32.xlu0 %v1404
    %v1406 = vpop.xlane.xlu0 %1405
    %v1407 = vcvt.f32.s32 %v1406
    %v1408 = vcvt.f32.s32 %v1402
    %v1409 = vshll.u32 %v1408, 16
    %v1410 = vadd.s32 %v1409, %v1407
    %v1411 = vand.u32 %v1310, 65535
    %v1412 = vshra.s32 %v1310, 16
    %v1413 = vcvt.s32.f32 %v1411
    %v1414 = vcvt.s32.f32 %v1412
    %1415 = vmin.xlane.f32.xlu0 %v1414
    %v1416 = vpop.xlane.xlu0 %1415
    %vm1417 = vcmp.eq.f32.partialorder %v1414, %v1416
    %v1418 = vsel %vm1417, %v1413, inf
    %1419 = vmin.xlane.f32.xlu0 %v1418
    %v1420 = vpop.xlane.xlu0 %1419
    %v1421 = vcvt.f32.s32 %v1420
    %v1422 = vcvt.f32.s32 %v1416
    %v1423 = vshll.u32 %v1422, 16
    %v1424 = vadd.s32 %v1423, %v1421
    %v1425 = vand.u32 %v1311, 65535
    %v1426 = vshra.s32 %v1311, 16
    %v1427 = vcvt.s32.f32 %v1425
    %v1428 = vcvt.s32.f32 %v1426
    %1429 = vmin.xlane.f32.xlu0 %v1428
    %v1430 = vpop.xlane.xlu0 %1429
    %vm1431 = vcmp.eq.f32.partialorder %v1428, %v1430
    %v1432 = vsel %vm1431, %v1427, inf
    %1433 = vmin.xlane.f32.xlu0 %v1432
    %v1434 = vpop.xlane.xlu0 %1433
    %v1435 = vcvt.f32.s32 %v1434
    %v1436 = vcvt.f32.s32 %v1430
    %v1437 = vshll.u32 %v1436, 16
    %v1438 = vadd.s32 %v1437, %v1435
    %v1439 = vand.u32 %v1312, 65535
    %v1440 = vshra.s32 %v1312, 16
    %v1441 = vcvt.s32.f32 %v1439
    %v1442 = vcvt.s32.f32 %v1440
    %1443 = vmin.xlane.f32.xlu0 %v1442
    %v1444 = vpop.xlane.xlu0 %1443
    %vm1445 = vcmp.eq.f32.partialorder %v1442, %v1444
    %v1446 = vsel %vm1445, %v1441, inf
    %1447 = vmin.xlane.f32.xlu0 %v1446
    %v1448 = vpop.xlane.xlu0 %1447
    %v1449 = vcvt.f32.s32 %v1448
    %v1450 = vcvt.f32.s32 %v1444
    %v1451 = vshll.u32 %v1450, 16
    %v1452 = vadd.s32 %v1451, %v1449
    %v1453 = vand.u32 %v1313, 65535
    %v1454 = vshra.s32 %v1313, 16
    %v1455 = vcvt.s32.f32 %v1453
    %v1456 = vcvt.s32.f32 %v1454
    %1457 = vmin.xlane.f32.xlu0 %v1456
    %v1458 = vpop.xlane.xlu0 %1457
    %vm1459 = vcmp.eq.f32.partialorder %v1456, %v1458
    %v1460 = vsel %vm1459, %v1455, inf
    %1461 = vmin.xlane.f32.xlu0 %v1460
    %v1462 = vpop.xlane.xlu0 %1461
    %v1463 = vcvt.f32.s32 %v1462
    %v1464 = vcvt.f32.s32 %v1458
    %v1465 = vshll.u32 %v1464, 16
    %v1466 = vadd.s32 %v1465, %v1463
    %v1467 = vand.u32 %v1314, 65535
    %v1468 = vshra.s32 %v1314, 16
    %v1469 = vcvt.s32.f32 %v1467
    %v1470 = vcvt.s32.f32 %v1468
    %1471 = vmin.xlane.f32.xlu0 %v1470
    %v1472 = vpop.xlane.xlu0 %1471
    %vm1473 = vcmp.eq.f32.partialorder %v1470, %v1472
    %v1474 = vsel %vm1473, %v1469, inf
    %1475 = vmin.xlane.f32.xlu0 %v1474
    %v1476 = vpop.xlane.xlu0 %1475
    %v1477 = vcvt.f32.s32 %v1476
    %v1478 = vcvt.f32.s32 %v1472
    %v1479 = vshll.u32 %v1478, 16
    %v1480 = vadd.s32 %v1479, %v1477
    %v1481 = vand.u32 %v1315, 65535
    %v1482 = vshra.s32 %v1315, 16
    %v1483 = vcvt.s32.f32 %v1481
    %v1484 = vcvt.s32.f32 %v1482
    %1485 = vmin.xlane.f32.xlu0 %v1484
    %v1486 = vpop.xlane.xlu0 %1485
    %vm1487 = vcmp.eq.f32.partialorder %v1484, %v1486
    %v1488 = vsel %vm1487, %v1483, inf
    %1489 = vmin.xlane.f32.xlu0 %v1488
    %v1490 = vpop.xlane.xlu0 %1489
    %v1491 = vcvt.f32.s32 %v1490
    %v1492 = vcvt.f32.s32 %v1486
    %v1493 = vshll.u32 %v1492, 16
    %v1494 = vadd.s32 %v1493, %v1491
    %v1495 = vand.u32 %v1316, 65535
    %v1496 = vshra.s32 %v1316, 16
    %v1497 = vcvt.s32.f32 %v1495
    %v1498 = vcvt.s32.f32 %v1496
    %1499 = vmin.xlane.f32.xlu0 %v1498
    %v1500 = vpop.xlane.xlu0 %1499
    %vm1501 = vcmp.eq.f32.partialorder %v1498, %v1500
    %v1502 = vsel %vm1501, %v1497, inf
    %1503 = vmin.xlane.f32.xlu0 %v1502
    %v1504 = vpop.xlane.xlu0 %1503
    %v1505 = vcvt.f32.s32 %v1504
    %v1506 = vcvt.f32.s32 %v1500
    %v1507 = vshll.u32 %v1506, 16
    %v1508 = vadd.s32 %v1507, %v1505
    %v1509 = vand.u32 %v1317, 65535
    %v1510 = vshra.s32 %v1317, 16
    %v1511 = vcvt.s32.f32 %v1509
    %v1512 = vcvt.s32.f32 %v1510
    %1513 = vmin.xlane.f32.xlu0 %v1512
    %v1514 = vpop.xlane.xlu0 %1513
    %vm1515 = vcmp.eq.f32.partialorder %v1512, %v1514
    %v1516 = vsel %vm1515, %v1511, inf
    %1517 = vmin.xlane.f32.xlu0 %v1516
    %v1518 = vpop.xlane.xlu0 %1517
    %v1519 = vcvt.f32.s32 %v1518
    %v1520 = vcvt.f32.s32 %v1514
    %v1521 = vshll.u32 %v1520, 16
    %v1522 = vadd.s32 %v1521, %v1519
    %v1523 = vand.u32 %v1318, 65535
    %v1524 = vshra.s32 %v1318, 16
    %v1525 = vcvt.s32.f32 %v1523
    %v1526 = vcvt.s32.f32 %v1524
    %1527 = vmin.xlane.f32.xlu0 %v1526
    %v1528 = vpop.xlane.xlu0 %1527
    %vm1529 = vcmp.eq.f32.partialorder %v1526, %v1528
    %v1530 = vsel %vm1529, %v1525, inf
    %1531 = vmin.xlane.f32.xlu0 %v1530
    %v1532 = vpop.xlane.xlu0 %1531
    %v1533 = vcvt.f32.s32 %v1532
    %v1534 = vcvt.f32.s32 %v1528
    %v1535 = vshll.u32 %v1534, 16
    %v1536 = vadd.s32 %v1535, %v1533
    %v1537 = vand.u32 %v1319, 65535
    %v1538 = vshra.s32 %v1319, 16
    %v1539 = vcvt.s32.f32 %v1537
    %v1540 = vcvt.s32.f32 %v1538
    %1541 = vmin.xlane.f32.xlu0 %v1540
    %v1542 = vpop.xlane.xlu0 %1541
    %vm1543 = vcmp.eq.f32.partialorder %v1540, %v1542
    %v1544 = vsel %vm1543, %v1539, inf
    %1545 = vmin.xlane.f32.xlu0 %v1544
    %v1546 = vpop.xlane.xlu0 %1545
    %v1547 = vcvt.f32.s32 %v1546
    %v1548 = vcvt.f32.s32 %v1542
    %v1549 = vshll.u32 %v1548, 16
    %v1550 = vadd.s32 %v1549, %v1547
    %v1551 = vand.u32 %v1320, 65535
    %v1552 = vshra.s32 %v1320, 16
    %v1553 = vcvt.s32.f32 %v1551
    %v1554 = vcvt.s32.f32 %v1552
    %1555 = vmin.xlane.f32.xlu0 %v1554
    %v1556 = vpop.xlane.xlu0 %1555
    %vm1557 = vcmp.eq.f32.partialorder %v1554, %v1556
    %v1558 = vsel %vm1557, %v1553, inf
    %1559 = vmin.xlane.f32.xlu0 %v1558
    %v1560 = vpop.xlane.xlu0 %1559
    %v1561 = vcvt.f32.s32 %v1560
    %v1562 = vcvt.f32.s32 %v1556
    %v1563 = vshll.u32 %v1562, 16
    %v1564 = vadd.s32 %v1563, %v1561
    %v1565 = vand.u32 %v1321, 65535
    %v1566 = vshra.s32 %v1321, 16
    %v1567 = vcvt.s32.f32 %v1565
    %v1568 = vcvt.s32.f32 %v1566
    %1569 = vmin.xlane.f32.xlu0 %v1568
    %v1570 = vpop.xlane.xlu0 %1569
    %vm1571 = vcmp.eq.f32.partialorder %v1568, %v1570
    %v1572 = vsel %vm1571, %v1567, inf
    %1573 = vmin.xlane.f32.xlu0 %v1572
    %v1574 = vpop.xlane.xlu0 %1573
    %v1575 = vcvt.f32.s32 %v1574
    %v1576 = vcvt.f32.s32 %v1570
    %v1577 = vshll.u32 %v1576, 16
    %v1578 = vadd.s32 %v1577, %v1575
    %v1579 = vand.u32 %v1322, 65535
    %v1580 = vshra.s32 %v1322, 16
    %v1581 = vcvt.s32.f32 %v1579
    %v1582 = vcvt.s32.f32 %v1580
    %1583 = vmin.xlane.f32.xlu0 %v1582
    %v1584 = vpop.xlane.xlu0 %1583
    %vm1585 = vcmp.eq.f32.partialorder %v1582, %v1584
    %v1586 = vsel %vm1585, %v1581, inf
    %1587 = vmin.xlane.f32.xlu0 %v1586
    %v1588 = vpop.xlane.xlu0 %1587
    %v1589 = vcvt.f32.s32 %v1588
    %v1590 = vcvt.f32.s32 %v1584
    %v1591 = vshll.u32 %v1590, 16
    %v1592 = vadd.s32 %v1591, %v1589
    %v1593 = vand.u32 %v1323, 65535
    %v1594 = vshra.s32 %v1323, 16
    %v1595 = vcvt.s32.f32 %v1593
    %v1596 = vcvt.s32.f32 %v1594
    %1597 = vmin.xlane.f32.xlu0 %v1596
    %v1598 = vpop.xlane.xlu0 %1597
    %vm1599 = vcmp.eq.f32.partialorder %v1596, %v1598
    %v1600 = vsel %vm1599, %v1595, inf
    %1601 = vmin.xlane.f32.xlu0 %v1600
    %v1602 = vpop.xlane.xlu0 %1601
    %v1603 = vcvt.f32.s32 %v1602
    %v1604 = vcvt.f32.s32 %v1598
    %v1605 = vshll.u32 %v1604, 16
    %v1606 = vadd.s32 %v1605, %v1603
    %v1607 = vand.u32 %v1324, 65535
    %v1608 = vshra.s32 %v1324, 16
    %v1609 = vcvt.s32.f32 %v1607
    %v1610 = vcvt.s32.f32 %v1608
    %1611 = vmin.xlane.f32.xlu0 %v1610
    %v1612 = vpop.xlane.xlu0 %1611
    %vm1613 = vcmp.eq.f32.partialorder %v1610, %v1612
    %v1614 = vsel %vm1613, %v1609, inf
    %1615 = vmin.xlane.f32.xlu0 %v1614
    %v1616 = vpop.xlane.xlu0 %1615
    %v1617 = vcvt.f32.s32 %v1616
    %v1618 = vcvt.f32.s32 %v1612
    %v1619 = vshll.u32 %v1618, 16
    %v1620 = vadd.s32 %v1619, %v1617
    %v1621 = vand.u32 %v1325, 65535
    %v1622 = vshra.s32 %v1325, 16
    %v1623 = vcvt.s32.f32 %v1621
    %v1624 = vcvt.s32.f32 %v1622
    %1625 = vmin.xlane.f32.xlu0 %v1624
    %v1626 = vpop.xlane.xlu0 %1625
    %vm1627 = vcmp.eq.f32.partialorder %v1624, %v1626
    %v1628 = vsel %vm1627, %v1623, inf
    %1629 = vmin.xlane.f32.xlu0 %v1628
    %v1630 = vpop.xlane.xlu0 %1629
    %v1631 = vcvt.f32.s32 %v1630
    %v1632 = vcvt.f32.s32 %v1626
    %v1633 = vshll.u32 %v1632, 16
    %v1634 = vadd.s32 %v1633, %v1631
    %v1635 = vand.u32 %v1326, 65535
    %v1636 = vshra.s32 %v1326, 16
    %v1637 = vcvt.s32.f32 %v1635
    %v1638 = vcvt.s32.f32 %v1636
    %1639 = vmin.xlane.f32.xlu0 %v1638
    %v1640 = vpop.xlane.xlu0 %1639
    %vm1641 = vcmp.eq.f32.partialorder %v1638, %v1640
    %v1642 = vsel %vm1641, %v1637, inf
    %1643 = vmin.xlane.f32.xlu0 %v1642
    %v1644 = vpop.xlane.xlu0 %1643
    %v1645 = vcvt.f32.s32 %v1644
    %v1646 = vcvt.f32.s32 %v1640
    %v1647 = vshll.u32 %v1646, 16
    %v1648 = vadd.s32 %v1647, %v1645
    %v1649 = vand.u32 %v1327, 65535
    %v1650 = vshra.s32 %v1327, 16
    %v1651 = vcvt.s32.f32 %v1649
    %v1652 = vcvt.s32.f32 %v1650
    %1653 = vmin.xlane.f32.xlu0 %v1652
    %v1654 = vpop.xlane.xlu0 %1653
    %vm1655 = vcmp.eq.f32.partialorder %v1652, %v1654
    %v1656 = vsel %vm1655, %v1651, inf
    %1657 = vmin.xlane.f32.xlu0 %v1656
    %v1658 = vpop.xlane.xlu0 %1657
    %v1659 = vcvt.f32.s32 %v1658
    %v1660 = vcvt.f32.s32 %v1654
    %v1661 = vshll.u32 %v1660, 16
    %v1662 = vadd.s32 %v1661, %v1659
    %v1663 = vand.u32 %v1328, 65535
    %v1664 = vshra.s32 %v1328, 16
    %v1665 = vcvt.s32.f32 %v1663
    %v1666 = vcvt.s32.f32 %v1664
    %1667 = vmin.xlane.f32.xlu0 %v1666
    %v1668 = vpop.xlane.xlu0 %1667
    %vm1669 = vcmp.eq.f32.partialorder %v1666, %v1668
    %v1670 = vsel %vm1669, %v1665, inf
    %1671 = vmin.xlane.f32.xlu0 %v1670
    %v1672 = vpop.xlane.xlu0 %1671
    %v1673 = vcvt.f32.s32 %v1672
    %v1674 = vcvt.f32.s32 %v1668
    %v1675 = vshll.u32 %v1674, 16
    %v1676 = vadd.s32 %v1675, %v1673
    %v1677 = vand.u32 %v1329, 65535
    %v1678 = vshra.s32 %v1329, 16
    %v1679 = vcvt.s32.f32 %v1677
    %v1680 = vcvt.s32.f32 %v1678
    %1681 = vmin.xlane.f32.xlu0 %v1680
    %v1682 = vpop.xlane.xlu0 %1681
    %vm1683 = vcmp.eq.f32.partialorder %v1680, %v1682
    %v1684 = vsel %vm1683, %v1679, inf
    %1685 = vmin.xlane.f32.xlu0 %v1684
    %v1686 = vpop.xlane.xlu0 %1685
    %v1687 = vcvt.f32.s32 %v1686
    %v1688 = vcvt.f32.s32 %v1682
    %v1689 = vshll.u32 %v1688, 16
    %v1690 = vadd.s32 %v1689, %v1687
    %v1691 = vand.u32 %v1330, 65535
    %v1692 = vshra.s32 %v1330, 16
    %v1693 = vcvt.s32.f32 %v1691
    %v1694 = vcvt.s32.f32 %v1692
    %1695 = vmin.xlane.f32.xlu0 %v1694
    %v1696 = vpop.xlane.xlu0 %1695
    %vm1697 = vcmp.eq.f32.partialorder %v1694, %v1696
    %v1698 = vsel %vm1697, %v1693, inf
    %1699 = vmin.xlane.f32.xlu0 %v1698
    %v1700 = vpop.xlane.xlu0 %1699
    %v1701 = vcvt.f32.s32 %v1700
    %v1702 = vcvt.f32.s32 %v1696
    %v1703 = vshll.u32 %v1702, 16
    %v1704 = vadd.s32 %v1703, %v1701
    %v1705 = vand.u32 %v1331, 65535
    %v1706 = vshra.s32 %v1331, 16
    %v1707 = vcvt.s32.f32 %v1705
    %v1708 = vcvt.s32.f32 %v1706
    %1709 = vmin.xlane.f32.xlu0 %v1708
    %v1710 = vpop.xlane.xlu0 %1709
    %vm1711 = vcmp.eq.f32.partialorder %v1708, %v1710
    %v1712 = vsel %vm1711, %v1707, inf
    %1713 = vmin.xlane.f32.xlu0 %v1712
    %v1714 = vpop.xlane.xlu0 %1713
    %v1715 = vcvt.f32.s32 %v1714
    %v1716 = vcvt.f32.s32 %v1710
    %v1717 = vshll.u32 %v1716, 16
    %v1718 = vadd.s32 %v1717, %v1715
    %v1719 = vand.u32 %v1332, 65535
    %v1720 = vshra.s32 %v1332, 16
    %v1721 = vcvt.s32.f32 %v1719
    %v1722 = vcvt.s32.f32 %v1720
    %1723 = vmin.xlane.f32.xlu0 %v1722
    %v1724 = vpop.xlane.xlu0 %1723
    %vm1725 = vcmp.eq.f32.partialorder %v1722, %v1724
    %v1726 = vsel %vm1725, %v1721, inf
    %1727 = vmin.xlane.f32.xlu0 %v1726
    %v1728 = vpop.xlane.xlu0 %1727
    %v1729 = vcvt.f32.s32 %v1728
    %v1730 = vcvt.f32.s32 %v1724
    %v1731 = vshll.u32 %v1730, 16
    %v1732 = vadd.s32 %v1731, %v1729
    %v1733 = vand.u32 %v1333, 65535
    %v1734 = vshra.s32 %v1333, 16
    %v1735 = vcvt.s32.f32 %v1733
    %v1736 = vcvt.s32.f32 %v1734
    %1737 = vmin.xlane.f32.xlu0 %v1736
    %v1738 = vpop.xlane.xlu0 %1737
    %vm1739 = vcmp.eq.f32.partialorder %v1736, %v1738
    %v1740 = vsel %vm1739, %v1735, inf
    %1741 = vmin.xlane.f32.xlu0 %v1740
    %v1742 = vpop.xlane.xlu0 %1741
    %v1743 = vcvt.f32.s32 %v1742
    %v1744 = vcvt.f32.s32 %v1738
    %v1745 = vshll.u32 %v1744, 16
    %v1746 = vadd.s32 %v1745, %v1743
    %v1747 = vand.u32 %v1334, 65535
    %v1748 = vshra.s32 %v1334, 16
    %v1749 = vcvt.s32.f32 %v1747
    %v1750 = vcvt.s32.f32 %v1748
    %1751 = vmin.xlane.f32.xlu0 %v1750
    %v1752 = vpop.xlane.xlu0 %1751
    %vm1753 = vcmp.eq.f32.partialorder %v1750, %v1752
    %v1754 = vsel %vm1753, %v1749, inf
    %1755 = vmin.xlane.f32.xlu0 %v1754
    %v1756 = vpop.xlane.xlu0 %1755
    %v1757 = vcvt.f32.s32 %v1756
    %v1758 = vcvt.f32.s32 %v1752
    %v1759 = vshll.u32 %v1758, 16
    %v1760 = vadd.s32 %v1759, %v1757
    %v1761 = vand.u32 %v1335, 65535
    %v1762 = vshra.s32 %v1335, 16
    %v1763 = vcvt.s32.f32 %v1761
    %v1764 = vcvt.s32.f32 %v1762
    %1765 = vmin.xlane.f32.xlu0 %v1764
    %v1766 = vpop.xlane.xlu0 %1765
    %vm1767 = vcmp.eq.f32.partialorder %v1764, %v1766
    %v1768 = vsel %vm1767, %v1763, inf
    %1769 = vmin.xlane.f32.xlu0 %v1768
    %v1770 = vpop.xlane.xlu0 %1769
    %v1771 = vcvt.f32.s32 %v1770
    %v1772 = vcvt.f32.s32 %v1766
    %v1773 = vshll.u32 %v1772, 16
    %v1774 = vadd.s32 %v1773, %v1771
    %v1775 = vand.u32 %v1336, 65535
    %v1776 = vshra.s32 %v1336, 16
    %v1777 = vcvt.s32.f32 %v1775
    %v1778 = vcvt.s32.f32 %v1776
    %1779 = vmin.xlane.f32.xlu0 %v1778
    %v1780 = vpop.xlane.xlu0 %1779
    %vm1781 = vcmp.eq.f32.partialorder %v1778, %v1780
    %v1782 = vsel %vm1781, %v1777, inf
    %1783 = vmin.xlane.f32.xlu0 %v1782
    %v1784 = vpop.xlane.xlu0 %1783
    %v1785 = vcvt.f32.s32 %v1784
    %v1786 = vcvt.f32.s32 %v1780
    %v1787 = vshll.u32 %v1786, 16
    %v1788 = vadd.s32 %v1787, %v1785
    %v1789 = vand.u32 %v1337, 65535
    %v1790 = vshra.s32 %v1337, 16
    %v1791 = vcvt.s32.f32 %v1789
    %v1792 = vcvt.s32.f32 %v1790
    %1793 = vmin.xlane.f32.xlu0 %v1792
    %v1794 = vpop.xlane.xlu0 %1793
    %vm1795 = vcmp.eq.f32.partialorder %v1792, %v1794
    %v1796 = vsel %vm1795, %v1791, inf
    %1797 = vmin.xlane.f32.xlu0 %v1796
    %v1798 = vpop.xlane.xlu0 %1797
    %v1799 = vcvt.f32.s32 %v1798
    %v1800 = vcvt.f32.s32 %v1794
    %v1801 = vshll.u32 %v1800, 16
    %v1802 = vadd.s32 %v1801, %v1799
    %v1803 = vand.u32 %v1338, 65535
    %v1804 = vshra.s32 %v1338, 16
    %v1805 = vcvt.s32.f32 %v1803
    %v1806 = vcvt.s32.f32 %v1804
    %1807 = vmin.xlane.f32.xlu0 %v1806
    %v1808 = vpop.xlane.xlu0 %1807
    %vm1809 = vcmp.eq.f32.partialorder %v1806, %v1808
    %v1810 = vsel %vm1809, %v1805, inf
    %1811 = vmin.xlane.f32.xlu0 %v1810
    %v1812 = vpop.xlane.xlu0 %1811
    %v1813 = vcvt.f32.s32 %v1812
    %v1814 = vcvt.f32.s32 %v1808
    %v1815 = vshll.u32 %v1814, 16
    %v1816 = vadd.s32 %v1815, %v1813
    %v1817 = vand.u32 %v1339, 65535
    %v1818 = vshra.s32 %v1339, 16
    %v1819 = vcvt.s32.f32 %v1817
    %v1820 = vcvt.s32.f32 %v1818
    %1821 = vmin.xlane.f32.xlu0 %v1820
    %v1822 = vpop.xlane.xlu0 %1821
    %vm1823 = vcmp.eq.f32.partialorder %v1820, %v1822
    %v1824 = vsel %vm1823, %v1819, inf
    %1825 = vmin.xlane.f32.xlu0 %v1824
    %v1826 = vpop.xlane.xlu0 %1825
    %v1827 = vcvt.f32.s32 %v1826
    %v1828 = vcvt.f32.s32 %v1822
    %v1829 = vshll.u32 %v1828, 16
    %v1830 = vadd.s32 %v1829, %v1827
    %v1831 = vand.u32 %v1340, 65535
    %v1832 = vshra.s32 %v1340, 16
    %v1833 = vcvt.s32.f32 %v1831
    %v1834 = vcvt.s32.f32 %v1832
    %1835 = vmin.xlane.f32.xlu0 %v1834
    %v1836 = vpop.xlane.xlu0 %1835
    %vm1837 = vcmp.eq.f32.partialorder %v1834, %v1836
    %v1838 = vsel %vm1837, %v1833, inf
    %1839 = vmin.xlane.f32.xlu0 %v1838
    %v1840 = vpop.xlane.xlu0 %1839
    %v1841 = vcvt.f32.s32 %v1840
    %v1842 = vcvt.f32.s32 %v1836
    %v1843 = vshll.u32 %v1842, 16
    %v1844 = vadd.s32 %v1843, %v1841
    %v1881 = vlaneseq
    %v1882 = vshrl.u32 %v1881, 7
    %v1883 = vsub.s32 %v1268, %v1882
    %v1884 = vrot.slane %v1196, %v1883
    %v1885 = vadd.s32 %v1268, 4294967288
    %v1886 = vlaneseq
    %v1887 = vshrl.u32 %v1886, 7
    %v1888 = vsub.s32 %v1885, %v1887
    %v1889 = vrot.slane %v1198, %v1888
    %vm1890 = vcmask 130112
    %v1891 = vsel %vm1890, %v1889, %v1884
    %v1892 = vadd.s32 %v1268, 4294967280
    %v1893 = vlaneseq
    %v1894 = vshrl.u32 %v1893, 7
    %v1895 = vsub.s32 %v1892, %v1894
    %v1896 = vrot.slane %v1200, %v1895
    %vm1897 = vcmask 195712
    %v1898 = vsel %vm1897, %v1896, %v1891
    %v1899 = vadd.s32 %v1268, 4294967272
    %v1900 = vlaneseq
    %v1901 = vshrl.u32 %v1900, 7
    %v1902 = vsub.s32 %v1899, %v1901
    %v1903 = vrot.slane %v1202, %v1902
    %vm1904 = vcmask 261312
    %v1905 = vsel %vm1904, %v1903, %v1898
    %v1906 = vadd.s32 %v1268, 4294967264
    %v1907 = vlaneseq
    %v1908 = vshrl.u32 %v1907, 7
    %v1909 = vsub.s32 %v1906, %v1908
    %v1910 = vrot.slane %v1204, %v1909
    %vm1911 = vcmask 326912
    %v1912 = vsel %vm1911, %v1910, %v1905
    %v1913 = vadd.s32 %v1268, 4294967256
    %v1914 = vlaneseq
    %v1915 = vshrl.u32 %v1914, 7
    %v1916 = vsub.s32 %v1913, %v1915
    %v1917 = vrot.slane %v1206, %v1916
    %vm1918 = vcmask 392512
    %v1919 = vsel %vm1918, %v1917, %v1912
    %v1920 = vadd.s32 %v1268, 4294967248
    %v1921 = vlaneseq
    %v1922 = vshrl.u32 %v1921, 7
    %v1923 = vsub.s32 %v1920, %v1922
    %v1924 = vrot.slane %v1208, %v1923
    %vm1925 = vcmask 458112
    %v1926 = vsel %vm1925, %v1924, %v1919
    %v1927 = vadd.s32 %v1268, 4294967240
    %v1928 = vlaneseq
    %v1929 = vshrl.u32 %v1928, 7
    %v1930 = vsub.s32 %v1927, %v1929
    %v1931 = vrot.slane %v1210, %v1930
    %vm1932 = vcmask 523712
    %v1933 = vsel %vm1932, %v1931, %v1926
    %v1934 = vadd.s32 %v1268, 4294967232
    %v1935 = vlaneseq
    %v1936 = vshrl.u32 %v1935, 7
    %v1937 = vsub.s32 %v1934, %v1936
    %v1938 = vrot.slane %v1212, %v1937
    %vm1939 = vcmask 589312
    %v1940 = vsel %vm1939, %v1938, %v1933
    %v1941 = vlaneseq
    %v1942 = vshrl.u32 %v1941, 7
    %v1943 = vsub.s32 %v1268, %v1942
    %v1944 = vrot.slane %v1214, %v1943
    %v1945 = vlaneseq
    %v1946 = vshrl.u32 %v1945, 7
    %v1947 = vsub.s32 %v1885, %v1946
    %v1948 = vrot.slane %v1216, %v1947
    %v1949 = vsel %vm1890, %v1948, %v1944
    %v1950 = vlaneseq
    %v1951 = vshrl.u32 %v1950, 7
    %v1952 = vsub.s32 %v1892, %v1951
    %v1953 = vrot.slane %v1218, %v1952
    %v1954 = vsel %vm1897, %v1953, %v1949
    %v1955 = vlaneseq
    %v1956 = vshrl.u32 %v1955, 7
    %v1957 = vsub.s32 %v1899, %v1956
    %v1958 = vrot.slane %v1220, %v1957
    %v1959 = vsel %vm1904, %v1958, %v1954
    %v1960 = vlaneseq
    %v1961 = vshrl.u32 %v1960, 7
    %v1962 = vsub.s32 %v1906, %v1961
    %v1963 = vrot.slane %v1222, %v1962
    %v1964 = vsel %vm1911, %v1963, %v1959
    %v1965 = vlaneseq
    %v1966 = vshrl.u32 %v1965, 7
    %v1967 = vsub.s32 %v1913, %v1966
    %v1968 = vrot.slane %v1224, %v1967
    %v1969 = vsel %vm1918, %v1968, %v1964
    %v1970 = vlaneseq
    %v1971 = vshrl.u32 %v1970, 7
    %v1972 = vsub.s32 %v1920, %v1971
    %v1973 = vrot.slane %v1226, %v1972
    %v1974 = vsel %vm1925, %v1973, %v1969
    %v1975 = vlaneseq
    %v1976 = vshrl.u32 %v1975, 7
    %v1977 = vsub.s32 %v1927, %v1976
    %v1978 = vrot.slane %v1228, %v1977
    %v1979 = vsel %vm1932, %v1978, %v1974
    %v1980 = vlaneseq
    %v1981 = vshrl.u32 %v1980, 7
    %v1982 = vsub.s32 %v1934, %v1981
    %v1983 = vrot.slane %v1230, %v1982
    %v1984 = vsel %vm1939, %v1983, %v1979
    %v1985 = vlaneseq
    %v1986 = vshrl.u32 %v1985, 7
    %v1987 = vsub.s32 %v1268, %v1986
    %v1988 = vrot.slane %v1232, %v1987
    %v1989 = vlaneseq
    %v1990 = vshrl.u32 %v1989, 7
    %v1991 = vsub.s32 %v1885, %v1990
    %v1992 = vrot.slane %v1234, %v1991
    %v1993 = vsel %vm1890, %v1992, %v1988
    %v1994 = vlaneseq
    %v1995 = vshrl.u32 %v1994, 7
    %v1996 = vsub.s32 %v1892, %v1995
    %v1997 = vrot.slane %v1236, %v1996
    %v1998 = vsel %vm1897, %v1997, %v1993
    %v1999 = vlaneseq
    %v2000 = vshrl.u32 %v1999, 7
    %v2001 = vsub.s32 %v1899, %v2000
    %v2002 = vrot.slane %v1238, %v2001
    %v2003 = vsel %vm1904, %v2002, %v1998
    %v2004 = vlaneseq
    %v2005 = vshrl.u32 %v2004, 7
    %v2006 = vsub.s32 %v1906, %v2005
    %v2007 = vrot.slane %v1240, %v2006
    %v2008 = vsel %vm1911, %v2007, %v2003
    %v2009 = vlaneseq
    %v2010 = vshrl.u32 %v2009, 7
    %v2011 = vsub.s32 %v1913, %v2010
    %v2012 = vrot.slane %v1242, %v2011
    %v2013 = vsel %vm1918, %v2012, %v2008
    %v2014 = vlaneseq
    %v2015 = vshrl.u32 %v2014, 7
    %v2016 = vsub.s32 %v1920, %v2015
    %v2017 = vrot.slane %v1244, %v2016
    %v2018 = vsel %vm1925, %v2017, %v2013
    %v2019 = vlaneseq
    %v2020 = vshrl.u32 %v2019, 7
    %v2021 = vsub.s32 %v1927, %v2020
    %v2022 = vrot.slane %v1246, %v2021
    %v2023 = vsel %vm1932, %v2022, %v2018
    %v2024 = vlaneseq
    %v2025 = vshrl.u32 %v2024, 7
    %v2026 = vsub.s32 %v1934, %v2025
    %v2027 = vrot.slane %v1248, %v2026
    %v2028 = vsel %vm1939, %v2027, %v2023
    %v2029 = vlaneseq
    %v2030 = vshrl.u32 %v2029, 7
    %v2031 = vsub.s32 %v1268, %v2030
    %v2032 = vrot.slane %v1250, %v2031
    %v2033 = vlaneseq
    %v2034 = vshrl.u32 %v2033, 7
    %v2035 = vsub.s32 %v1885, %v2034
    %v2036 = vrot.slane %v1252, %v2035
    %v2037 = vsel %vm1890, %v2036, %v2032
    %v2038 = vlaneseq
    %v2039 = vshrl.u32 %v2038, 7
    %v2040 = vsub.s32 %v1892, %v2039
    %v2041 = vrot.slane %v1254, %v2040
    %v2042 = vsel %vm1897, %v2041, %v2037
    %v2043 = vlaneseq
    %v2044 = vshrl.u32 %v2043, 7
    %v2045 = vsub.s32 %v1899, %v2044
    %v2046 = vrot.slane %v1256, %v2045
    %v2047 = vsel %vm1904, %v2046, %v2042
    %v2048 = vlaneseq
    %v2049 = vshrl.u32 %v2048, 7
    %v2050 = vsub.s32 %v1906, %v2049
    %v2051 = vrot.slane %v1258, %v2050
    %v2052 = vsel %vm1911, %v2051, %v2047
    %v2053 = vlaneseq
    %v2054 = vshrl.u32 %v2053, 7
    %v2055 = vsub.s32 %v1913, %v2054
    %v2056 = vrot.slane %v1260, %v2055
    %v2057 = vsel %vm1918, %v2056, %v2052
    %v2058 = vlaneseq
    %v2059 = vshrl.u32 %v2058, 7
    %v2060 = vsub.s32 %v1920, %v2059
    %v2061 = vrot.slane %v1262, %v2060
    %v2062 = vsel %vm1925, %v2061, %v2057
    %v2063 = vlaneseq
    %v2064 = vshrl.u32 %v2063, 7
    %v2065 = vsub.s32 %v1927, %v2064
    %v2066 = vrot.slane %v1264, %v2065
    %v2067 = vsel %vm1932, %v2066, %v2062
    %v2068 = vlaneseq
    %v2069 = vshrl.u32 %v2068, 7
    %v2070 = vsub.s32 %v1934, %v2069
    %v2071 = vrot.slane %v1266, %v2070
    %v2072 = vsel %vm1939, %v2071, %v2067
    %vm2073 = vcmask 1041409
    %v2074 = vsel %vm2073, %v1984, %v1940
    %vm2075 = vcmask 1042434
    %v2076 = vsel %vm2075, %v2028, %v2074
    %vm2077 = vcmask 1043459
    %v2078 = vsel %vm2077, %v2072, %v2076
    %vm2080 = vcmask 584704
    %v2081 = vsel %vm2080, %v2078, -inf
    %2082 = vmax.xlane.f32.xlu0 %v2081
    %v2083 = vpop.xlane.xlu0 %2082
    %v2084 = vmul.u32 %v1268, 64
    %v2085 = vlaneseq
    %v2086 = vshrl.u32 %v2085, 7
    %v2087 = vsub.s32 %v1268, %v2086
    %v2088 = vrot.slane %v1354, %v2087
    %v2089 = vlaneseq
    %v2090 = vshrl.u32 %v2089, 7
    %v2091 = vsub.s32 %v1885, %v2090
    %v2092 = vrot.slane %v1368, %v2091
    %v2093 = vsel %vm1890, %v2092, %v2088
    %v2094 = vlaneseq
    %v2095 = vshrl.u32 %v2094, 7
    %v2096 = vsub.s32 %v1892, %v2095
    %v2097 = vrot.slane %v1382, %v2096
    %v2098 = vsel %vm1897, %v2097, %v2093
    %v2099 = vlaneseq
    %v2100 = vshrl.u32 %v2099, 7
    %v2101 = vsub.s32 %v1899, %v2100
    %v2102 = vrot.slane %v1396, %v2101
    %v2103 = vsel %vm1904, %v2102, %v2098
    %v2104 = vlaneseq
    %v2105 = vshrl.u32 %v2104, 7
    %v2106 = vsub.s32 %v1906, %v2105
    %v2107 = vrot.slane %v1410, %v2106
    %v2108 = vsel %vm1911, %v2107, %v2103
    %v2109 = vlaneseq
    %v2110 = vshrl.u32 %v2109, 7
    %v2111 = vsub.s32 %v1913, %v2110
    %v2112 = vrot.slane %v1424, %v2111
    %v2113 = vsel %vm1918, %v2112, %v2108
    %v2114 = vlaneseq
    %v2115 = vshrl.u32 %v2114, 7
    %v2116 = vsub.s32 %v1920, %v2115
    %v2117 = vrot.slane %v1438, %v2116
    %v2118 = vsel %vm1925, %v2117, %v2113
    %v2119 = vlaneseq
    %v2120 = vshrl.u32 %v2119, 7
    %v2121 = vsub.s32 %v1927, %v2120
    %v2122 = vrot.slane %v1452, %v2121
    %v2123 = vsel %vm1932, %v2122, %v2118
    %v2124 = vlaneseq
    %v2125 = vshrl.u32 %v2124, 7
    %v2126 = vsub.s32 %v1934, %v2125
    %v2127 = vrot.slane %v1466, %v2126
    %v2128 = vsel %vm1939, %v2127, %v2123
    %v2129 = vlaneseq
    %v2130 = vshrl.u32 %v2129, 7
    %v2131 = vsub.s32 %v1268, %v2130
    %v2132 = vrot.slane %v1480, %v2131
    %v2133 = vlaneseq
    %v2134 = vshrl.u32 %v2133, 7
    %v2135 = vsub.s32 %v1885, %v2134
    %v2136 = vrot.slane %v1494, %v2135
    %v2137 = vsel %vm1890, %v2136, %v2132
    %v2138 = vlaneseq
    %v2139 = vshrl.u32 %v2138, 7
    %v2140 = vsub.s32 %v1892, %v2139
    %v2141 = vrot.slane %v1508, %v2140
    %v2142 = vsel %vm1897, %v2141, %v2137
    %v2143 = vlaneseq
    %v2144 = vshrl.u32 %v2143, 7
    %v2145 = vsub.s32 %v1899, %v2144
    %v2146 = vrot.slane %v1522, %v2145
    %v2147 = vsel %vm1904, %v2146, %v2142
    %v2148 = vlaneseq
    %v2149 = vshrl.u32 %v2148, 7
    %v2150 = vsub.s32 %v1906, %v2149
    %v2151 = vrot.slane %v1536, %v2150
    %v2152 = vsel %vm1911, %v2151, %v2147
    %v2153 = vlaneseq
    %v2154 = vshrl.u32 %v2153, 7
    %v2155 = vsub.s32 %v1913, %v2154
    %v2156 = vrot.slane %v1550, %v2155
    %v2157 = vsel %vm1918, %v2156, %v2152
    %v2158 = vlaneseq
    %v2159 = vshrl.u32 %v2158, 7
    %v2160 = vsub.s32 %v1920, %v2159
    %v2161 = vrot.slane %v1564, %v2160
    %v2162 = vsel %vm1925, %v2161, %v2157
    %v2163 = vlaneseq
    %v2164 = vshrl.u32 %v2163, 7
    %v2165 = vsub.s32 %v1927, %v2164
    %v2166 = vrot.slane %v1578, %v2165
    %v2167 = vsel %vm1932, %v2166, %v2162
    %v2168 = vlaneseq
    %v2169 = vshrl.u32 %v2168, 7
    %v2170 = vsub.s32 %v1934, %v2169
    %v2171 = vrot.slane %v1592, %v2170
    %v2172 = vsel %vm1939, %v2171, %v2167
    %v2173 = vlaneseq
    %v2174 = vshrl.u32 %v2173, 7
    %v2175 = vsub.s32 %v1268, %v2174
    %v2176 = vrot.slane %v1606, %v2175
    %v2177 = vlaneseq
    %v2178 = vshrl.u32 %v2177, 7
    %v2179 = vsub.s32 %v1885, %v2178
    %v2180 = vrot.slane %v1620, %v2179
    %v2181 = vsel %vm1890, %v2180, %v2176
    %v2182 = vlaneseq
    %v2183 = vshrl.u32 %v2182, 7
    %v2184 = vsub.s32 %v1892, %v2183
    %v2185 = vrot.slane %v1634, %v2184
    %v2186 = vsel %vm1897, %v2185, %v2181
    %v2187 = vlaneseq
    %v2188 = vshrl.u32 %v2187, 7
    %v2189 = vsub.s32 %v1899, %v2188
    %v2190 = vrot.slane %v1648, %v2189
    %v2191 = vsel %vm1904, %v2190, %v2186
    %v2192 = vlaneseq
    %v2193 = vshrl.u32 %v2192, 7
    %v2194 = vsub.s32 %v1906, %v2193
    %v2195 = vrot.slane %v1662, %v2194
    %v2196 = vsel %vm1911, %v2195, %v2191
    %v2197 = vlaneseq
    %v2198 = vshrl.u32 %v2197, 7
    %v2199 = vsub.s32 %v1913, %v2198
    %v2200 = vrot.slane %v1676, %v2199
    %v2201 = vsel %vm1918, %v2200, %v2196
    %v2202 = vlaneseq
    %v2203 = vshrl.u32 %v2202, 7
    %v2204 = vsub.s32 %v1920, %v2203
    %v2205 = vrot.slane %v1690, %v2204
    %v2206 = vsel %vm1925, %v2205, %v2201
    %v2207 = vlaneseq
    %v2208 = vshrl.u32 %v2207, 7
    %v2209 = vsub.s32 %v1927, %v2208
    %v2210 = vrot.slane %v1704, %v2209
    %v2211 = vsel %vm1932, %v2210, %v2206
    %v2212 = vlaneseq
    %v2213 = vshrl.u32 %v2212, 7
    %v2214 = vsub.s32 %v1934, %v2213
    %v2215 = vrot.slane %v1718, %v2214
    %v2216 = vsel %vm1939, %v2215, %v2211
    %v2217 = vlaneseq
    %v2218 = vshrl.u32 %v2217, 7
    %v2219 = vsub.s32 %v1268, %v2218
    %v2220 = vrot.slane %v1732, %v2219
    %v2221 = vlaneseq
    %v2222 = vshrl.u32 %v2221, 7
    %v2223 = vsub.s32 %v1885, %v2222
    %v2224 = vrot.slane %v1746, %v2223
    %v2225 = vsel %vm1890, %v2224, %v2220
    %v2226 = vlaneseq
    %v2227 = vshrl.u32 %v2226, 7
    %v2228 = vsub.s32 %v1892, %v2227
    %v2229 = vrot.slane %v1760, %v2228
    %v2230 = vsel %vm1897, %v2229, %v2225
    %v2231 = vlaneseq
    %v2232 = vshrl.u32 %v2231, 7
    %v2233 = vsub.s32 %v1899, %v2232
    %v2234 = vrot.slane %v1774, %v2233
    %v2235 = vsel %vm1904, %v2234, %v2230
    %v2236 = vlaneseq
    %v2237 = vshrl.u32 %v2236, 7
    %v2238 = vsub.s32 %v1906, %v2237
    %v2239 = vrot.slane %v1788, %v2238
    %v2240 = vsel %vm1911, %v2239, %v2235
    %v2241 = vlaneseq
    %v2242 = vshrl.u32 %v2241, 7
    %v2243 = vsub.s32 %v1913, %v2242
    %v2244 = vrot.slane %v1802, %v2243
    %v2245 = vsel %vm1918, %v2244, %v2240
    %v2246 = vlaneseq
    %v2247 = vshrl.u32 %v2246, 7
    %v2248 = vsub.s32 %v1920, %v2247
    %v2249 = vrot.slane %v1816, %v2248
    %v2250 = vsel %vm1925, %v2249, %v2245
    %v2251 = vlaneseq
    %v2252 = vshrl.u32 %v2251, 7
    %v2253 = vsub.s32 %v1927, %v2252
    %v2254 = vrot.slane %v1830, %v2253
    %v2255 = vsel %vm1932, %v2254, %v2250
    %v2256 = vlaneseq
    %v2257 = vshrl.u32 %v2256, 7
    %v2258 = vsub.s32 %v1934, %v2257
    %v2259 = vrot.slane %v1844, %v2258
    %v2260 = vsel %vm1939, %v2259, %v2255
    %v2261 = vsel %vm2073, %v2172, %v2128
    %v2262 = vsel %vm2075, %v2216, %v2261
    %v2263 = vsel %vm2077, %v2260, %v2262
    %v2264 = vadd.s32 %v2084, %v2263
    %v2266 = vlaneseq
    %v2267 = vshrl.u32 %v2266, 7
    %v2268 = vsub.s32 0, %v2267
    %v2269 = vrot.slane %v2083, %v2268
    %v2270 = vlaneseq
    %v2271 = vshrl.u32 %v2270, 7
    %v2272 = vsub.s32 1, %v2271
    %v2273 = vrot.slane %v2083, %v2272
    %v2274 = vlaneseq
    %v2275 = vshrl.u32 %v2274, 7
    %v2276 = vsub.s32 2, %v2275
    %v2277 = vrot.slane %v2083, %v2276
    %v2278 = vlaneseq
    %v2279 = vshrl.u32 %v2278, 7
    %v2280 = vsub.s32 3, %v2279
    %v2281 = vrot.slane %v2083, %v2280
    %vm2286 = vcmp.eq.f32.partialorder %v1196, %v2269
    %vm2287 = vcmp.eq.f32.partialorder %v1198, %v2269
    %vm2288 = vcmp.eq.f32.partialorder %v1200, %v2269
    %vm2289 = vcmp.eq.f32.partialorder %v1202, %v2269
    %vm2290 = vcmp.eq.f32.partialorder %v1204, %v2269
    %vm2291 = vcmp.eq.f32.partialorder %v1206, %v2269
    %vm2292 = vcmp.eq.f32.partialorder %v1208, %v2269
    %vm2293 = vcmp.eq.f32.partialorder %v1210, %v2269
    %vm2294 = vcmp.eq.f32.partialorder %v1212, %v2269
    %vm2295 = vcmp.eq.f32.partialorder %v1214, %v2273
    %vm2296 = vcmp.eq.f32.partialorder %v1216, %v2273
    %vm2297 = vcmp.eq.f32.partialorder %v1218, %v2273
    %vm2298 = vcmp.eq.f32.partialorder %v1220, %v2273
    %vm2299 = vcmp.eq.f32.partialorder %v1222, %v2273
    %vm2300 = vcmp.eq.f32.partialorder %v1224, %v2273
    %vm2301 = vcmp.eq.f32.partialorder %v1226, %v2273
    %vm2302 = vcmp.eq.f32.partialorder %v1228, %v2273
    %vm2303 = vcmp.eq.f32.partialorder %v1230, %v2273
    %vm2304 = vcmp.eq.f32.partialorder %v1232, %v2277
    %vm2305 = vcmp.eq.f32.partialorder %v1234, %v2277
    %vm2306 = vcmp.eq.f32.partialorder %v1236, %v2277
    %vm2307 = vcmp.eq.f32.partialorder %v1238, %v2277
    %vm2308 = vcmp.eq.f32.partialorder %v1240, %v2277
    %vm2309 = vcmp.eq.f32.partialorder %v1242, %v2277
    %vm2310 = vcmp.eq.f32.partialorder %v1244, %v2277
    %vm2311 = vcmp.eq.f32.partialorder %v1246, %v2277
    %vm2312 = vcmp.eq.f32.partialorder %v1248, %v2277
    %vm2313 = vcmp.eq.f32.partialorder %v1250, %v2281
    %vm2314 = vcmp.eq.f32.partialorder %v1252, %v2281
    %vm2315 = vcmp.eq.f32.partialorder %v1254, %v2281
    %vm2316 = vcmp.eq.f32.partialorder %v1256, %v2281
    %vm2317 = vcmp.eq.f32.partialorder %v1258, %v2281
    %vm2318 = vcmp.eq.f32.partialorder %v1260, %v2281
    %vm2319 = vcmp.eq.f32.partialorder %v1262, %v2281
    %vm2320 = vcmp.eq.f32.partialorder %v1264, %v2281
    %vm2321 = vcmp.eq.f32.partialorder %v1266, %v2281
    %v2322 = vlaneseq
    %v2323 = vshrl.u32 %v2322, 7
    %v2324 = vsub.s32 0, %v2323
    %v2325 = vrot.slane %v2264, %v2324
    %2327 = vbcast.lane.b32.xlu0 %v2325, 256
    %v2328 = vpop.permute.xlu0 %2327
    %s2330 = sor.u32 256, 8
    %2331 = vbcast.lane.b32.xlu0 %v2325, %s2330
    %v2332 = vpop.permute.xlu0 %2331
    %s2334 = sor.u32 256, 16
    %2335 = vbcast.lane.b32.xlu0 %v2325, %s2334
    %v2336 = vpop.permute.xlu0 %2335
    %s2338 = sor.u32 256, 24
    %2339 = vbcast.lane.b32.xlu0 %v2325, %s2338
    %v2340 = vpop.permute.xlu0 %2339
    %s2342 = sor.u32 256, 32
    %2343 = vbcast.lane.b32.xlu0 %v2325, %s2342
    %v2344 = vpop.permute.xlu0 %2343
    %s2346 = sor.u32 256, 40
    %2347 = vbcast.lane.b32.xlu0 %v2325, %s2346
    %v2348 = vpop.permute.xlu0 %2347
    %s2350 = sor.u32 256, 48
    %2351 = vbcast.lane.b32.xlu0 %v2325, %s2350
    %v2352 = vpop.permute.xlu0 %2351
    %s2354 = sor.u32 256, 56
    %2355 = vbcast.lane.b32.xlu0 %v2325, %s2354
    %v2356 = vpop.permute.xlu0 %2355
    %s2358 = sor.u32 256, 64
    %2359 = vbcast.lane.b32.xlu0 %v2325, %s2358
    %v2360 = vpop.permute.xlu0 %2359
    %v2361 = vlaneseq
    %v2362 = vshrl.u32 %v2361, 7
    %v2363 = vsub.s32 1, %v2362
    %v2364 = vrot.slane %v2264, %v2363
    %2366 = vbcast.lane.b32.xlu0 %v2364, 256
    %v2367 = vpop.permute.xlu0 %2366
    %s2369 = sor.u32 256, 8
    %2370 = vbcast.lane.b32.xlu0 %v2364, %s2369
    %v2371 = vpop.permute.xlu0 %2370
    %s2373 = sor.u32 256, 16
    %2374 = vbcast.lane.b32.xlu0 %v2364, %s2373
    %v2375 = vpop.permute.xlu0 %2374
    %s2377 = sor.u32 256, 24
    %2378 = vbcast.lane.b32.xlu0 %v2364, %s2377
    %v2379 = vpop.permute.xlu0 %2378
    %s2381 = sor.u32 256, 32
    %2382 = vbcast.lane.b32.xlu0 %v2364, %s2381
    %v2383 = vpop.permute.xlu0 %2382
    %s2385 = sor.u32 256, 40
    %2386 = vbcast.lane.b32.xlu0 %v2364, %s2385
    %v2387 = vpop.permute.xlu0 %2386
    %s2389 = sor.u32 256, 48
    %2390 = vbcast.lane.b32.xlu0 %v2364, %s2389
    %v2391 = vpop.permute.xlu0 %2390
    %s2393 = sor.u32 256, 56
    %2394 = vbcast.lane.b32.xlu0 %v2364, %s2393
    %v2395 = vpop.permute.xlu0 %2394
    %s2397 = sor.u32 256, 64
    %2398 = vbcast.lane.b32.xlu0 %v2364, %s2397
    %v2399 = vpop.permute.xlu0 %2398
    %v2400 = vlaneseq
    %v2401 = vshrl.u32 %v2400, 7
    %v2402 = vsub.s32 2, %v2401
    %v2403 = vrot.slane %v2264, %v2402
    %2405 = vbcast.lane.b32.xlu0 %v2403, 256
    %v2406 = vpop.permute.xlu0 %2405
    %s2408 = sor.u32 256, 8
    %2409 = vbcast.lane.b32.xlu0 %v2403, %s2408
    %v2410 = vpop.permute.xlu0 %2409
    %s2412 = sor.u32 256, 16
    %2413 = vbcast.lane.b32.xlu0 %v2403, %s2412
    %v2414 = vpop.permute.xlu0 %2413
    %s2416 = sor.u32 256, 24
    %2417 = vbcast.lane.b32.xlu0 %v2403, %s2416
    %v2418 = vpop.permute.xlu0 %2417
    %s2420 = sor.u32 256, 32
    %2421 = vbcast.lane.b32.xlu0 %v2403, %s2420
    %v2422 = vpop.permute.xlu0 %2421
    %s2424 = sor.u32 256, 40
    %2425 = vbcast.lane.b32.xlu0 %v2403, %s2424
    %v2426 = vpop.permute.xlu0 %2425
    %s2428 = sor.u32 256, 48
    %2429 = vbcast.lane.b32.xlu0 %v2403, %s2428
    %v2430 = vpop.permute.xlu0 %2429
    %s2432 = sor.u32 256, 56
    %2433 = vbcast.lane.b32.xlu0 %v2403, %s2432
    %v2434 = vpop.permute.xlu0 %2433
    %s2436 = sor.u32 256, 64
    %2437 = vbcast.lane.b32.xlu0 %v2403, %s2436
    %v2438 = vpop.permute.xlu0 %2437
    %v2439 = vlaneseq
    %v2440 = vshrl.u32 %v2439, 7
    %v2441 = vsub.s32 3, %v2440
    %v2442 = vrot.slane %v2264, %v2441
    %2444 = vbcast.lane.b32.xlu0 %v2442, 256
    %v2445 = vpop.permute.xlu0 %2444
    %s2447 = sor.u32 256, 8
    %2448 = vbcast.lane.b32.xlu0 %v2442, %s2447
    %v2449 = vpop.permute.xlu0 %2448
    %s2451 = sor.u32 256, 16
    %2452 = vbcast.lane.b32.xlu0 %v2442, %s2451
    %v2453 = vpop.permute.xlu0 %2452
    %s2455 = sor.u32 256, 24
    %2456 = vbcast.lane.b32.xlu0 %v2442, %s2455
    %v2457 = vpop.permute.xlu0 %2456
    %s2459 = sor.u32 256, 32
    %2460 = vbcast.lane.b32.xlu0 %v2442, %s2459
    %v2461 = vpop.permute.xlu0 %2460
    %s2463 = sor.u32 256, 40
    %2464 = vbcast.lane.b32.xlu0 %v2442, %s2463
    %v2465 = vpop.permute.xlu0 %2464
    %s2467 = sor.u32 256, 48
    %2468 = vbcast.lane.b32.xlu0 %v2442, %s2467
    %v2469 = vpop.permute.xlu0 %2468
    %s2471 = sor.u32 256, 56
    %2472 = vbcast.lane.b32.xlu0 %v2442, %s2471
    %v2473 = vpop.permute.xlu0 %2472
    %s2475 = sor.u32 256, 64
    %2476 = vbcast.lane.b32.xlu0 %v2442, %s2475
    %v2477 = vpop.permute.xlu0 %2476
    %v2478 = vsel %vm2286, %v2328, 4096
    %v2479 = vsel %vm2287, %v2332, 4096
    %v2480 = vsel %vm2288, %v2336, 4096
    %v2481 = vsel %vm2289, %v2340, 4096
    %v2482 = vsel %vm2290, %v2344, 4096
    %v2483 = vsel %vm2291, %v2348, 4096
    %v2484 = vsel %vm2292, %v2352, 4096
    %v2485 = vsel %vm2293, %v2356, 4096
    %v2486 = vsel %vm2294, %v2360, 4096
    %v2487 = vsel %vm2295, %v2367, 4096
    %v2488 = vsel %vm2296, %v2371, 4096
    %v2489 = vsel %vm2297, %v2375, 4096
    %v2490 = vsel %vm2298, %v2379, 4096
    %v2491 = vsel %vm2299, %v2383, 4096
    %v2492 = vsel %vm2300, %v2387, 4096
    %v2493 = vsel %vm2301, %v2391, 4096
    %v2494 = vsel %vm2302, %v2395, 4096
    %v2495 = vsel %vm2303, %v2399, 4096
    %v2496 = vsel %vm2304, %v2406, 4096
    %v2497 = vsel %vm2305, %v2410, 4096
    %v2498 = vsel %vm2306, %v2414, 4096
    %v2499 = vsel %vm2307, %v2418, 4096
    %v2500 = vsel %vm2308, %v2422, 4096
    %v2501 = vsel %vm2309, %v2426, 4096
    %v2502 = vsel %vm2310, %v2430, 4096
    %v2503 = vsel %vm2311, %v2434, 4096
    %v2504 = vsel %vm2312, %v2438, 4096
    %v2505 = vsel %vm2313, %v2445, 4096
    %v2506 = vsel %vm2314, %v2449, 4096
    %v2507 = vsel %vm2315, %v2453, 4096
    %v2508 = vsel %vm2316, %v2457, 4096
    %v2509 = vsel %vm2317, %v2461, 4096
    %v2510 = vsel %vm2318, %v2465, 4096
    %v2511 = vsel %vm2319, %v2469, 4096
    %v2512 = vsel %vm2320, %v2473, 4096
    %v2513 = vsel %vm2321, %v2477, 4096
    %2514 = vset.pattern.permute.xlu0 0
    %2515 = vperm.xlu0 %2514, %v2478
    %v2516 = vpop.permute.xlu0 %2515
    %2517 = vset.pattern.permute.xlu0 0
    %2518 = vperm.xlu0 %2517, %v2479
    %v2519 = vpop.permute.xlu0 %2518
    %2520 = vset.pattern.permute.xlu0 0
    %2521 = vperm.xlu0 %2520, %v2480
    %v2522 = vpop.permute.xlu0 %2521
    %2523 = vset.pattern.permute.xlu0 0
    %2524 = vperm.xlu0 %2523, %v2481
    %v2525 = vpop.permute.xlu0 %2524
    %2526 = vset.pattern.permute.xlu0 0
    %2527 = vperm.xlu0 %2526, %v2482
    %v2528 = vpop.permute.xlu0 %2527
    %2529 = vset.pattern.permute.xlu0 0
    %2530 = vperm.xlu0 %2529, %v2483
    %v2531 = vpop.permute.xlu0 %2530
    %2532 = vset.pattern.permute.xlu0 0
    %2533 = vperm.xlu0 %2532, %v2484
    %v2534 = vpop.permute.xlu0 %2533
    %2535 = vset.pattern.permute.xlu0 0
    %2536 = vperm.xlu0 %2535, %v2485
    %v2537 = vpop.permute.xlu0 %2536
    %2538 = vset.pattern.permute.xlu0 0
    %2539 = vperm.xlu0 %2538, %v2486
    %v2540 = vpop.permute.xlu0 %2539
    %2541 = vset.pattern.permute.xlu0 0
    %2542 = vperm.xlu0 %2541, %v2487
    %v2543 = vpop.permute.xlu0 %2542
    %2544 = vset.pattern.permute.xlu0 0
    %2545 = vperm.xlu0 %2544, %v2488
    %v2546 = vpop.permute.xlu0 %2545
    %2547 = vset.pattern.permute.xlu0 0
    %2548 = vperm.xlu0 %2547, %v2489
    %v2549 = vpop.permute.xlu0 %2548
    %2550 = vset.pattern.permute.xlu0 0
    %2551 = vperm.xlu0 %2550, %v2490
    %v2552 = vpop.permute.xlu0 %2551
    %2553 = vset.pattern.permute.xlu0 0
    %2554 = vperm.xlu0 %2553, %v2491
    %v2555 = vpop.permute.xlu0 %2554
    %2556 = vset.pattern.permute.xlu0 0
    %2557 = vperm.xlu0 %2556, %v2492
    %v2558 = vpop.permute.xlu0 %2557
    %2559 = vset.pattern.permute.xlu0 0
    %2560 = vperm.xlu0 %2559, %v2493
    %v2561 = vpop.permute.xlu0 %2560
    %2562 = vset.pattern.permute.xlu0 0
    %2563 = vperm.xlu0 %2562, %v2494
    %v2564 = vpop.permute.xlu0 %2563
    %2565 = vset.pattern.permute.xlu0 0
    %2566 = vperm.xlu0 %2565, %v2495
    %v2567 = vpop.permute.xlu0 %2566
    %2568 = vset.pattern.permute.xlu0 0
    %2569 = vperm.xlu0 %2568, %v2496
    %v2570 = vpop.permute.xlu0 %2569
    %2571 = vset.pattern.permute.xlu0 0
    %2572 = vperm.xlu0 %2571, %v2497
    %v2573 = vpop.permute.xlu0 %2572
    %2574 = vset.pattern.permute.xlu0 0
    %2575 = vperm.xlu0 %2574, %v2498
    %v2576 = vpop.permute.xlu0 %2575
    %2577 = vset.pattern.permute.xlu0 0
    %2578 = vperm.xlu0 %2577, %v2499
    %v2579 = vpop.permute.xlu0 %2578
    %2580 = vset.pattern.permute.xlu0 0
    %2581 = vperm.xlu0 %2580, %v2500
    %v2582 = vpop.permute.xlu0 %2581
    %2583 = vset.pattern.permute.xlu0 0
    %2584 = vperm.xlu0 %2583, %v2501
    %v2585 = vpop.permute.xlu0 %2584
    %2586 = vset.pattern.permute.xlu0 0
    %2587 = vperm.xlu0 %2586, %v2502
    %v2588 = vpop.permute.xlu0 %2587
    %2589 = vset.pattern.permute.xlu0 0
    %2590 = vperm.xlu0 %2589, %v2503
    %v2591 = vpop.permute.xlu0 %2590
    %2592 = vset.pattern.permute.xlu0 0
    %2593 = vperm.xlu0 %2592, %v2504
    %v2594 = vpop.permute.xlu0 %2593
    %2595 = vset.pattern.permute.xlu0 0
    %2596 = vperm.xlu0 %2595, %v2505
    %v2597 = vpop.permute.xlu0 %2596
    %2598 = vset.pattern.permute.xlu0 0
    %2599 = vperm.xlu0 %2598, %v2506
    %v2600 = vpop.permute.xlu0 %2599
    %2601 = vset.pattern.permute.xlu0 0
    %2602 = vperm.xlu0 %2601, %v2507
    %v2603 = vpop.permute.xlu0 %2602
    %2604 = vset.pattern.permute.xlu0 0
    %2605 = vperm.xlu0 %2604, %v2508
    %v2606 = vpop.permute.xlu0 %2605
    %2607 = vset.pattern.permute.xlu0 0
    %2608 = vperm.xlu0 %2607, %v2509
    %v2609 = vpop.permute.xlu0 %2608
    %2610 = vset.pattern.permute.xlu0 0
    %2611 = vperm.xlu0 %2610, %v2510
    %v2612 = vpop.permute.xlu0 %2611
    %2613 = vset.pattern.permute.xlu0 0
    %2614 = vperm.xlu0 %2613, %v2511
    %v2615 = vpop.permute.xlu0 %2614
    %2616 = vset.pattern.permute.xlu0 0
    %2617 = vperm.xlu0 %2616, %v2512
    %v2618 = vpop.permute.xlu0 %2617
    %2619 = vset.pattern.permute.xlu0 0
    %2620 = vperm.xlu0 %2619, %v2513
    %v2621 = vpop.permute.xlu0 %2620
    %v2622 = vlaneseq
    %v2623 = vshrl.u32 %v2622, 7
    %v2624 = vsub.s32 %v1268, %v2623
    %v2625 = vrot.slane %v2516, %v2624
    %v2626 = vlaneseq
    %v2627 = vshrl.u32 %v2626, 7
    %v2628 = vsub.s32 %v1885, %v2627
    %v2629 = vrot.slane %v2519, %v2628
    %v2630 = vsel %vm1890, %v2629, %v2625
    %v2631 = vlaneseq
    %v2632 = vshrl.u32 %v2631, 7
    %v2633 = vsub.s32 %v1892, %v2632
    %v2634 = vrot.slane %v2522, %v2633
    %v2635 = vsel %vm1897, %v2634, %v2630
    %v2636 = vlaneseq
    %v2637 = vshrl.u32 %v2636, 7
    %v2638 = vsub.s32 %v1899, %v2637
    %v2639 = vrot.slane %v2525, %v2638
    %v2640 = vsel %vm1904, %v2639, %v2635
    %v2641 = vlaneseq
    %v2642 = vshrl.u32 %v2641, 7
    %v2643 = vsub.s32 %v1906, %v2642
    %v2644 = vrot.slane %v2528, %v2643
    %v2645 = vsel %vm1911, %v2644, %v2640
    %v2646 = vlaneseq
    %v2647 = vshrl.u32 %v2646, 7
    %v2648 = vsub.s32 %v1913, %v2647
    %v2649 = vrot.slane %v2531, %v2648
    %v2650 = vsel %vm1918, %v2649, %v2645
    %v2651 = vlaneseq
    %v2652 = vshrl.u32 %v2651, 7
    %v2653 = vsub.s32 %v1920, %v2652
    %v2654 = vrot.slane %v2534, %v2653
    %v2655 = vsel %vm1925, %v2654, %v2650
    %v2656 = vlaneseq
    %v2657 = vshrl.u32 %v2656, 7
    %v2658 = vsub.s32 %v1927, %v2657
    %v2659 = vrot.slane %v2537, %v2658
    %v2660 = vsel %vm1932, %v2659, %v2655
    %v2661 = vlaneseq
    %v2662 = vshrl.u32 %v2661, 7
    %v2663 = vsub.s32 %v1934, %v2662
    %v2664 = vrot.slane %v2540, %v2663
    %v2665 = vsel %vm1939, %v2664, %v2660
    %v2666 = vlaneseq
    %v2667 = vshrl.u32 %v2666, 7
    %v2668 = vsub.s32 %v1268, %v2667
    %v2669 = vrot.slane %v2543, %v2668
    %v2670 = vlaneseq
    %v2671 = vshrl.u32 %v2670, 7
    %v2672 = vsub.s32 %v1885, %v2671
    %v2673 = vrot.slane %v2546, %v2672
    %v2674 = vsel %vm1890, %v2673, %v2669
    %v2675 = vlaneseq
    %v2676 = vshrl.u32 %v2675, 7
    %v2677 = vsub.s32 %v1892, %v2676
    %v2678 = vrot.slane %v2549, %v2677
    %v2679 = vsel %vm1897, %v2678, %v2674
    %v2680 = vlaneseq
    %v2681 = vshrl.u32 %v2680, 7
    %v2682 = vsub.s32 %v1899, %v2681
    %v2683 = vrot.slane %v2552, %v2682
    %v2684 = vsel %vm1904, %v2683, %v2679
    %v2685 = vlaneseq
    %v2686 = vshrl.u32 %v2685, 7
    %v2687 = vsub.s32 %v1906, %v2686
    %v2688 = vrot.slane %v2555, %v2687
    %v2689 = vsel %vm1911, %v2688, %v2684
    %v2690 = vlaneseq
    %v2691 = vshrl.u32 %v2690, 7
    %v2692 = vsub.s32 %v1913, %v2691
    %v2693 = vrot.slane %v2558, %v2692
    %v2694 = vsel %vm1918, %v2693, %v2689
    %v2695 = vlaneseq
    %v2696 = vshrl.u32 %v2695, 7
    %v2697 = vsub.s32 %v1920, %v2696
    %v2698 = vrot.slane %v2561, %v2697
    %v2699 = vsel %vm1925, %v2698, %v2694
    %v2700 = vlaneseq
    %v2701 = vshrl.u32 %v2700, 7
    %v2702 = vsub.s32 %v1927, %v2701
    %v2703 = vrot.slane %v2564, %v2702
    %v2704 = vsel %vm1932, %v2703, %v2699
    %v2705 = vlaneseq
    %v2706 = vshrl.u32 %v2705, 7
    %v2707 = vsub.s32 %v1934, %v2706
    %v2708 = vrot.slane %v2567, %v2707
    %v2709 = vsel %vm1939, %v2708, %v2704
    %v2710 = vlaneseq
    %v2711 = vshrl.u32 %v2710, 7
    %v2712 = vsub.s32 %v1268, %v2711
    %v2713 = vrot.slane %v2570, %v2712
    %v2714 = vlaneseq
    %v2715 = vshrl.u32 %v2714, 7
    %v2716 = vsub.s32 %v1885, %v2715
    %v2717 = vrot.slane %v2573, %v2716
    %v2718 = vsel %vm1890, %v2717, %v2713
    %v2719 = vlaneseq
    %v2720 = vshrl.u32 %v2719, 7
    %v2721 = vsub.s32 %v1892, %v2720
    %v2722 = vrot.slane %v2576, %v2721
    %v2723 = vsel %vm1897, %v2722, %v2718
    %v2724 = vlaneseq
    %v2725 = vshrl.u32 %v2724, 7
    %v2726 = vsub.s32 %v1899, %v2725
    %v2727 = vrot.slane %v2579, %v2726
    %v2728 = vsel %vm1904, %v2727, %v2723
    %v2729 = vlaneseq
    %v2730 = vshrl.u32 %v2729, 7
    %v2731 = vsub.s32 %v1906, %v2730
    %v2732 = vrot.slane %v2582, %v2731
    %v2733 = vsel %vm1911, %v2732, %v2728
    %v2734 = vlaneseq
    %v2735 = vshrl.u32 %v2734, 7
    %v2736 = vsub.s32 %v1913, %v2735
    %v2737 = vrot.slane %v2585, %v2736
    %v2738 = vsel %vm1918, %v2737, %v2733
    %v2739 = vlaneseq
    %v2740 = vshrl.u32 %v2739, 7
    %v2741 = vsub.s32 %v1920, %v2740
    %v2742 = vrot.slane %v2588, %v2741
    %v2743 = vsel %vm1925, %v2742, %v2738
    %v2744 = vlaneseq
    %v2745 = vshrl.u32 %v2744, 7
    %v2746 = vsub.s32 %v1927, %v2745
    %v2747 = vrot.slane %v2591, %v2746
    %v2748 = vsel %vm1932, %v2747, %v2743
    %v2749 = vlaneseq
    %v2750 = vshrl.u32 %v2749, 7
    %v2751 = vsub.s32 %v1934, %v2750
    %v2752 = vrot.slane %v2594, %v2751
    %v2753 = vsel %vm1939, %v2752, %v2748
    %v2754 = vlaneseq
    %v2755 = vshrl.u32 %v2754, 7
    %v2756 = vsub.s32 %v1268, %v2755
    %v2757 = vrot.slane %v2597, %v2756
    %v2758 = vlaneseq
    %v2759 = vshrl.u32 %v2758, 7
    %v2760 = vsub.s32 %v1885, %v2759
    %v2761 = vrot.slane %v2600, %v2760
    %v2762 = vsel %vm1890, %v2761, %v2757
    %v2763 = vlaneseq
    %v2764 = vshrl.u32 %v2763, 7
    %v2765 = vsub.s32 %v1892, %v2764
    %v2766 = vrot.slane %v2603, %v2765
    %v2767 = vsel %vm1897, %v2766, %v2762
    %v2768 = vlaneseq
    %v2769 = vshrl.u32 %v2768, 7
    %v2770 = vsub.s32 %v1899, %v2769
    %v2771 = vrot.slane %v2606, %v2770
    %v2772 = vsel %vm1904, %v2771, %v2767
    %v2773 = vlaneseq
    %v2774 = vshrl.u32 %v2773, 7
    %v2775 = vsub.s32 %v1906, %v2774
    %v2776 = vrot.slane %v2609, %v2775
    %v2777 = vsel %vm1911, %v2776, %v2772
    %v2778 = vlaneseq
    %v2779 = vshrl.u32 %v2778, 7
    %v2780 = vsub.s32 %v1913, %v2779
    %v2781 = vrot.slane %v2612, %v2780
    %v2782 = vsel %vm1918, %v2781, %v2777
    %v2783 = vlaneseq
    %v2784 = vshrl.u32 %v2783, 7
    %v2785 = vsub.s32 %v1920, %v2784
    %v2786 = vrot.slane %v2615, %v2785
    %v2787 = vsel %vm1925, %v2786, %v2782
    %v2788 = vlaneseq
    %v2789 = vshrl.u32 %v2788, 7
    %v2790 = vsub.s32 %v1927, %v2789
    %v2791 = vrot.slane %v2618, %v2790
    %v2792 = vsel %vm1932, %v2791, %v2787
    %v2793 = vlaneseq
    %v2794 = vshrl.u32 %v2793, 7
    %v2795 = vsub.s32 %v1934, %v2794
    %v2796 = vrot.slane %v2621, %v2795
    %v2797 = vsel %vm1939, %v2796, %v2792
    %v2798 = vsel %vm2073, %v2709, %v2665
    %v2799 = vsel %vm2075, %v2753, %v2798
    %v2800 = vsel %vm2077, %v2797, %v2799
    %v2801 = vsel %vm2080, %v2800, 2147483647
    %v2802 = vand.u32 %v2801, 65535
    %v2803 = vshra.s32 %v2801, 16
    %v2804 = vcvt.s32.f32 %v2802
    %v2805 = vcvt.s32.f32 %v2803
    %2806 = vmin.xlane.f32.xlu0 %v2805
    %v2807 = vpop.xlane.xlu0 %2806
    %vm2808 = vcmp.eq.f32.partialorder %v2805, %v2807
    %v2809 = vsel %vm2808, %v2804, inf
    %2810 = vmin.xlane.f32.xlu0 %v2809
    %v2811 = vpop.xlane.xlu0 %2810
    %v2812 = vcvt.f32.s32 %v2811
    %v2813 = vcvt.f32.s32 %v2807
    %v2814 = vshll.u32 %v2813, 16
    %v2815 = vadd.s32 %v2814, %v2812
    %vm2816 = vcmask 1024
    %2817 = vst.msk [vmem:[%s2] sm:$0x3] %vm2816, %v2083
    %vm2818 = vcmask 3074
    %2819 = vst.msk [vmem:[%s4 - $0x2] sm:$0xc] %vm2818, %v2083
    %2820 = vst.msk [vmem:[%s3] sm:$0x3] %vm2816, %v2815
    %2821 = vst.msk [vmem:[%s5 - $0x2] sm:$0xc] %vm2818, %v2815
    // Predicated region
    $region18: #{tpu_custom_call.1} parent=1 // pred_check
      _
    $region19: #{tpu_custom_call.1} parent=1 // pred_check_branch
      %2823 = sbr.rel (0) target = $region21
    $region20: #{tpu_custom_call.1} parent=1 // pred_region
      _
    $region21: #{tpu_custom_call.1} parent=1 // pred_fallthru
      _
    // Predicated region
    $region22: #{tpu_custom_call.1} parent=1 // pred_check
      _
    $region23: #{tpu_custom_call.1} parent=1 // pred_check_branch
      %2825 = sbr.rel (0) target = $region25
    $region24: #{tpu_custom_call.1} parent=1 // pred_region
      _
    $region25: #{tpu_custom_call.1} parent=1 // pred_fallthru
      _
    // Predicated region
    $region26: #{tpu_custom_call.1} parent=1 // pred_check
      _
    $region27: #{tpu_custom_call.1} parent=1 // pred_check_branch
      %2827 = sbr.rel (0) target = $region29
    $region28: #{tpu_custom_call.1} parent=1 // pred_region
      _
    $region29: #{tpu_custom_call.1} parent=1 // pred_fallthru
      _
    // Predicated region
    $region30: #{tpu_custom_call.1} parent=1 // pred_check
      _
    $region31: #{tpu_custom_call.1} parent=1 // pred_check_branch
      %2829 = sbr.rel (0) target = $region33
    $region32: #{tpu_custom_call.1} parent=1 // pred_region
      _
    $region33: #{tpu_custom_call.1} parent=1 // pred_fallthru
      _
    // Predicated region
    $region34: #{tpu_custom_call.1} parent=1 // pred_check
      _
    $region35: #{tpu_custom_call.1} parent=1 // pred_check_branch
      %2831 = sbr.rel (0) target = $region37
    $region36: #{tpu_custom_call.1} parent=1 // pred_region
      _
    $region37: #{tpu_custom_call.1} parent=1 // pred_fallthru
      _
    // Predicated region
    $region38: #{tpu_custom_call.1} parent=1 // pred_check
      _
    $region39: #{tpu_custom_call.1} parent=1 // pred_check_branch
      %2833 = sbr.rel (0) target = $region41
    $region40: #{tpu_custom_call.1} parent=1 // pred_region
      _
    $region41: #{tpu_custom_call.1} parent=1 // pred_fallthru
      _
    // Predicated region
    $region42: #{tpu_custom_call.1} parent=1 // pred_check
      _
    $region43: #{tpu_custom_call.1} parent=1 // pred_check_branch
      %2835 = sbr.rel (0) target = $region45
    $region44: #{tpu_custom_call.1} parent=1 // pred_region
      _
    $region45: #{tpu_custom_call.1} parent=1 // pred_fallthru
      _
    // Predicated region
    $region46: #{tpu_custom_call.1} parent=1 // pred_check
      _
    $region47: #{tpu_custom_call.1} parent=1 // pred_check_branch
      %2837 = sbr.rel (0) target = $region49
    $region48: #{tpu_custom_call.1} parent=1 // pred_region
      _
    $region49: #{tpu_custom_call.1} parent=1 // pred_fallthru
      _
    %2838 = vsyncpa [#allocation4], 1
    %2839 = vsyncpa [#allocation6], 1

</llo_original>
